<compile_context>
chip_gen: v5e
topology: v5e:2x2
jax: 0.10.0
libtpu: 0.0.40
codegen_flags: <defaults>
</compile_context>

<pallas_src>
import jax
import jax.numpy as jnp
from jax import lax
from jax.experimental import pallas as pl
from jax.experimental.pallas import tpu as pltpu

EPS = 1e-5                       # BatchNorm2d default eps
VMEM_LIMIT = 32 * 1024 * 1024    # explicit scoped-VMEM cap, safe on v5e/v6e/v7x


def _round_up(x, m):
    return ((x + m - 1) // m) * m


def _row_tile(total, cap=512):
    """Largest row-tile <= cap that divides `total` (multiple of 8), else full."""
    for r in (cap, 384, 256, 128, 64, 32, 16, 8):
        if r <= cap and total % r == 0:
            return r
    return total


# ----------------------------------------------------------------------------
# Pallas kernels
# ----------------------------------------------------------------------------
def cbn_stats_kernel(x_ref, stat_ref, mean_ref, m2_ref):
    """Per-channel batch statistics via chunked Welford (Chan combine).

    x_ref   : (R, C) row tile of the flattened (N*H*W, C) activation
    stat_ref: (2, C) output -> row 0 = mean, row 1 = biased variance
    mean_ref, m2_ref : (1, C) f32 running accumulators (scratch)
    """
    i = pl.program_id(0)
    rows = x_ref.shape[0]

    x = x_ref[...].astype(jnp.float32)                    # (R, C)
    local_mean = jnp.mean(x, axis=0, keepdims=True)       # (1, C)
    d = x - local_mean
    local_m2 = jnp.sum(d * d, axis=0, keepdims=True)      # (1, C)

    @pl.when(i == 0)
    def _():
        mean_ref[...] = jnp.zeros_like(mean_ref)
        m2_ref[...] = jnp.zeros_like(m2_ref)

    n = (i * rows).astype(jnp.float32)                    # rows seen so far
    nb = jnp.float32(rows)
    tot = n + nb
    delta = local_mean - mean_ref[...]
    mean_ref[...] = mean_ref[...] + delta * (nb / tot)
    m2_ref[...] = m2_ref[...] + local_m2 + delta * delta * (n * nb / tot)

    @pl.when(i == pl.num_programs(0) - 1)
    def _():
        stat_ref[0:1, :] = mean_ref[...]
        stat_ref[1:2, :] = m2_ref[...] / tot               # biased variance


def cbn_apply_relu_kernel(x_ref, stat_ref, g_ref, b_ref, o_ref):
    """Normalize + conditional affine + ReLU for one (sample, row-tile) block.

    x_ref : (1, R, C)    stat_ref : (2, C)    g_ref/b_ref : (1, 1, C)
    """
    mean = stat_ref[0:1, :]                                # (1, C)
    var = stat_ref[1:2, :]
    rstd = lax.rsqrt(var + EPS)
    scale = g_ref[0] * rstd                                # (1, C)
    shift = b_ref[0] - mean * scale                        # (1, C)
    x = x_ref[...].astype(jnp.float32)                     # (1, R, C)
    y = x * scale[:, None, :] + shift[:, None, :]
    o_ref[...] = jnp.maximum(y, 0.0).astype(o_ref.dtype)


def conv_matmul_kernel(p_ref, w_ref, b_ref, o_ref, acc_ref):
    """Conv-as-matmul, K-tiled: acc += (tm, tk) @ (tk, Co); bias added once."""
    k = pl.program_id(1)

    @pl.when(k == 0)
    def _():
        acc_ref[...] = jnp.broadcast_to(b_ref[...], acc_ref.shape).astype(jnp.float32)

    acc_ref[...] += jnp.dot(p_ref[...], w_ref[...],
                            preferred_element_type=jnp.float32)

    @pl.when(k == pl.num_programs(1) - 1)
    def _():
        o_ref[...] = acc_ref[...].astype(o_ref.dtype)


def conv_skip_add_kernel(p2_ref, w2_ref, b2_ref, x0_ref, w0_ref, b0_ref,
                         o_ref, acc_ref):
    """snconv2d2 (3x3 via K-tiled im2col matmul) + snconv2d0 (1x1 skip) + add."""
    k = pl.program_id(1)

    @pl.when(k == 0)
    def _():
        skip = jnp.dot(x0_ref[...], w0_ref[...],
                       preferred_element_type=jnp.float32)
        acc_ref[...] = skip + b0_ref[...] + b2_ref[...]

    acc_ref[...] += jnp.dot(p2_ref[...], w2_ref[...],
                            preferred_element_type=jnp.float32)

    @pl.when(k == pl.num_programs(1) - 1)
    def _():
        o_ref[...] = acc_ref[...].astype(o_ref.dtype)


# ----------------------------------------------------------------------------
# pallas_call wrappers
# ----------------------------------------------------------------------------
def cbn_stats(x2d):
    """x2d: (N*H*W, C) -> (2, C) [mean; biased var]."""
    NR, C = x2d.shape
    R = _row_tile(NR, 512)
    return pl.pallas_call(
        cbn_stats_kernel,
        out_shape=jax.ShapeDtypeStruct((2, C), jnp.float32),
        grid=(NR // R,),
        in_specs=[pl.BlockSpec((R, C), lambda i: (i, 0))],
        out_specs=pl.BlockSpec((2, C), lambda i: (0, 0)),
        scratch_shapes=[pltpu.VMEM((1, C), jnp.float32),
                        pltpu.VMEM((1, C), jnp.float32)],
        compiler_params=pltpu.CompilerParams(
            dimension_semantics=("arbitrary",),
            vmem_limit_bytes=VMEM_LIMIT),
    )(x2d)


def cbn_apply_relu(x3d, stats, gamma, beta, out_dtype=jnp.bfloat16):
    """x3d: (N, HW, C); gamma/beta: (N, 1, C); stats: (2, C)."""
    N, HW, C = x3d.shape
    R = _row_tile(HW, 512)
    return pl.pallas_call(
        cbn_apply_relu_kernel,
        out_shape=jax.ShapeDtypeStruct((N, HW, C), out_dtype),
        grid=(N, HW // R),
        in_specs=[pl.BlockSpec((1, R, C), lambda n, t: (n, t, 0)),
                  pl.BlockSpec((2, C), lambda n, t: (0, 0)),
                  pl.BlockSpec((1, 1, C), lambda n, t: (n, 0, 0)),
                  pl.BlockSpec((1, 1, C), lambda n, t: (n, 0, 0))],
        out_specs=pl.BlockSpec((1, R, C), lambda n, t: (n, t, 0)),
        compiler_params=pltpu.CompilerParams(
            dimension_semantics=("parallel", "parallel"),
            vmem_limit_bytes=VMEM_LIMIT),
    )(x3d, stats, gamma, beta)


def conv_matmul(p, w, b, out_dtype=jnp.float32, tm=512, tk_max=1024):
    """(M, K) @ (K, Co) + b with M padded to tm and K tiled when large."""
    M, K = p.shape
    Co = w.shape[1]
    tm = min(tm, _round_up(M, 8))
    Mp = _round_up(M, tm)
    if K <= tk_max:
        tk, Kp = K, K
    else:
        tk = 512
        Kp = _round_up(K, tk)
    if Mp != M or Kp != K:
        p = jnp.pad(p, ((0, Mp - M), (0, Kp - K)))
    if Kp != K:
        w = jnp.pad(w, ((0, Kp - K), (0, 0)))

    out = pl.pallas_call(
        conv_matmul_kernel,
        out_shape=jax.ShapeDtypeStruct((Mp, Co), out_dtype),
        grid=(Mp // tm, Kp // tk),
        in_specs=[pl.BlockSpec((tm, tk), lambda i, k: (i, k)),
                  pl.BlockSpec((tk, Co), lambda i, k: (k, 0)),
                  pl.BlockSpec((1, Co), lambda i, k: (0, 0))],
        out_specs=pl.BlockSpec((tm, Co), lambda i, k: (i, 0)),
        scratch_shapes=[pltpu.VMEM((tm, Co), jnp.float32)],
        compiler_params=pltpu.CompilerParams(
            dimension_semantics=("parallel", "arbitrary"),
            vmem_limit_bytes=VMEM_LIMIT),
    )(p, w, b)
    return out[:M] if Mp != M else out


def conv_plus_skip(p2, w2, b2, x0, w0, b0, out_dtype=jnp.float32,
                   tm=512, tk_max=1024):
    M, K2 = p2.shape
    Co = w2.shape[1]
    Ci = w0.shape[0]
    tm = min(tm, _round_up(M, 8))
    Mp = _round_up(M, tm)
    if K2 <= tk_max:
        tk, Kp = K2, K2
    else:
        tk = 512
        Kp = _round_up(K2, tk)
    if Mp != M or Kp != K2:
        p2 = jnp.pad(p2, ((0, Mp - M), (0, Kp - K2)))
    if Mp != M:
        x0 = jnp.pad(x0, ((0, Mp - M), (0, 0)))
    if Kp != K2:
        w2 = jnp.pad(w2, ((0, Kp - K2), (0, 0)))

    out = pl.pallas_call(
        conv_skip_add_kernel,
        out_shape=jax.ShapeDtypeStruct((Mp, Co), out_dtype),
        grid=(Mp // tm, Kp // tk),
        in_specs=[pl.BlockSpec((tm, tk), lambda i, k: (i, k)),
                  pl.BlockSpec((tk, Co), lambda i, k: (k, 0)),
                  pl.BlockSpec((1, Co), lambda i, k: (0, 0)),
                  pl.BlockSpec((tm, Ci), lambda i, k: (i, 0)),
                  pl.BlockSpec((Ci, Co), lambda i, k: (0, 0)),
                  pl.BlockSpec((1, Co), lambda i, k: (0, 0))],
        out_specs=pl.BlockSpec((tm, Co), lambda i, k: (i, 0)),
        scratch_shapes=[pltpu.VMEM((tm, Co), jnp.float32)],
        compiler_params=pltpu.CompilerParams(
            dimension_semantics=("parallel", "arbitrary"),
            vmem_limit_bytes=VMEM_LIMIT),
    )(p2, w2, b2, x0, w0, b0)
    return out[:M] if Mp != M else out


# ----------------------------------------------------------------------------
# JAX glue: layout plumbing (upsample, im2col) and one-time parameter prep
# ----------------------------------------------------------------------------
def nearest_up2_nhwc(x):
    # F.interpolate(scale_factor=2, mode='nearest'): out[i, j] = in[i//2, j//2]
    return jnp.repeat(jnp.repeat(x, 2, axis=1), 2, axis=2)


def im2col_3x3_pad1(x):
    """NHWC -> (N*H*W, 9*C) patches for a 3x3 / pad=1 / stride=1 conv."""
    N, H, W, C = x.shape
    xp = jnp.pad(x, ((0, 0), (1, 1), (1, 1), (0, 0)))
    taps = [xp[:, dy:dy + H, dx:dx + W, :] for dy in range(3) for dx in range(3)]
    return jnp.concatenate(taps, axis=-1).reshape(N * H * W, 9 * C)


def spectral_normalize(W, key, n_iter=1):
    """Deterministic spectral_norm: one power iteration from a seeded u."""
    co = W.shape[0]
    Wm = W.reshape(co, -1)
    u = jax.random.normal(key, (co,), dtype=W.dtype)
    u = u / (jnp.linalg.norm(u) + 1e-12)
    v = None
    for _ in range(n_iter):
        v = Wm.T @ u
        v = v / (jnp.linalg.norm(v) + 1e-12)
        u = Wm @ v
        u = u / (jnp.linalg.norm(u) + 1e-12)
    sigma = jnp.dot(u, Wm @ v)
    return W / sigma


def prepare_params(raw):
    """One-time prep: weight transposes to matmul layout (bf16) + bias reshapes."""
    Cout, Cin = raw["w1"].shape[0], raw["w1"].shape[1]
    we1, be1, we2, be2 = raw["we1"], raw["be1"], raw["we2"], raw["be2"]
    return dict(
        w1m=jnp.transpose(raw["w1"], (2, 3, 1, 0)).reshape(9 * Cin, Cout).astype(jnp.bfloat16),
        w2m=jnp.transpose(raw["w2"], (2, 3, 1, 0)).reshape(9 * Cout, Cout).astype(jnp.bfloat16),
        w0m=raw["w0"][:, :, 0, 0].T.astype(jnp.bfloat16),
        b1r=raw["b1"].reshape(1, Cout).astype(jnp.float32),
        b2r=raw["b2"].reshape(1, Cout).astype(jnp.float32),
        b0r=raw["b0"].reshape(1, Cout).astype(jnp.float32),
        # gamma / beta halves of the embed Linear (chunk(2, 1)), pre-transposed
        ew1g=we1.T[:, :Cin], eb1g=be1[:Cin],
        ew1b=we1.T[:, Cin:], eb1b=be1[Cin:],
        ew2g=we2.T[:, :Cout], eb2g=be2[:Cout],
        ew2b=we2.T[:, Cout:], eb2b=be2[Cout:],
    )


def gen_block_forward(x_nchw, t2i, params):
    N, Cin, H, W = x_nchw.shape
    Cout = params["w0m"].shape[1]
    H2, W2 = 2 * H, 2 * W

    x = jnp.transpose(x_nchw, (0, 2, 3, 1)).astype(jnp.float32)        # NHWC

    # ---- cond_bn1 + relu  (Pallas: tiled stats + tiled normalize) ----
    stats1 = cbn_stats(x.reshape(N * H * W, Cin))
    gamma1 = (t2i @ params["ew1g"] + params["eb1g"]).reshape(N, 1, Cin)
    beta1 = (t2i @ params["ew1b"] + params["eb1b"]).reshape(N, 1, Cin)
    h1 = cbn_apply_relu(x.reshape(N, H * W, Cin), stats1, gamma1, beta1,
                        out_dtype=jnp.bfloat16).reshape(N, H, W, Cin)

    # ---- nearest upsample x2 + snconv2d1 3x3 (bf16 MXU, K-tiled) ----
    p1 = im2col_3x3_pad1(nearest_up2_nhwc(h1))            # (N*H2*W2, 9*Cin) bf16
    y1 = conv_matmul(p1, params["w1m"], params["b1r"], out_dtype=jnp.float32)

    # ---- cond_bn2 + relu  (Pallas) ----
    stats2 = cbn_stats(y1)                                # (N*H2*W2, Cout) rows
    gamma2 = (t2i @ params["ew2g"] + params["eb2g"]).reshape(N, 1, Cout)
    beta2 = (t2i @ params["ew2b"] + params["eb2b"]).reshape(N, 1, Cout)
    h2 = cbn_apply_relu(y1.reshape(N, H2 * W2, Cout), stats2, gamma2, beta2,
                        out_dtype=jnp.bfloat16).reshape(N, H2, W2, Cout)

    # ---- snconv2d2 3x3 + (upsampled skip -> snconv2d0 1x1) + add (fused) ----
    p2 = im2col_3x3_pad1(h2)                              # (N*H2*W2, 9*Cout) bf16
    x0u = nearest_up2_nhwc(x).reshape(N * H2 * W2, Cin).astype(jnp.bfloat16)
    out2d = conv_plus_skip(p2, params["w2m"], params["b2r"],
                           x0u, params["w0m"], params["b0r"])

    out = out2d.reshape(N, H2, W2, Cout)
    return jnp.transpose(out, (0, 3, 1, 2))               # back to NCHW


# ----------------------------------------------------------------------------
# Pure-JAX reference (NCHW, lax.conv, f32) for correctness check
# ----------------------------------------------------------------------------
def ref_forward(x, t2i, raw):
    Cin = x.shape[1]
    Cout = raw["w1"].shape[0]

    def cbn(h, we, be, C):
        mean = jnp.mean(h, axis=(0, 2, 3), keepdims=True)
        var = jnp.var(h, axis=(0, 2, 3), keepdims=True)
        hn = (h - mean) / jnp.sqrt(var + EPS)
        gb = t2i @ we.T + be
        gamma = gb[:, :C][:, :, None, None]
        beta = gb[:, C:][:, :, None, None]
        return gamma * hn + beta

    def conv(h, Wc, bc, pad):
        y = lax.conv_general_dilated(h, Wc, (1, 1), [(pad, pad), (pad, pad)],
                                     dimension_numbers=("NCHW", "OIHW", "NCHW"))
        return y + bc[None, :, None, None]

    def up(h):
        return jnp.repeat(jnp.repeat(h, 2, axis=2), 2, axis=3)

    h = jnp.maximum(cbn(x, raw["we1"], raw["be1"], Cin), 0.0)
    h = conv(up(h), raw["w1"], raw["b1"], 1)
    h = jnp.maximum(cbn(h, raw["we2"], raw["be2"], Cout), 0.0)
    h = conv(h, raw["w2"], raw["b2"], 1)
    s = conv(up(x), raw["w0"], raw["b0"], 0)
    return h + s


# ----------------------------------------------------------------------------
if __name__ == "__main__":
    key = jax.random.PRNGKey(0)
    N, Cin, Cout, H, W, T = 2, 4, 8, 16, 16, 8
    keys = jax.random.split(key, 12)

    x = jax.random.normal(keys[0], (N, Cin, H, W), jnp.float32)
    t2i = jax.random.normal(keys[1], (N, T), jnp.float32)

    # conv weights (OIHW) with deterministic spectral normalization
    w1 = spectral_normalize(0.2 * jax.random.normal(keys[2], (Cout, Cin, 3, 3), jnp.float32), keys[5])
    w2 = spectral_normalize(0.2 * jax.random.normal(keys[3], (Cout, Cout, 3, 3), jnp.float32), keys[6])
    w0 = spectral_normalize(0.2 * jax.random.normal(keys[4], (Cout, Cin, 1, 1), jnp.float32), keys[7])
    b1 = 0.05 * jax.random.normal(keys[8], (Cout,), jnp.float32)
    b2 = 0.05 * jax.random.normal(keys[9], (Cout,), jnp.float32)
    b0 = 0.05 * jax.random.normal(keys[10], (Cout,), jnp.float32)

    # embed Linear(t2i_dim, 2*C): PyTorch weight (2C, T), bias (2C,)
    ekeys = jax.random.split(keys[11], 4)
    we1 = 0.2 * jax.random.normal(ekeys[0], (2 * Cin, T), jnp.float32)
    be1 = 0.05 * jax.random.normal(ekeys[1], (2 * Cin,), jnp.float32)
    we2 = 0.2 * jax.random.normal(ekeys[2], (2 * Cout, T), jnp.float32)
    be2 = 0.05 * jax.random.normal(ekeys[3], (2 * Cout,), jnp.float32)

    raw = dict(w1=w1, b1=b1, w2=w2, b2=b2, w0=w0, b0=b0,
               we1=we1, be1=be1, we2=we2, be2=be2)
    params = prepare_params(raw)           # one-time weight prep (hoisted)

    fwd = jax.jit(gen_block_forward)
    out = jax.block_until_ready(fwd(x, t2i, params))
    assert out.shape == (N, Cout, 2 * H, 2 * W)

    ref = ref_forward(x, t2i, raw)
    abs_err = jnp.abs(out - ref)
    max_err = float(jnp.max(abs_err))
    mean_err = float(jnp.mean(abs_err))
    rel_err = max_err / (float(jnp.max(jnp.abs(ref))) + 1e-6)
    # bf16 MXU inputs (f32 accumulate) vs f32 reference -> allow bf16-level error
    assert rel_err < 1e-1 and mean_err < 2e-2, \
        f"rel_err={rel_err}, mean_err={mean_err}"
    print("KERNEL_OK")
</pallas_src>

<mosaic_0001>
module attributes {stable_mosaic.version = 11 : i64} {
  func.func @cbn_stats_kernel(%arg0: i32, %arg1: memref<512x4xf32, #tpu.memory_space<vmem>>, %arg2: memref<2x4xf32, #tpu.memory_space<vmem>>, %arg3: memref<1x4xf32, #tpu.memory_space<vmem>>, %arg4: memref<1x4xf32, #tpu.memory_space<vmem>>) attributes {dimension_semantics = [#tpu.dimension_semantics<arbitrary>], iteration_bounds = array<i64: 1>, scalar_prefetch = 0 : i64, scratch_operands = 2 : i64, tpu.core_type = #tpu.core_type<tc>, window_params = [{transform_indices = @transform_0, window_bounds = array<i64: 512, 4>}, {pipeline_mode = #tpu.pipeline_mode<synchronous>, transform_indices = @transform_1, window_bounds = array<i64: 2, 4>}]} {
    %c0 = arith.constant 0 : index
    %c0_0 = arith.constant 0 : index
    %0 = vector.load %arg1[%c0, %c0_0] : memref<512x4xf32, #tpu.memory_space<vmem>>, vector<512x4xf32>
    %cst = arith.constant dense<0.000000e+00> : vector<4xf32>
    %1 = vector.multi_reduction <add>, %0, %cst [0] : vector<512x4xf32> to vector<4xf32>
    %2 = vector.shape_cast %1 : vector<4xf32> to vector<1x4xf32>
    %cst_1 = arith.constant 5.120000e+02 : f32
    %3 = vector.broadcast %cst_1 : f32 to vector<1x4xf32>
    %4 = arith.divf %2, %3 : vector<1x4xf32>
    %5 = vector.broadcast %4 : vector<1x4xf32> to vector<512x4xf32>
    %6 = arith.subf %0, %5 : vector<512x4xf32>
    %7 = arith.mulf %6, %6 : vector<512x4xf32>
    %cst_2 = arith.constant dense<0.000000e+00> : vector<4xf32>
    %8 = vector.multi_reduction <add>, %7, %cst_2 [0] : vector<512x4xf32> to vector<4xf32>
    %9 = vector.shape_cast %8 : vector<4xf32> to vector<1x4xf32>
    %c0_i32 = arith.constant 0 : i32
    %10 = arith.cmpi eq, %arg0, %c0_i32 : i32
    %11 = arith.extui %10 : i1 to i32
    %c0_i32_3 = arith.constant 0 : i32
    %12 = arith.cmpi ne, %11, %c0_i32_3 : i32
    scf.if %12 {
      %cst_19 = arith.constant 0.000000e+00 : f32
      %36 = vector.broadcast %cst_19 : f32 to vector<1x4xf32>
      %c0_20 = arith.constant 0 : index
      %c0_21 = arith.constant 0 : index
      %37 = vector.load %arg3[%c0_20, %c0_21] : memref<1x4xf32, #tpu.memory_space<vmem>>, vector<1x4xf32>
      tpu.vector_store %arg3[%c0_20, %c0_21], %36 {strides = array<i32>} : memref<1x4xf32, #tpu.memory_space<vmem>>, vector<1x4xf32>,
      %cst_22 = arith.constant 0.000000e+00 : f32
      %38 = vector.broadcast %cst_22 : f32 to vector<1x4xf32>
      %c0_23 = arith.constant 0 : index
      %c0_24 = arith.constant 0 : index
      %39 = vector.load %arg4[%c0_23, %c0_24] : memref<1x4xf32, #tpu.memory_space<vmem>>, vector<1x4xf32>
      tpu.vector_store %arg4[%c0_23, %c0_24], %38 {strides = array<i32>} : memref<1x4xf32, #tpu.memory_space<vmem>>, vector<1x4xf32>,
    } else {
    }
    %c512_i32 = arith.constant 512 : i32
    %13 = arith.muli %arg0, %c512_i32 : i32
    %14 = arith.sitofp %13 : i32 to f32
    %cst_4 = arith.constant 5.120000e+02 : f32
    %15 = arith.addf %14, %cst_4 : f32
    %c0_5 = arith.constant 0 : index
    %c0_6 = arith.constant 0 : index
    %16 = vector.load %arg3[%c0_5, %c0_6] : memref<1x4xf32, #tpu.memory_space<vmem>>, vector<1x4xf32>
    %17 = arith.subf %4, %16 : vector<1x4xf32>
    %c0_7 = arith.constant 0 : index
    %c0_8 = arith.constant 0 : index
    %18 = vector.load %arg3[%c0_7, %c0_8] : memref<1x4xf32, #tpu.memory_space<vmem>>, vector<1x4xf32>
    %cst_9 = arith.constant 5.120000e+02 : f32
    %19 = arith.divf %cst_9, %15 : f32
    %20 = vector.broadcast %19 : f32 to vector<1x4xf32>
    %21 = arith.mulf %17, %20 : vector<1x4xf32>
    %22 = arith.addf %18, %21 : vector<1x4xf32>
    %c0_10 = arith.constant 0 : index
    %c0_11 = arith.constant 0 : index
    %23 = vector.load %arg3[%c0_10, %c0_11] : memref<1x4xf32, #tpu.memory_space<vmem>>, vector<1x4xf32>
    tpu.vector_store %arg3[%c0_10, %c0_11], %22 {strides = array<i32>} : memref<1x4xf32, #tpu.memory_space<vmem>>, vector<1x4xf32>,
    %c0_12 = arith.constant 0 : index
    %c0_13 = arith.constant 0 : index
    %24 = vector.load %arg4[%c0_12, %c0_13] : memref<1x4xf32, #tpu.memory_space<vmem>>, vector<1x4xf32>
    %25 = arith.addf %24, %9 : vector<1x4xf32>
    %26 = arith.mulf %17, %17 : vector<1x4xf32>
    %cst_14 = arith.constant 5.120000e+02 : f32
    %27 = arith.mulf %14, %cst_14 : f32
    %28 = arith.divf %27, %15 : f32
    %29 = vector.broadcast %28 : f32 to vector<1x4xf32>
    %30 = arith.mulf %26, %29 : vector<1x4xf32>
    %31 = arith.addf %25, %30 : vector<1x4xf32>
    %c0_15 = arith.constant 0 : index
    %c0_16 = arith.constant 0 : index
    %32 = vector.load %arg4[%c0_15, %c0_16] : memref<1x4xf32, #tpu.memory_space<vmem>>, vector<1x4xf32>
    tpu.vector_store %arg4[%c0_15, %c0_16], %31 {strides = array<i32>} : memref<1x4xf32, #tpu.memory_space<vmem>>, vector<1x4xf32>,
    %c0_i32_17 = arith.constant 0 : i32
    %33 = arith.cmpi eq, %arg0, %c0_i32_17 : i32
    %34 = arith.extui %33 : i1 to i32
    %c0_i32_18 = arith.constant 0 : i32
    %35 = arith.cmpi ne, %34, %c0_i32_18 : i32
    scf.if %35 {
      %c0_19 = arith.constant 0 : index
      %c0_20 = arith.constant 0 : index
      %36 = vector.load %arg3[%c0_19, %c0_20] : memref<1x4xf32, #tpu.memory_space<vmem>>, vector<1x4xf32>
      %c0_21 = arith.constant 0 : index
      %c0_22 = arith.constant 0 : index
      %37 = vector.load %arg2[%c0_21, %c0_22] : memref<2x4xf32, #tpu.memory_space<vmem>>, vector<1x4xf32>
      tpu.vector_store %arg2[%c0_21, %c0_22], %36 {strides = array<i32>} : memref<2x4xf32, #tpu.memory_space<vmem>>, vector<1x4xf32>,
      %c0_23 = arith.constant 0 : index
      %c0_24 = arith.constant 0 : index
      %38 = vector.load %arg4[%c0_23, %c0_24] : memref<1x4xf32, #tpu.memory_space<vmem>>, vector<1x4xf32>
      %39 = vector.broadcast %15 : f32 to vector<1x4xf32>
      %40 = arith.divf %38, %39 : vector<1x4xf32>
      %c1 = arith.constant 1 : index
      %c0_25 = arith.constant 0 : index
      %41 = vector.load %arg2[%c1, %c0_25] : memref<2x4xf32, #tpu.memory_space<vmem>>, vector<1x4xf32>
      tpu.vector_store %arg2[%c1, %c0_25], %40 {strides = array<i32>} : memref<2x4xf32, #tpu.memory_space<vmem>>, vector<1x4xf32>,
    } else {
    }
    return
  }
  func.func @transform_0(%arg0: i32) -> (i32, i32) {
    %c0_i32 = arith.constant 0 : i32
    %c0_i32_0 = arith.constant 0 : i32
    return %arg0, %c0_i32 : i32, i32
  }
  func.func @transform_1(%arg0: i32) -> (i32, i32) {
    %c0_i32 = arith.constant 0 : i32
    %c0_i32_0 = arith.constant 0 : i32
    %c0_i32_1 = arith.constant 0 : i32
    return %c0_i32, %c0_i32_0 : i32, i32
  }
}

module attributes {stable_mosaic.version = 11 : i64} {
  func.func @cbn_apply_relu_kernel(%arg0: i32, %arg1: i32, %arg2: memref<1x256x4xf32, #tpu.memory_space<vmem>>, %arg3: memref<2x4xf32, #tpu.memory_space<vmem>>, %arg4: memref<1x1x4xf32, #tpu.memory_space<vmem>>, %arg5: memref<1x1x4xf32, #tpu.memory_space<vmem>>, %arg6: memref<1x256x4xbf16, #tpu.memory_space<vmem>>) attributes {dimension_semantics = [#tpu.dimension_semantics<parallel>, #tpu.dimension_semantics<parallel>], iteration_bounds = array<i64: 2, 1>, scalar_prefetch = 0 : i64, scratch_operands = 0 : i64, tpu.core_type = #tpu.core_type<tc>, window_params = [{transform_indices = @transform_0, window_bounds = array<i64: 1, 256, 4>}, {pipeline_mode = #tpu.pipeline_mode<synchronous>, transform_indices = @transform_1, window_bounds = array<i64: 2, 4>}, {transform_indices = @transform_2, window_bounds = array<i64: 1, 1, 4>}, {transform_indices = @transform_3, window_bounds = array<i64: 1, 1, 4>}, {transform_indices = @transform_4, window_bounds = array<i64: 1, 256, 4>}]} {
    %c0 = arith.constant 0 : index
    %c0_0 = arith.constant 0 : index
    %0 = vector.load %arg3[%c0, %c0_0] : memref<2x4xf32, #tpu.memory_space<vmem>>, vector<1x4xf32>
    %c1 = arith.constant 1 : index
    %c0_1 = arith.constant 0 : index
    %1 = vector.load %arg3[%c1, %c0_1] : memref<2x4xf32, #tpu.memory_space<vmem>>, vector<1x4xf32>
    %cst = arith.constant 9.99999974E-6 : f32
    %2 = vector.broadcast %cst : f32 to vector<1x4xf32>
    %3 = arith.addf %1, %2 : vector<1x4xf32>
    %4 = math.rsqrt %3 : vector<1x4xf32>
    %c0_2 = arith.constant 0 : index
    %c0_3 = arith.constant 0 : index
    %c0_4 = arith.constant 0 : index
    %5 = vector.load %arg4[%c0_2, %c0_3, %c0_4] : memref<1x1x4xf32, #tpu.memory_space<vmem>>, vector<1x1x4xf32>
    %6 = vector.shape_cast %5 : vector<1x1x4xf32> to vector<1x4xf32>
    %7 = arith.mulf %6, %4 : vector<1x4xf32>
    %c0_5 = arith.constant 0 : index
    %c0_6 = arith.constant 0 : index
    %c0_7 = arith.constant 0 : index
    %8 = vector.load %arg5[%c0_5, %c0_6, %c0_7] : memref<1x1x4xf32, #tpu.memory_space<vmem>>, vector<1x1x4xf32>
    %9 = vector.shape_cast %8 : vector<1x1x4xf32> to vector<1x4xf32>
    %10 = arith.mulf %0, %7 : vector<1x4xf32>
    %11 = arith.subf %9, %10 : vector<1x4xf32>
    %c0_8 = arith.constant 0 : index
    %c0_9 = arith.constant 0 : index
    %c0_10 = arith.constant 0 : index
    %12 = vector.load %arg2[%c0_8, %c0_9, %c0_10] : memref<1x256x4xf32, #tpu.memory_space<vmem>>, vector<1x256x4xf32>
    %13 = vector.shape_cast %7 : vector<1x4xf32> to vector<1x1x4xf32>
    %14 = vector.broadcast %13 : vector<1x1x4xf32> to vector<1x256x4xf32>
    %15 = arith.mulf %12, %14 : vector<1x256x4xf32>
    %16 = vector.shape_cast %11 : vector<1x4xf32> to vector<1x1x4xf32>
    %17 = vector.broadcast %16 : vector<1x1x4xf32> to vector<1x256x4xf32>
    %18 = arith.addf %15, %17 : vector<1x256x4xf32>
    %cst_11 = arith.constant 0.000000e+00 : f32
    %19 = vector.broadcast %cst_11 : f32 to vector<1x256x4xf32>
    %20 = arith.maximumf %18, %19 : vector<1x256x4xf32>
    %21 = arith.truncf %20 : vector<1x256x4xf32> to vector<1x256x4xbf16>
    %c0_12 = arith.constant 0 : index
    %c0_13 = arith.constant 0 : index
    %c0_14 = arith.constant 0 : index
    %22 = vector.load %arg6[%c0_12, %c0_13, %c0_14] : memref<1x256x4xbf16, #tpu.memory_space<vmem>>, vector<1x256x4xbf16>
    tpu.vector_store %arg6[%c0_12, %c0_13, %c0_14], %21 {strides = array<i32>} : memref<1x256x4xbf16, #tpu.memory_space<vmem>>, vector<1x256x4xbf16>,
    return
  }
  func.func @transform_0(%arg0: i32, %arg1: i32) -> (i32, i32, i32) {
    %c0_i32 = arith.constant 0 : i32
    %c0_i32_0 = arith.constant 0 : i32
    return %arg0, %arg1, %c0_i32 : i32, i32, i32
  }
  func.func @transform_1(%arg0: i32, %arg1: i32) -> (i32, i32) {
    %c0_i32 = arith.constant 0 : i32
    %c0_i32_0 = arith.constant 0 : i32
    %c0_i32_1 = arith.constant 0 : i32
    return %c0_i32, %c0_i32_0 : i32, i32
  }
  func.func @transform_2(%arg0: i32, %arg1: i32) -> (i32, i32, i32) {
    %c0_i32 = arith.constant 0 : i32
    %c0_i32_0 = arith.constant 0 : i32
    %c0_i32_1 = arith.constant 0 : i32
    return %arg0, %c0_i32, %c0_i32_0 : i32, i32, i32
  }
  func.func @transform_3(%arg0: i32, %arg1: i32) -> (i32, i32, i32) {
    %c0_i32 = arith.constant 0 : i32
    %c0_i32_0 = arith.constant 0 : i32
    %c0_i32_1 = arith.constant 0 : i32
    return %arg0, %c0_i32, %c0_i32_0 : i32, i32, i32
  }
  func.func @transform_4(%arg0: i32, %arg1: i32) -> (i32, i32, i32) {
    %c0_i32 = arith.constant 0 : i32
    %c0_i32_0 = arith.constant 0 : i32
    return %arg0, %arg1, %c0_i32 : i32, i32, i32
  }
}

module attributes {stable_mosaic.version = 11 : i64} {
  func.func @conv_matmul_kernel(%arg0: i32, %arg1: i32, %arg2: memref<512x36xbf16, #tpu.memory_space<vmem>>, %arg3: memref<36x8xbf16, #tpu.memory_space<vmem>>, %arg4: memref<1x8xf32, #tpu.memory_space<vmem>>, %arg5: memref<512x8xf32, #tpu.memory_space<vmem>>, %arg6: memref<512x8xf32, #tpu.memory_space<vmem>>) attributes {dimension_semantics = [#tpu.dimension_semantics<parallel>, #tpu.dimension_semantics<arbitrary>], iteration_bounds = array<i64: 4, 1>, scalar_prefetch = 0 : i64, scratch_operands = 1 : i64, tpu.core_type = #tpu.core_type<tc>, window_params = [{transform_indices = @transform_0, window_bounds = array<i64: 512, 36>}, {transform_indices = @transform_1, window_bounds = array<i64: 36, 8>}, {pipeline_mode = #tpu.pipeline_mode<synchronous>, transform_indices = @transform_2, window_bounds = array<i64: 1, 8>}, {transform_indices = @transform_3, window_bounds = array<i64: 512, 8>}]} {
    %c0_i32 = arith.constant 0 : i32
    %0 = arith.cmpi eq, %arg1, %c0_i32 : i32
    %1 = arith.extui %0 : i1 to i32
    %c0_i32_0 = arith.constant 0 : i32
    %2 = arith.cmpi ne, %1, %c0_i32_0 : i32
    scf.if %2 {
      %c0_10 = arith.constant 0 : index
      %c0_11 = arith.constant 0 : index
      %12 = vector.load %arg4[%c0_10, %c0_11] : memref<1x8xf32, #tpu.memory_space<vmem>>, vector<1x8xf32>
      %13 = vector.shape_cast %12 : vector<1x8xf32> to vector<1x8xf32>
      %14 = vector.broadcast %13 : vector<1x8xf32> to vector<512x8xf32>
      %c0_12 = arith.constant 0 : index
      %c0_13 = arith.constant 0 : index
      %15 = vector.load %arg6[%c0_12, %c0_13] : memref<512x8xf32, #tpu.memory_space<vmem>>, vector<512x8xf32>
      tpu.vector_store %arg6[%c0_12, %c0_13], %14 {strides = array<i32>} : memref<512x8xf32, #tpu.memory_space<vmem>>, vector<512x8xf32>,
    } else {
    }
    %c0 = arith.constant 0 : index
    %c0_1 = arith.constant 0 : index
    %3 = vector.load %arg6[%c0, %c0_1] : memref<512x8xf32, #tpu.memory_space<vmem>>, vector<512x8xf32>
    %c0_2 = arith.constant 0 : index
    %c0_3 = arith.constant 0 : index
    %4 = vector.load %arg2[%c0_2, %c0_3] : memref<512x36xbf16, #tpu.memory_space<vmem>>, vector<512x36xbf16>
    %c0_4 = arith.constant 0 : index
    %c0_5 = arith.constant 0 : index
    %5 = vector.load %arg3[%c0_4, %c0_5] : memref<36x8xbf16, #tpu.memory_space<vmem>>, vector<36x8xbf16>
    %cst = arith.constant dense<0.000000e+00> : vector<512x8xf32>
    %6 = tpu.matmul %4, %5, %cst {dimension_numbers = #tpu.dot_dimension_numbers<[1], [0], [0], [1], [0, 0, 1, 1], [], []>} : vector<512x36xbf16>, vector<36x8xbf16>, vector<512x8xf32> -> vector<512x8xf32>
    %7 = arith.addf %3, %6 : vector<512x8xf32>
    %c0_6 = arith.constant 0 : index
    %c0_7 = arith.constant 0 : index
    %8 = vector.load %arg6[%c0_6, %c0_7] : memref<512x8xf32, #tpu.memory_space<vmem>>, vector<512x8xf32>
    tpu.vector_store %arg6[%c0_6, %c0_7], %7 {strides = array<i32>} : memref<512x8xf32, #tpu.memory_space<vmem>>, vector<512x8xf32>,
    %c0_i32_8 = arith.constant 0 : i32
    %9 = arith.cmpi eq, %arg1, %c0_i32_8 : i32
    %10 = arith.extui %9 : i1 to i32
    %c0_i32_9 = arith.constant 0 : i32
    %11 = arith.cmpi ne, %10, %c0_i32_9 : i32
    scf.if %11 {
      %c0_10 = arith.constant 0 : index
      %c0_11 = arith.constant 0 : index
      %12 = vector.load %arg6[%c0_10, %c0_11] : memref<512x8xf32, #tpu.memory_space<vmem>>, vector<512x8xf32>
      %c0_12 = arith.constant 0 : index
      %c0_13 = arith.constant 0 : index
      %13 = vector.load %arg5[%c0_12, %c0_13] : memref<512x8xf32, #tpu.memory_space<vmem>>, vector<512x8xf32>
      tpu.vector_store %arg5[%c0_12, %c0_13], %12 {strides = array<i32>} : memref<512x8xf32, #tpu.memory_space<vmem>>, vector<512x8xf32>,
    } else {
    }
    return
  }
  func.func @transform_0(%arg0: i32, %arg1: i32) -> (i32, i32) {
    %c0_i32 = arith.constant 0 : i32
    return %arg0, %arg1 : i32, i32
  }
  func.func @transform_1(%arg0: i32, %arg1: i32) -> (i32, i32) {
    %c0_i32 = arith.constant 0 : i32
    %c0_i32_0 = arith.constant 0 : i32
    return %arg1, %c0_i32 : i32, i32
  }
  func.func @transform_2(%arg0: i32, %arg1: i32) -> (i32, i32) {
    %c0_i32 = arith.constant 0 : i32
    %c0_i32_0 = arith.constant 0 : i32
    %c0_i32_1 = arith.constant 0 : i32
    return %c0_i32, %c0_i32_0 : i32, i32
  }
  func.func @transform_3(%arg0: i32, %arg1: i32) -> (i32, i32) {
    %c0_i32 = arith.constant 0 : i32
    %c0_i32_0 = arith.constant 0 : i32
    return %arg0, %c0_i32 : i32, i32
  }
}

module attributes {stable_mosaic.version = 11 : i64} {
  func.func @cbn_stats_kernel(%arg0: i32, %arg1: memref<512x8xf32, #tpu.memory_space<vmem>>, %arg2: memref<2x8xf32, #tpu.memory_space<vmem>>, %arg3: memref<1x8xf32, #tpu.memory_space<vmem>>, %arg4: memref<1x8xf32, #tpu.memory_space<vmem>>) attributes {dimension_semantics = [#tpu.dimension_semantics<arbitrary>], iteration_bounds = array<i64: 4>, scalar_prefetch = 0 : i64, scratch_operands = 2 : i64, tpu.core_type = #tpu.core_type<tc>, window_params = [{transform_indices = @transform_0, window_bounds = array<i64: 512, 8>}, {pipeline_mode = #tpu.pipeline_mode<synchronous>, transform_indices = @transform_1, window_bounds = array<i64: 2, 8>}]} {
    %c0 = arith.constant 0 : index
    %c0_0 = arith.constant 0 : index
    %0 = vector.load %arg1[%c0, %c0_0] : memref<512x8xf32, #tpu.memory_space<vmem>>, vector<512x8xf32>
    %cst = arith.constant dense<0.000000e+00> : vector<8xf32>
    %1 = vector.multi_reduction <add>, %0, %cst [0] : vector<512x8xf32> to vector<8xf32>
    %2 = vector.shape_cast %1 : vector<8xf32> to vector<1x8xf32>
    %cst_1 = arith.constant 5.120000e+02 : f32
    %3 = vector.broadcast %cst_1 : f32 to vector<1x8xf32>
    %4 = arith.divf %2, %3 : vector<1x8xf32>
    %5 = vector.broadcast %4 : vector<1x8xf32> to vector<512x8xf32>
    %6 = arith.subf %0, %5 : vector<512x8xf32>
    %7 = arith.mulf %6, %6 : vector<512x8xf32>
    %cst_2 = arith.constant dense<0.000000e+00> : vector<8xf32>
    %8 = vector.multi_reduction <add>, %7, %cst_2 [0] : vector<512x8xf32> to vector<8xf32>
    %9 = vector.shape_cast %8 : vector<8xf32> to vector<1x8xf32>
    %c0_i32 = arith.constant 0 : i32
    %10 = arith.cmpi eq, %arg0, %c0_i32 : i32
    %11 = arith.extui %10 : i1 to i32
    %c0_i32_3 = arith.constant 0 : i32
    %12 = arith.cmpi ne, %11, %c0_i32_3 : i32
    scf.if %12 {
      %cst_18 = arith.constant 0.000000e+00 : f32
      %36 = vector.broadcast %cst_18 : f32 to vector<1x8xf32>
      %c0_19 = arith.constant 0 : index
      %c0_20 = arith.constant 0 : index
      %37 = vector.load %arg3[%c0_19, %c0_20] : memref<1x8xf32, #tpu.memory_space<vmem>>, vector<1x8xf32>
      tpu.vector_store %arg3[%c0_19, %c0_20], %36 {strides = array<i32>} : memref<1x8xf32, #tpu.memory_space<vmem>>, vector<1x8xf32>,
      %cst_21 = arith.constant 0.000000e+00 : f32
      %38 = vector.broadcast %cst_21 : f32 to vector<1x8xf32>
      %c0_22 = arith.constant 0 : index
      %c0_23 = arith.constant 0 : index
      %39 = vector.load %arg4[%c0_22, %c0_23] : memref<1x8xf32, #tpu.memory_space<vmem>>, vector<1x8xf32>
      tpu.vector_store %arg4[%c0_22, %c0_23], %38 {strides = array<i32>} : memref<1x8xf32, #tpu.memory_space<vmem>>, vector<1x8xf32>,
    } else {
    }
    %c512_i32 = arith.constant 512 : i32
    %13 = arith.muli %arg0, %c512_i32 : i32
    %14 = arith.sitofp %13 : i32 to f32
    %cst_4 = arith.constant 5.120000e+02 : f32
    %15 = arith.addf %14, %cst_4 : f32
    %c0_5 = arith.constant 0 : index
    %c0_6 = arith.constant 0 : index
    %16 = vector.load %arg3[%c0_5, %c0_6] : memref<1x8xf32, #tpu.memory_space<vmem>>, vector<1x8xf32>
    %17 = arith.subf %4, %16 : vector<1x8xf32>
    %c0_7 = arith.constant 0 : index
    %c0_8 = arith.constant 0 : index
    %18 = vector.load %arg3[%c0_7, %c0_8] : memref<1x8xf32, #tpu.memory_space<vmem>>, vector<1x8xf32>
    %cst_9 = arith.constant 5.120000e+02 : f32
    %19 = arith.divf %cst_9, %15 : f32
    %20 = vector.broadcast %19 : f32 to vector<1x8xf32>
    %21 = arith.mulf %17, %20 : vector<1x8xf32>
    %22 = arith.addf %18, %21 : vector<1x8xf32>
    %c0_10 = arith.constant 0 : index
    %c0_11 = arith.constant 0 : index
    %23 = vector.load %arg3[%c0_10, %c0_11] : memref<1x8xf32, #tpu.memory_space<vmem>>, vector<1x8xf32>
    tpu.vector_store %arg3[%c0_10, %c0_11], %22 {strides = array<i32>} : memref<1x8xf32, #tpu.memory_space<vmem>>, vector<1x8xf32>,
    %c0_12 = arith.constant 0 : index
    %c0_13 = arith.constant 0 : index
    %24 = vector.load %arg4[%c0_12, %c0_13] : memref<1x8xf32, #tpu.memory_space<vmem>>, vector<1x8xf32>
    %25 = arith.addf %24, %9 : vector<1x8xf32>
    %26 = arith.mulf %17, %17 : vector<1x8xf32>
    %cst_14 = arith.constant 5.120000e+02 : f32
    %27 = arith.mulf %14, %cst_14 : f32
    %28 = arith.divf %27, %15 : f32
    %29 = vector.broadcast %28 : f32 to vector<1x8xf32>
    %30 = arith.mulf %26, %29 : vector<1x8xf32>
    %31 = arith.addf %25, %30 : vector<1x8xf32>
    %c0_15 = arith.constant 0 : index
    %c0_16 = arith.constant 0 : index
    %32 = vector.load %arg4[%c0_15, %c0_16] : memref<1x8xf32, #tpu.memory_space<vmem>>, vector<1x8xf32>
    tpu.vector_store %arg4[%c0_15, %c0_16], %31 {strides = array<i32>} : memref<1x8xf32, #tpu.memory_space<vmem>>, vector<1x8xf32>,
    %c3_i32 = arith.constant 3 : i32
    %33 = arith.cmpi eq, %arg0, %c3_i32 : i32
    %34 = arith.extui %33 : i1 to i32
    %c0_i32_17 = arith.constant 0 : i32
    %35 = arith.cmpi ne, %34, %c0_i32_17 : i32
    scf.if %35 {
      %c0_18 = arith.constant 0 : index
      %c0_19 = arith.constant 0 : index
      %36 = vector.load %arg3[%c0_18, %c0_19] : memref<1x8xf32, #tpu.memory_space<vmem>>, vector<1x8xf32>
      %c0_20 = arith.constant 0 : index
      %c0_21 = arith.constant 0 : index
      %37 = vector.load %arg2[%c0_20, %c0_21] : memref<2x8xf32, #tpu.memory_space<vmem>>, vector<1x8xf32>
      tpu.vector_store %arg2[%c0_20, %c0_21], %36 {strides = array<i32>} : memref<2x8xf32, #tpu.memory_space<vmem>>, vector<1x8xf32>,
      %c0_22 = arith.constant 0 : index
      %c0_23 = arith.constant 0 : index
      %38 = vector.load %arg4[%c0_22, %c0_23] : memref<1x8xf32, #tpu.memory_space<vmem>>, vector<1x8xf32>
      %39 = vector.broadcast %15 : f32 to vector<1x8xf32>
      %40 = arith.divf %38, %39 : vector<1x8xf32>
      %c1 = arith.constant 1 : index
      %c0_24 = arith.constant 0 : index
      %41 = vector.load %arg2[%c1, %c0_24] : memref<2x8xf32, #tpu.memory_space<vmem>>, vector<1x8xf32>
      tpu.vector_store %arg2[%c1, %c0_24], %40 {strides = array<i32>} : memref<2x8xf32, #tpu.memory_space<vmem>>, vector<1x8xf32>,
    } else {
    }
    return
  }
  func.func @transform_0(%arg0: i32) -> (i32, i32) {
    %c0_i32 = arith.constant 0 : i32
    %c0_i32_0 = arith.constant 0 : i32
    return %arg0, %c0_i32 : i32, i32
  }
  func.func @transform_1(%arg0: i32) -> (i32, i32) {
    %c0_i32 = arith.constant 0 : i32
    %c0_i32_0 = arith.constant 0 : i32
    %c0_i32_1 = arith.constant 0 : i32
    return %c0_i32, %c0_i32_0 : i32, i32
  }
}

module attributes {stable_mosaic.version = 11 : i64} {
  func.func @cbn_apply_relu_kernel(%arg0: i32, %arg1: i32, %arg2: memref<1x512x8xf32, #tpu.memory_space<vmem>>, %arg3: memref<2x8xf32, #tpu.memory_space<vmem>>, %arg4: memref<1x1x8xf32, #tpu.memory_space<vmem>>, %arg5: memref<1x1x8xf32, #tpu.memory_space<vmem>>, %arg6: memref<1x512x8xbf16, #tpu.memory_space<vmem>>) attributes {dimension_semantics = [#tpu.dimension_semantics<parallel>, #tpu.dimension_semantics<parallel>], iteration_bounds = array<i64: 2, 2>, scalar_prefetch = 0 : i64, scratch_operands = 0 : i64, tpu.core_type = #tpu.core_type<tc>, window_params = [{transform_indices = @transform_0, window_bounds = array<i64: 1, 512, 8>}, {pipeline_mode = #tpu.pipeline_mode<synchronous>, transform_indices = @transform_1, window_bounds = array<i64: 2, 8>}, {transform_indices = @transform_2, window_bounds = array<i64: 1, 1, 8>}, {transform_indices = @transform_3, window_bounds = array<i64: 1, 1, 8>}, {transform_indices = @transform_4, window_bounds = array<i64: 1, 512, 8>}]} {
    %c0 = arith.constant 0 : index
    %c0_0 = arith.constant 0 : index
    %0 = vector.load %arg3[%c0, %c0_0] : memref<2x8xf32, #tpu.memory_space<vmem>>, vector<1x8xf32>
    %c1 = arith.constant 1 : index
    %c0_1 = arith.constant 0 : index
    %1 = vector.load %arg3[%c1, %c0_1] : memref<2x8xf32, #tpu.memory_space<vmem>>, vector<1x8xf32>
    %cst = arith.constant 9.99999974E-6 : f32
    %2 = vector.broadcast %cst : f32 to vector<1x8xf32>
    %3 = arith.addf %1, %2 : vector<1x8xf32>
    %4 = math.rsqrt %3 : vector<1x8xf32>
    %c0_2 = arith.constant 0 : index
    %c0_3 = arith.constant 0 : index
    %c0_4 = arith.constant 0 : index
    %5 = vector.load %arg4[%c0_2, %c0_3, %c0_4] : memref<1x1x8xf32, #tpu.memory_space<vmem>>, vector<1x1x8xf32>
    %6 = vector.shape_cast %5 : vector<1x1x8xf32> to vector<1x8xf32>
    %7 = arith.mulf %6, %4 : vector<1x8xf32>
    %c0_5 = arith.constant 0 : index
    %c0_6 = arith.constant 0 : index
    %c0_7 = arith.constant 0 : index
    %8 = vector.load %arg5[%c0_5, %c0_6, %c0_7] : memref<1x1x8xf32, #tpu.memory_space<vmem>>, vector<1x1x8xf32>
    %9 = vector.shape_cast %8 : vector<1x1x8xf32> to vector<1x8xf32>
    %10 = arith.mulf %0, %7 : vector<1x8xf32>
    %11 = arith.subf %9, %10 : vector<1x8xf32>
    %c0_8 = arith.constant 0 : index
    %c0_9 = arith.constant 0 : index
    %c0_10 = arith.constant 0 : index
    %12 = vector.load %arg2[%c0_8, %c0_9, %c0_10] : memref<1x512x8xf32, #tpu.memory_space<vmem>>, vector<1x512x8xf32>
    %13 = vector.shape_cast %7 : vector<1x8xf32> to vector<1x1x8xf32>
    %14 = vector.broadcast %13 : vector<1x1x8xf32> to vector<1x512x8xf32>
    %15 = arith.mulf %12, %14 : vector<1x512x8xf32>
    %16 = vector.shape_cast %11 : vector<1x8xf32> to vector<1x1x8xf32>
    %17 = vector.broadcast %16 : vector<1x1x8xf32> to vector<1x512x8xf32>
    %18 = arith.addf %15, %17 : vector<1x512x8xf32>
    %cst_11 = arith.constant 0.000000e+00 : f32
    %19 = vector.broadcast %cst_11 : f32 to vector<1x512x8xf32>
    %20 = arith.maximumf %18, %19 : vector<1x512x8xf32>
    %21 = arith.truncf %20 : vector<1x512x8xf32> to vector<1x512x8xbf16>
    %c0_12 = arith.constant 0 : index
    %c0_13 = arith.constant 0 : index
    %c0_14 = arith.constant 0 : index
    %22 = vector.load %arg6[%c0_12, %c0_13, %c0_14] : memref<1x512x8xbf16, #tpu.memory_space<vmem>>, vector<1x512x8xbf16>
    tpu.vector_store %arg6[%c0_12, %c0_13, %c0_14], %21 {strides = array<i32>} : memref<1x512x8xbf16, #tpu.memory_space<vmem>>, vector<1x512x8xbf16>,
    return
  }
  func.func @transform_0(%arg0: i32, %arg1: i32) -> (i32, i32, i32) {
    %c0_i32 = arith.constant 0 : i32
    %c0_i32_0 = arith.constant 0 : i32
    return %arg0, %arg1, %c0_i32 : i32, i32, i32
  }
  func.func @transform_1(%arg0: i32, %arg1: i32) -> (i32, i32) {
    %c0_i32 = arith.constant 0 : i32
    %c0_i32_0 = arith.constant 0 : i32
    %c0_i32_1 = arith.constant 0 : i32
    return %c0_i32, %c0_i32_0 : i32, i32
  }
  func.func @transform_2(%arg0: i32, %arg1: i32) -> (i32, i32, i32) {
    %c0_i32 = arith.constant 0 : i32
    %c0_i32_0 = arith.constant 0 : i32
    %c0_i32_1 = arith.constant 0 : i32
    return %arg0, %c0_i32, %c0_i32_0 : i32, i32, i32
  }
  func.func @transform_3(%arg0: i32, %arg1: i32) -> (i32, i32, i32) {
    %c0_i32 = arith.constant 0 : i32
    %c0_i32_0 = arith.constant 0 : i32
    %c0_i32_1 = arith.constant 0 : i32
    return %arg0, %c0_i32, %c0_i32_0 : i32, i32, i32
  }
  func.func @transform_4(%arg0: i32, %arg1: i32) -> (i32, i32, i32) {
    %c0_i32 = arith.constant 0 : i32
    %c0_i32_0 = arith.constant 0 : i32
    return %arg0, %arg1, %c0_i32 : i32, i32, i32
  }
}

module attributes {stable_mosaic.version = 11 : i64} {
  func.func @conv_skip_add_kernel(%arg0: i32, %arg1: i32, %arg2: memref<512x72xbf16, #tpu.memory_space<vmem>>, %arg3: memref<72x8xbf16, #tpu.memory_space<vmem>>, %arg4: memref<1x8xf32, #tpu.memory_space<vmem>>, %arg5: memref<512x4xbf16, #tpu.memory_space<vmem>>, %arg6: memref<4x8xbf16, #tpu.memory_space<vmem>>, %arg7: memref<1x8xf32, #tpu.memory_space<vmem>>, %arg8: memref<512x8xf32, #tpu.memory_space<vmem>>, %arg9: memref<512x8xf32, #tpu.memory_space<vmem>>) attributes {dimension_semantics = [#tpu.dimension_semantics<parallel>, #tpu.dimension_semantics<arbitrary>], iteration_bounds = array<i64: 4, 1>, scalar_prefetch = 0 : i64, scratch_operands = 1 : i64, tpu.core_type = #tpu.core_type<tc>, window_params = [{transform_indices = @transform_0, window_bounds = array<i64: 512, 72>}, {transform_indices = @transform_1, window_bounds = array<i64: 72, 8>}, {pipeline_mode = #tpu.pipeline_mode<synchronous>, transform_indices = @transform_2, window_bounds = array<i64: 1, 8>}, {transform_indices = @transform_3, window_bounds = array<i64: 512, 4>}, {pipeline_mode = #tpu.pipeline_mode<synchronous>, transform_indices = @transform_4, window_bounds = array<i64: 4, 8>}, {pipeline_mode = #tpu.pipeline_mode<synchronous>, transform_indices = @transform_5, window_bounds = array<i64: 1, 8>}, {transform_indices = @transform_6, window_bounds = array<i64: 512, 8>}]} {
    %c0_i32 = arith.constant 0 : i32
    %0 = arith.cmpi eq, %arg1, %c0_i32 : i32
    %1 = arith.extui %0 : i1 to i32
    %c0_i32_0 = arith.constant 0 : i32
    %2 = arith.cmpi ne, %1, %c0_i32_0 : i32
    scf.if %2 {
      %c0_10 = arith.constant 0 : index
      %c0_11 = arith.constant 0 : index
      %12 = vector.load %arg5[%c0_10, %c0_11] : memref<512x4xbf16, #tpu.memory_space<vmem>>, vector<512x4xbf16>
      %c0_12 = arith.constant 0 : index
      %c0_13 = arith.constant 0 : index
      %13 = vector.load %arg6[%c0_12, %c0_13] : memref<4x8xbf16, #tpu.memory_space<vmem>>, vector<4x8xbf16>
      %cst_14 = arith.constant dense<0.000000e+00> : vector<512x8xf32>
      %14 = tpu.matmul %12, %13, %cst_14 {dimension_numbers = #tpu.dot_dimension_numbers<[1], [0], [0], [1], [0, 0, 1, 1], [], []>} : vector<512x4xbf16>, vector<4x8xbf16>, vector<512x8xf32> -> vector<512x8xf32>
      %c0_15 = arith.constant 0 : index
      %c0_16 = arith.constant 0 : index
      %15 = vector.load %arg7[%c0_15, %c0_16] : memref<1x8xf32, #tpu.memory_space<vmem>>, vector<1x8xf32>
      %16 = vector.broadcast %15 : vector<1x8xf32> to vector<512x8xf32>
      %17 = arith.addf %14, %16 : vector<512x8xf32>
      %c0_17 = arith.constant 0 : index
      %c0_18 = arith.constant 0 : index
      %18 = vector.load %arg4[%c0_17, %c0_18] : memref<1x8xf32, #tpu.memory_space<vmem>>, vector<1x8xf32>
      %19 = vector.broadcast %18 : vector<1x8xf32> to vector<512x8xf32>
      %20 = arith.addf %17, %19 : vector<512x8xf32>
      %c0_19 = arith.constant 0 : index
      %c0_20 = arith.constant 0 : index
      %21 = vector.load %arg9[%c0_19, %c0_20] : memref<512x8xf32, #tpu.memory_space<vmem>>, vector<512x8xf32>
      tpu.vector_store %arg9[%c0_19, %c0_20], %20 {strides = array<i32>} : memref<512x8xf32, #tpu.memory_space<vmem>>, vector<512x8xf32>,
    } else {
    }
    %c0 = arith.constant 0 : index
    %c0_1 = arith.constant 0 : index
    %3 = vector.load %arg9[%c0, %c0_1] : memref<512x8xf32, #tpu.memory_space<vmem>>, vector<512x8xf32>
    %c0_2 = arith.constant 0 : index
    %c0_3 = arith.constant 0 : index
    %4 = vector.load %arg2[%c0_2, %c0_3] : memref<512x72xbf16, #tpu.memory_space<vmem>>, vector<512x72xbf16>
    %c0_4 = arith.constant 0 : index
    %c0_5 = arith.constant 0 : index
    %5 = vector.load %arg3[%c0_4, %c0_5] : memref<72x8xbf16, #tpu.memory_space<vmem>>, vector<72x8xbf16>
    %cst = arith.constant dense<0.000000e+00> : vector<512x8xf32>
    %6 = tpu.matmul %4, %5, %cst {dimension_numbers = #tpu.dot_dimension_numbers<[1], [0], [0], [1], [0, 0, 1, 1], [], []>} : vector<512x72xbf16>, vector<72x8xbf16>, vector<512x8xf32> -> vector<512x8xf32>
    %7 = arith.addf %3, %6 : vector<512x8xf32>
    %c0_6 = arith.constant 0 : index
    %c0_7 = arith.constant 0 : index
    %8 = vector.load %arg9[%c0_6, %c0_7] : memref<512x8xf32, #tpu.memory_space<vmem>>, vector<512x8xf32>
    tpu.vector_store %arg9[%c0_6, %c0_7], %7 {strides = array<i32>} : memref<512x8xf32, #tpu.memory_space<vmem>>, vector<512x8xf32>,
    %c0_i32_8 = arith.constant 0 : i32
    %9 = arith.cmpi eq, %arg1, %c0_i32_8 : i32
    %10 = arith.extui %9 : i1 to i32
    %c0_i32_9 = arith.constant 0 : i32
    %11 = arith.cmpi ne, %10, %c0_i32_9 : i32
    scf.if %11 {
      %c0_10 = arith.constant 0 : index
      %c0_11 = arith.constant 0 : index
      %12 = vector.load %arg9[%c0_10, %c0_11] : memref<512x8xf32, #tpu.memory_space<vmem>>, vector<512x8xf32>
      %c0_12 = arith.constant 0 : index
      %c0_13 = arith.constant 0 : index
      %13 = vector.load %arg8[%c0_12, %c0_13] : memref<512x8xf32, #tpu.memory_space<vmem>>, vector<512x8xf32>
      tpu.vector_store %arg8[%c0_12, %c0_13], %12 {strides = array<i32>} : memref<512x8xf32, #tpu.memory_space<vmem>>, vector<512x8xf32>,
    } else {
    }
    return
  }
  func.func @transform_0(%arg0: i32, %arg1: i32) -> (i32, i32) {
    %c0_i32 = arith.constant 0 : i32
    return %arg0, %arg1 : i32, i32
  }
  func.func @transform_1(%arg0: i32, %arg1: i32) -> (i32, i32) {
    %c0_i32 = arith.constant 0 : i32
    %c0_i32_0 = arith.constant 0 : i32
    return %arg1, %c0_i32 : i32, i32
  }
  func.func @transform_2(%arg0: i32, %arg1: i32) -> (i32, i32) {
    %c0_i32 = arith.constant 0 : i32
    %c0_i32_0 = arith.constant 0 : i32
    %c0_i32_1 = arith.constant 0 : i32
    return %c0_i32, %c0_i32_0 : i32, i32
  }
  func.func @transform_3(%arg0: i32, %arg1: i32) -> (i32, i32) {
    %c0_i32 = arith.constant 0 : i32
    %c0_i32_0 = arith.constant 0 : i32
    return %arg0, %c0_i32 : i32, i32
  }
  func.func @transform_4(%arg0: i32, %arg1: i32) -> (i32, i32) {
    %c0_i32 = arith.constant 0 : i32
    %c0_i32_0 = arith.constant 0 : i32
    %c0_i32_1 = arith.constant 0 : i32
    return %c0_i32, %c0_i32_0 : i32, i32
  }
  func.func @transform_5(%arg0: i32, %arg1: i32) -> (i32, i32) {
    %c0_i32 = arith.constant 0 : i32
    %c0_i32_0 = arith.constant 0 : i32
    %c0_i32_1 = arith.constant 0 : i32
    return %c0_i32, %c0_i32_0 : i32, i32
  }
  func.func @transform_6(%arg0: i32, %arg1: i32) -> (i32, i32) {
    %c0_i32 = arith.constant 0 : i32
    %c0_i32_0 = arith.constant 0 : i32
    return %arg0, %c0_i32 : i32, i32
  }
}

</mosaic_0001>

<llo_original>
// kernel: gen_block_forward.7
$region0: #{gen_block_forward.7}
  #allocation0 [shape = 'u32[]', space=smem, size = 0x4, offset = 0x4, fixed_abs, tag = 'smem constant byte address 0x4 - core index']
  #allocation1 [shape = 'u32[72,128]{1,0:T(1,128)}', space=vmem, size = 0x9000, scoped, tag = 'internal scratch']
  %s0 = inlined_call_operand.vmem [shape: f32[2,256,4], index: 0, kind: input, shape index: {}]
  %s1 = inlined_call_operand.vmem [shape: f32[2,4], index: 1, kind: input, shape index: {}]
  %s2 = inlined_call_operand.vmem [shape: f32[2,1,4], index: 2, kind: input, shape index: {}]
  %s3 = inlined_call_operand.vmem [shape: f32[2,1,4], index: 3, kind: input, shape index: {}]
  %s4 = inlined_call_operand.vmem [shape: bf16[2,256,4], index: 4, kind: output, shape index: {}]
  %s5 = sld [smem:[#allocation0]]
  $region49: #{gen_block_forward.7} parent=0
    _
  %s7 = ssub.s32 1, %s5
  %s8 = scalar_select 0, %s7, %s5
  loop: start=0, step=1, limit=4
  $region2: #{gen_block_forward.7} parent=0 // loop_pre_header
    _
  $region3: #{gen_block_forward.7} parent=0 // loop_header
    %s10 = sphi 0, %s14
    %p11 = scmp.ge.s32.totalorder %s10, 4
    %s17 = sphi 0, %s29
    %s18 = sphi 0, %s25
    %s19 = sphi 0, %s17
    %s20 = sphi 0, %s18
    %s21 = sphi 0, %s19
    %s22 = sphi 0, %s20
    %s34 = sphi 0, %s36
    %s37 = sphi 0, %s34
    %s38 = sphi 0, %s37
    %s54 = sphi 0, %s38
    %s58 = sphi 0, %s58
    %s60 = sphi 0, %s58
    %s61 = sphi 0, %s60
    %s75 = sphi 0, %s61
    %s81 = sphi 0, %s83
    %s84 = sphi 0, %s81
    %s85 = sphi 0, %s84
    %s101 = sphi 0, %s85
    %s107 = sphi 0, %s109
    %s110 = sphi 0, %s107
    %s111 = sphi 0, %s110
    %s127 = sphi 0, %s111
    %s135 = sphi 0, %s137
    %s138 = sphi 0, %s135
    %s139 = sphi 0, %s138
    %s155 = sphi 0, %s139
  $region4: #{gen_block_forward.7} parent=0 // loop_header_branch
    %13 = sbr.rel (%p11) target = $region8
  $region5: #{gen_block_forward.7} parent=0 // loop_body
    %s15 = ssub.s32 %s10, 1
    %s16 = ssub.s32 %s10, 2
    %s23 = sadd.s32 1, %s18
    %p24 = scmp.ge.s32.totalorder %s23, 1
    %s25 = scalar_select %p24, 0, %s23
    %s26 = sadd.s32 1, %s17
    %s27 = scalar_select %p24, %s26, %s17
    %p28 = scmp.ge.s32.totalorder %s27, 2
    %s29 = scalar_select %p28, 0, %s27
    %s30 = ssub.s32 %s17, %s29
    %s31 = ssub.s32 %s18, %s25
    %s32 = sor.u32 %s30, %s31
    %p33 = scmp.eq.s32.totalorder %s32, 0
    %s35 = sadd.s32 %s34, 1
    %s36 = scalar_select %p33, %s34, %s35
    %p39 = pneg %p33
    %p40 = scmp.eq.s32.totalorder %s10, 1
    %p41 = por %p39, %p40
    %p42 = scmp.ne.s32.totalorder %s34, %s37
    %p43 = scmp.eq.s32.totalorder %s10, 0
    %p44 = por %p42, %p43
    %p45 = scmp.ne.s32.totalorder %s34, %s37
    %p46 = scmp.eq.s32.totalorder %s15, 1
    %p47 = por %p45, %p46
    %p48 = scmp.ne.s32.totalorder %s37, %s38
    %p49 = scmp.eq.s32.totalorder %s15, 0
    %p50 = por %p48, %p49
    %p51 = scmp.ne.s32.totalorder %s37, %s38
    %p52 = scmp.eq.s32.totalorder %s16, 1
    %p53 = por %p51, %p52
    %p55 = scmp.ne.s32.totalorder %s38, %s54
    %p56 = scmp.eq.s32.totalorder %s16, 0
    %p57 = por %p55, %p56
    %s59 = sadd.s32 %s58, 1
    %p62 = scmp.eq.s32.totalorder %s10, 1
    %p63 = scmp.ne.s32.totalorder %s58, %s60
    %p64 = scmp.eq.s32.totalorder %s10, 0
    %p65 = por %p63, %p64
    %p66 = scmp.ne.s32.totalorder %s58, %s60
    %p67 = scmp.eq.s32.totalorder %s15, 1
    %p68 = por %p66, %p67
    %p69 = scmp.ne.s32.totalorder %s60, %s61
    %p70 = scmp.eq.s32.totalorder %s15, 0
    %p71 = por %p69, %p70
    %p72 = scmp.ne.s32.totalorder %s60, %s61
    %p73 = scmp.eq.s32.totalorder %s16, 1
    %p74 = por %p72, %p73
    %p76 = scmp.ne.s32.totalorder %s61, %s75
    %p77 = scmp.eq.s32.totalorder %s16, 0
    %p78 = por %p76, %p77
    %s79 = ssub.s32 %s17, %s29
    %p80 = scmp.eq.s32.totalorder %s79, 0
    %s82 = sadd.s32 %s81, 1
    %s83 = scalar_select %p80, %s81, %s82
    %p86 = pneg %p80
    %p87 = scmp.eq.s32.totalorder %s10, 1
    %p88 = por %p86, %p87
    %p89 = scmp.ne.s32.totalorder %s81, %s84
    %p90 = scmp.eq.s32.totalorder %s10, 0
    %p91 = por %p89, %p90
    %p92 = scmp.ne.s32.totalorder %s81, %s84
    %p93 = scmp.eq.s32.totalorder %s15, 1
    %p94 = por %p92, %p93
    %p95 = scmp.ne.s32.totalorder %s84, %s85
    %p96 = scmp.eq.s32.totalorder %s15, 0
    %p97 = por %p95, %p96
    %p98 = scmp.ne.s32.totalorder %s84, %s85
    %p99 = scmp.eq.s32.totalorder %s16, 1
    %p100 = por %p98, %p99
    %p102 = scmp.ne.s32.totalorder %s85, %s101
    %p103 = scmp.eq.s32.totalorder %s16, 0
    %p104 = por %p102, %p103
    %s105 = ssub.s32 %s17, %s29
    %p106 = scmp.eq.s32.totalorder %s105, 0
    %s108 = sadd.s32 %s107, 1
    %s109 = scalar_select %p106, %s107, %s108
    %p112 = pneg %p106
    %p113 = scmp.eq.s32.totalorder %s10, 1
    %p114 = por %p112, %p113
    %p115 = scmp.ne.s32.totalorder %s107, %s110
    %p116 = scmp.eq.s32.totalorder %s10, 0
    %p117 = por %p115, %p116
    %p118 = scmp.ne.s32.totalorder %s107, %s110
    %p119 = scmp.eq.s32.totalorder %s15, 1
    %p120 = por %p118, %p119
    %p121 = scmp.ne.s32.totalorder %s110, %s111
    %p122 = scmp.eq.s32.totalorder %s15, 0
    %p123 = por %p121, %p122
    %p124 = scmp.ne.s32.totalorder %s110, %s111
    %p125 = scmp.eq.s32.totalorder %s16, 1
    %p126 = por %p124, %p125
    %p128 = scmp.ne.s32.totalorder %s111, %s127
    %p129 = scmp.eq.s32.totalorder %s16, 0
    %p130 = por %p128, %p129
    %s131 = ssub.s32 %s17, %s29
    %s132 = ssub.s32 %s18, %s25
    %s133 = sor.u32 %s131, %s132
    %p134 = scmp.eq.s32.totalorder %s133, 0
    %s136 = sadd.s32 %s135, 1
    %s137 = scalar_select %p134, %s135, %s136
    %p140 = pneg %p134
    %p141 = scmp.eq.s32.totalorder %s10, 1
    %p142 = por %p140, %p141
    %p143 = scmp.ne.s32.totalorder %s135, %s138
    %p144 = scmp.eq.s32.totalorder %s10, 0
    %p145 = por %p143, %p144
    %p146 = scmp.ne.s32.totalorder %s135, %s138
    %p147 = scmp.eq.s32.totalorder %s15, 1
    %p148 = por %p146, %p147
    %p149 = scmp.ne.s32.totalorder %s138, %s139
    %p150 = scmp.eq.s32.totalorder %s15, 0
    %p151 = por %p149, %p150
    %p152 = scmp.ne.s32.totalorder %s138, %s139
    %p153 = scmp.eq.s32.totalorder %s16, 1
    %p154 = por %p152, %p153
    %p156 = scmp.ne.s32.totalorder %s139, %s155
    %p157 = scmp.eq.s32.totalorder %s16, 0
    %p158 = por %p156, %p157
    %p159 = scmp.le.s32.totalorder 1, %s10
    %p160 = scmp.lt.s32.totalorder %s10, 3
    %p161 = pnand %p159, %p160
    %p162 = pneg %p161
    // Predicated region
    $region9: #{gen_block_forward.7} parent=5 // pred_check
      _
    $region10: #{gen_block_forward.7} parent=5 // pred_check_branch
      %164 = sbr.rel (%p161) target = $region12
    $region11: #{gen_block_forward.7} parent=5 // pred_region
      %s165 = ssub.s32 %s10, 1
      // Predicated region
      $region13: #{gen_block_forward.7} parent=11 // pred_check
        %p166 = pneg %p71
      $region14: #{gen_block_forward.7} parent=11 // pred_check_branch
        %168 = sbr.rel (%p166) target = $region16
      $region15: #{gen_block_forward.7} parent=11 // pred_region
        _
      $region16: #{gen_block_forward.7} parent=11 // pred_fallthru
        _
    $region12: #{gen_block_forward.7} parent=5 // pred_fallthru
      _
    %p169 = scmp.lt.s32.totalorder %s10, 2
    // Predicated region
    $region17: #{gen_block_forward.7} parent=5 // pred_check
      %p170 = pneg %p169
    $region18: #{gen_block_forward.7} parent=5 // pred_check_branch
      %172 = sbr.rel (%p170) target = $region20
    $region19: #{gen_block_forward.7} parent=5 // pred_region
      // Predicated region
      $region21: #{gen_block_forward.7} parent=19 // pred_check
        %p173 = pneg %p44
      $region22: #{gen_block_forward.7} parent=19 // pred_check_branch
        %175 = sbr.rel (%p173) target = $region24
      $region23: #{gen_block_forward.7} parent=19 // pred_region
        %s176 = smul.u32 32, %s18
        %p177 = scmp.lt.s32.totalorder %s17, 1
        %s178 = scalar_select %p177, %s17, 1
        %p179 = scmp.lt.s32.totalorder %s176, 31
        %s180 = scalar_select %p179, %s176, 31
        %s181 = smul.addr %s178, 32
        %s182 = sadd.s32 %s180, %s181
        %s183 = smul.addr %s182, 8
        %s184 = scalar_lea.vmem %s0, %s183
        %s185 = smul.u32 32, %s18
      $region24: #{gen_block_forward.7} parent=19 // pred_fallthru
        _
      // Predicated region
      $region25: #{gen_block_forward.7} parent=19 // pred_check
        %p186 = pneg %p91
      $region26: #{gen_block_forward.7} parent=19 // pred_check_branch
        %188 = sbr.rel (%p186) target = $region28
      $region27: #{gen_block_forward.7} parent=19 // pred_region
        %p189 = scmp.lt.s32.totalorder %s17, 1
        %s190 = scalar_select %p189, %s17, 1
        %s191 = scalar_lea.vmem %s2, %s190
      $region28: #{gen_block_forward.7} parent=19 // pred_fallthru
        _
      // Predicated region
      $region29: #{gen_block_forward.7} parent=19 // pred_check
        %p192 = pneg %p117
      $region30: #{gen_block_forward.7} parent=19 // pred_check_branch
        %194 = sbr.rel (%p192) target = $region32
      $region31: #{gen_block_forward.7} parent=19 // pred_region
        %p195 = scmp.lt.s32.totalorder %s17, 1
        %s196 = scalar_select %p195, %s17, 1
        %s197 = scalar_lea.vmem %s3, %s196
      $region32: #{gen_block_forward.7} parent=19 // pred_fallthru
        _
    $region20: #{gen_block_forward.7} parent=5 // pred_fallthru
      _
    %p198 = scmp.le.s32.totalorder 1, %s10
    %p199 = scmp.lt.s32.totalorder %s10, 3
    %p200 = pnand %p198, %p199
    %p201 = pneg %p200
    // Predicated region
    $region33: #{gen_block_forward.7} parent=5 // pred_check
      _
    $region34: #{gen_block_forward.7} parent=5 // pred_check_branch
      %203 = sbr.rel (%p200) target = $region36
    $region35: #{gen_block_forward.7} parent=5 // pred_region
      %s204 = ssub.s32 %s10, 1
      %s205 = smul.u32 32, %s20
      %p206 = scmp.lt.s32.totalorder %s19, 1
      %s207 = scalar_select %p206, %s19, 1
      %p208 = scmp.lt.s32.totalorder %s205, 31
      %s209 = scalar_select %p208, %s205, 31
      %s210 = smul.addr %s207, 32
      %s211 = sadd.s32 %s209, %s210
      %s212 = smul.addr %s211, 8
      %s213 = scalar_lea.vmem %s0, %s212
      %p214 = pneg %p50
      %p215 = pneg %p47
      %p216 = pneg %p71
      %p217 = pneg %p68
      %p218 = scmp.lt.s32.totalorder %s19, 1
      %s219 = scalar_select %p218, %s19, 1
      %s220 = scalar_lea.vmem %s2, %s219
      %p221 = pneg %p97
      %p222 = pneg %p94
      %p223 = scmp.lt.s32.totalorder %s19, 1
      %s224 = scalar_select %p223, %s19, 1
      %s225 = scalar_lea.vmem %s3, %s224
      %p226 = pneg %p123
      %p227 = pneg %p120
      %p228 = pneg %p151
      %p229 = pneg %p148
      %s230 = smul.u32 32, %s20
      %p231 = scmp.lt.s32.totalorder %s19, 1
      %s232 = scalar_select %p231, %s19, 1
      %p233 = scmp.lt.s32.totalorder %s230, 31
      %s234 = scalar_select %p233, %s230, 31
      %s235 = smul.addr %s232, 32
      %s236 = sadd.s32 %s234, %s235
      %s237 = smul.addr %s236, 4
      %s238 = scalar_lea.vmem %s4, %s237
      %s239 = smul.u32 32, %s20
      %p240 = scmp.lt.s32.totalorder %s19, 1
      %s241 = scalar_select %p240, %s19, 1
      %p242 = scmp.lt.s32.totalorder %s239, 31
      %s243 = scalar_select %p242, %s239, 31
      %s244 = smul.addr %s241, 32
      %s245 = sadd.s32 %s243, %s244
      %s246 = smul.addr %s245, 8
      %s247 = scalar_lea.vmem %s0, %s246
      %s248 = smul.u32 32, %s20
      %p249 = scmp.lt.s32.totalorder %s19, 1
      %s250 = scalar_select %p249, %s19, 1
      %s251 = scalar_lea.vmem %s2, %s250
      %p252 = scmp.lt.s32.totalorder %s19, 1
      %s253 = scalar_select %p252, %s19, 1
      %s254 = scalar_lea.vmem %s3, %s253
      %s255 = smul.u32 32, %s20
      %p256 = scmp.lt.s32.totalorder %s19, 1
      %s257 = scalar_select %p256, %s19, 1
      %p258 = scmp.lt.s32.totalorder %s255, 31
      %s259 = scalar_select %p258, %s255, 31
      %s260 = smul.addr %s257, 32
      %s261 = sadd.s32 %s259, %s260
      %s262 = smul.addr %s261, 4
      %s263 = scalar_lea.vmem %s4, %s262
      %s264 = smul.u32 32, %s20
      %v265 = vld [vmem:[%s1] sm:$0x1]
      %v266 = vld [vmem:[%s1 + $0x1] sm:$0x1]
      %v267 = vadd.f32 %v266, 1e-05
      %v268 = vrsqrt.pop %v267
      %v269 = vmul.f32 %v268, %v267
      %v270 = vmul.f32 %v269, %v268
      %v271 = vmul.f32 0.5, %v270
      %v272 = vsub.f32 1.5, %v271
      %v273 = vmul.f32 %v268, %v272
      %vm274 = vweird.f32 %v267
      %vm275 = vweird.f32 %v268
      %vm276 = vmor %vm274, %vm275
      %v277 = vsel %vm276, %v268, %v273
      %v278 = vld [vmem:[%s251] sm:$0x1]
      %v279 = vmul.f32 %v278, %v277
      %v280 = vld [vmem:[%s254] sm:$0x1]
      %v281 = vmul.f32 %v265, %v279
      %v282 = vsub.f32 %v280, %v281
      %v283 = vld [vmem:[%s247] sm:$0xff]
      %v284 = vld [vmem:[%s247 + $0x8] sm:$0xff]
      %v285 = vld [vmem:[%s247 + $0x10] sm:$0xff]
      %v286 = vld [vmem:[%s247 + $0x18] sm:$0xff]
      %v287 = vld [vmem:[%s247 + $0x20] sm:$0xff]
      %v288 = vld [vmem:[%s247 + $0x28] sm:$0xff]
      %v289 = vld [vmem:[%s247 + $0x30] sm:$0xff]
      %v290 = vld [vmem:[%s247 + $0x38] sm:$0xff]
      %v291 = vld [vmem:[%s247 + $0x40] sm:$0xff]
      %v292 = vld [vmem:[%s247 + $0x48] sm:$0xff]
      %v293 = vld [vmem:[%s247 + $0x50] sm:$0xff]
      %v294 = vld [vmem:[%s247 + $0x58] sm:$0xff]
      %v295 = vld [vmem:[%s247 + $0x60] sm:$0xff]
      %v296 = vld [vmem:[%s247 + $0x68] sm:$0xff]
      %v297 = vld [vmem:[%s247 + $0x70] sm:$0xff]
      %v298 = vld [vmem:[%s247 + $0x78] sm:$0xff]
      %v299 = vld [vmem:[%s247 + $0x80] sm:$0xff]
      %v300 = vld [vmem:[%s247 + $0x88] sm:$0xff]
      %v301 = vld [vmem:[%s247 + $0x90] sm:$0xff]
      %v302 = vld [vmem:[%s247 + $0x98] sm:$0xff]
      %v303 = vld [vmem:[%s247 + $0xa0] sm:$0xff]
      %v304 = vld [vmem:[%s247 + $0xa8] sm:$0xff]
      %v305 = vld [vmem:[%s247 + $0xb0] sm:$0xff]
      %v306 = vld [vmem:[%s247 + $0xb8] sm:$0xff]
      %v307 = vld [vmem:[%s247 + $0xc0] sm:$0xff]
      %v308 = vld [vmem:[%s247 + $0xc8] sm:$0xff]
      %v309 = vld [vmem:[%s247 + $0xd0] sm:$0xff]
      %v310 = vld [vmem:[%s247 + $0xd8] sm:$0xff]
      %v311 = vld [vmem:[%s247 + $0xe0] sm:$0xff]
      %v312 = vld [vmem:[%s247 + $0xe8] sm:$0xff]
      %v313 = vld [vmem:[%s247 + $0xf0] sm:$0xff]
      %v314 = vld [vmem:[%s247 + $0xf8] sm:$0xff]
      %v316 = vperm.slane %v279, 0
      %v318 = vmul.f32 %v283, %v316
      %v319 = vmul.f32 %v284, %v316
      %v320 = vmul.f32 %v285, %v316
      %v321 = vmul.f32 %v286, %v316
      %v322 = vmul.f32 %v287, %v316
      %v323 = vmul.f32 %v288, %v316
      %v324 = vmul.f32 %v289, %v316
      %v325 = vmul.f32 %v290, %v316
      %v326 = vmul.f32 %v291, %v316
      %v327 = vmul.f32 %v292, %v316
      %v328 = vmul.f32 %v293, %v316
      %v329 = vmul.f32 %v294, %v316
      %v330 = vmul.f32 %v295, %v316
      %v331 = vmul.f32 %v296, %v316
      %v332 = vmul.f32 %v297, %v316
      %v333 = vmul.f32 %v298, %v316
      %v334 = vmul.f32 %v299, %v316
      %v335 = vmul.f32 %v300, %v316
      %v336 = vmul.f32 %v301, %v316
      %v337 = vmul.f32 %v302, %v316
      %v338 = vmul.f32 %v303, %v316
      %v339 = vmul.f32 %v304, %v316
      %v340 = vmul.f32 %v305, %v316
      %v341 = vmul.f32 %v306, %v316
      %v342 = vmul.f32 %v307, %v316
      %v343 = vmul.f32 %v308, %v316
      %v344 = vmul.f32 %v309, %v316
      %v345 = vmul.f32 %v310, %v316
      %v346 = vmul.f32 %v311, %v316
      %v347 = vmul.f32 %v312, %v316
      %v348 = vmul.f32 %v313, %v316
      %v349 = vmul.f32 %v314, %v316
      %v351 = vperm.slane %v282, 0
      %v353 = vadd.f32 %v318, %v351
      %v354 = vadd.f32 %v319, %v351
      %v355 = vadd.f32 %v320, %v351
      %v356 = vadd.f32 %v321, %v351
      %v357 = vadd.f32 %v322, %v351
      %v358 = vadd.f32 %v323, %v351
      %v359 = vadd.f32 %v324, %v351
      %v360 = vadd.f32 %v325, %v351
      %v361 = vadd.f32 %v326, %v351
      %v362 = vadd.f32 %v327, %v351
      %v363 = vadd.f32 %v328, %v351
      %v364 = vadd.f32 %v329, %v351
      %v365 = vadd.f32 %v330, %v351
      %v366 = vadd.f32 %v331, %v351
      %v367 = vadd.f32 %v332, %v351
      %v368 = vadd.f32 %v333, %v351
      %v369 = vadd.f32 %v334, %v351
      %v370 = vadd.f32 %v335, %v351
      %v371 = vadd.f32 %v336, %v351
      %v372 = vadd.f32 %v337, %v351
      %v373 = vadd.f32 %v338, %v351
      %v374 = vadd.f32 %v339, %v351
      %v375 = vadd.f32 %v340, %v351
      %v376 = vadd.f32 %v341, %v351
      %v377 = vadd.f32 %v342, %v351
      %v378 = vadd.f32 %v343, %v351
      %v379 = vadd.f32 %v344, %v351
      %v380 = vadd.f32 %v345, %v351
      %v381 = vadd.f32 %v346, %v351
      %v382 = vadd.f32 %v347, %v351
      %v383 = vadd.f32 %v348, %v351
      %v384 = vadd.f32 %v349, %v351
      %v385 = vmax.f32 %v353, 0.0
      %v386 = vmax.f32 %v354, 0.0
      %v387 = vmax.f32 %v355, 0.0
      %v388 = vmax.f32 %v356, 0.0
      %v389 = vmax.f32 %v357, 0.0
      %v390 = vmax.f32 %v358, 0.0
      %v391 = vmax.f32 %v359, 0.0
      %v392 = vmax.f32 %v360, 0.0
      %v393 = vmax.f32 %v361, 0.0
      %v394 = vmax.f32 %v362, 0.0
      %v395 = vmax.f32 %v363, 0.0
      %v396 = vmax.f32 %v364, 0.0
      %v397 = vmax.f32 %v365, 0.0
      %v398 = vmax.f32 %v366, 0.0
      %v399 = vmax.f32 %v367, 0.0
      %v400 = vmax.f32 %v368, 0.0
      %v401 = vmax.f32 %v369, 0.0
      %v402 = vmax.f32 %v370, 0.0
      %v403 = vmax.f32 %v371, 0.0
      %v404 = vmax.f32 %v372, 0.0
      %v405 = vmax.f32 %v373, 0.0
      %v406 = vmax.f32 %v374, 0.0
      %v407 = vmax.f32 %v375, 0.0
      %v408 = vmax.f32 %v376, 0.0
      %v409 = vmax.f32 %v377, 0.0
      %v410 = vmax.f32 %v378, 0.0
      %v411 = vmax.f32 %v379, 0.0
      %v412 = vmax.f32 %v380, 0.0
      %v413 = vmax.f32 %v381, 0.0
      %v414 = vmax.f32 %v382, 0.0
      %v415 = vmax.f32 %v383, 0.0
      %v416 = vmax.f32 %v384, 0.0
      %v417 = vpack.c.bf16 %v385, %v385
      %v418 = vpack.c.bf16 %v386, %v386
      %v419 = vpack.c.bf16 %v387, %v387
      %v420 = vpack.c.bf16 %v388, %v388
      %v421 = vpack.c.bf16 %v389, %v389
      %v422 = vpack.c.bf16 %v390, %v390
      %v423 = vpack.c.bf16 %v391, %v391
      %v424 = vpack.c.bf16 %v392, %v392
      %v425 = vpack.c.bf16 %v393, %v393
      %v426 = vpack.c.bf16 %v394, %v394
      %v427 = vpack.c.bf16 %v395, %v395
      %v428 = vpack.c.bf16 %v396, %v396
      %v429 = vpack.c.bf16 %v397, %v397
      %v430 = vpack.c.bf16 %v398, %v398
      %v431 = vpack.c.bf16 %v399, %v399
      %v432 = vpack.c.bf16 %v400, %v400
      %v433 = vpack.c.bf16 %v401, %v401
      %v434 = vpack.c.bf16 %v402, %v402
      %v435 = vpack.c.bf16 %v403, %v403
      %v436 = vpack.c.bf16 %v404, %v404
      %v437 = vpack.c.bf16 %v405, %v405
      %v438 = vpack.c.bf16 %v406, %v406
      %v439 = vpack.c.bf16 %v407, %v407
      %v440 = vpack.c.bf16 %v408, %v408
      %v441 = vpack.c.bf16 %v409, %v409
      %v442 = vpack.c.bf16 %v410, %v410
      %v443 = vpack.c.bf16 %v411, %v411
      %v444 = vpack.c.bf16 %v412, %v412
      %v445 = vpack.c.bf16 %v413, %v413
      %v446 = vpack.c.bf16 %v414, %v414
      %v447 = vpack.c.bf16 %v415, %v415
      %v448 = vpack.c.bf16 %v416, %v416
      %vm449 = vcmask 27648
      %450 = vst.msk [vmem:[%s263] sm:$0xf] %vm449, %v417
      %451 = vst.msk [vmem:[%s263 + $0x4] sm:$0xf] %vm449, %v418
      %452 = vst.msk [vmem:[%s263 + $0x8] sm:$0xf] %vm449, %v419
      %453 = vst.msk [vmem:[%s263 + $0xc] sm:$0xf] %vm449, %v420
      %454 = vst.msk [vmem:[%s263 + $0x10] sm:$0xf] %vm449, %v421
      %455 = vst.msk [vmem:[%s263 + $0x14] sm:$0xf] %vm449, %v422
      %456 = vst.msk [vmem:[%s263 + $0x18] sm:$0xf] %vm449, %v423
      %457 = vst.msk [vmem:[%s263 + $0x1c] sm:$0xf] %vm449, %v424
      %458 = vst.msk [vmem:[%s263 + $0x20] sm:$0xf] %vm449, %v425
      %459 = vst.msk [vmem:[%s263 + $0x24] sm:$0xf] %vm449, %v426
      %460 = vst.msk [vmem:[%s263 + $0x28] sm:$0xf] %vm449, %v427
      %461 = vst.msk [vmem:[%s263 + $0x2c] sm:$0xf] %vm449, %v428
      %462 = vst.msk [vmem:[%s263 + $0x30] sm:$0xf] %vm449, %v429
      %463 = vst.msk [vmem:[%s263 + $0x34] sm:$0xf] %vm449, %v430
      %464 = vst.msk [vmem:[%s263 + $0x38] sm:$0xf] %vm449, %v431
      %465 = vst.msk [vmem:[%s263 + $0x3c] sm:$0xf] %vm449, %v432
      %466 = vst.msk [vmem:[%s263 + $0x40] sm:$0xf] %vm449, %v433
      %467 = vst.msk [vmem:[%s263 + $0x44] sm:$0xf] %vm449, %v434
      %468 = vst.msk [vmem:[%s263 + $0x48] sm:$0xf] %vm449, %v435
      %469 = vst.msk [vmem:[%s263 + $0x4c] sm:$0xf] %vm449, %v436
      %470 = vst.msk [vmem:[%s263 + $0x50] sm:$0xf] %vm449, %v437
      %471 = vst.msk [vmem:[%s263 + $0x54] sm:$0xf] %vm449, %v438
      %472 = vst.msk [vmem:[%s263 + $0x58] sm:$0xf] %vm449, %v439
      %473 = vst.msk [vmem:[%s263 + $0x5c] sm:$0xf] %vm449, %v440
      %474 = vst.msk [vmem:[%s263 + $0x60] sm:$0xf] %vm449, %v441
      %475 = vst.msk [vmem:[%s263 + $0x64] sm:$0xf] %vm449, %v442
      %476 = vst.msk [vmem:[%s263 + $0x68] sm:$0xf] %vm449, %v443
      %477 = vst.msk [vmem:[%s263 + $0x6c] sm:$0xf] %vm449, %v444
      %478 = vst.msk [vmem:[%s263 + $0x70] sm:$0xf] %vm449, %v445
      %479 = vst.msk [vmem:[%s263 + $0x74] sm:$0xf] %vm449, %v446
      %480 = vst.msk [vmem:[%s263 + $0x78] sm:$0xf] %vm449, %v447
      %481 = vst.msk [vmem:[%s263 + $0x7c] sm:$0xf] %vm449, %v448
      %s482 = smul.u32 32, %s20
      %p483 = scmp.lt.s32.totalorder %s19, 1
      %s484 = scalar_select %p483, %s19, 1
      %p485 = scmp.lt.s32.totalorder %s482, 31
      %s486 = scalar_select %p485, %s482, 31
      %s487 = smul.addr %s484, 32
      %s488 = sadd.s32 %s486, %s487
      %s489 = smul.addr %s488, 4
      %s490 = scalar_lea.vmem %s4, %s489
      // Predicated region
      $region37: #{gen_block_forward.7} parent=35 // pred_check
        %p491 = pneg %p148
      $region38: #{gen_block_forward.7} parent=35 // pred_check_branch
        %493 = sbr.rel (%p491) target = $region40
      $region39: #{gen_block_forward.7} parent=35 // pred_region
        %s494 = smul.u32 32, %s20
      $region40: #{gen_block_forward.7} parent=35 // pred_fallthru
        _
    $region36: #{gen_block_forward.7} parent=5 // pred_fallthru
      _
    %p495 = scmp.le.s32.totalorder 2, %s10
    // Predicated region
    $region41: #{gen_block_forward.7} parent=5 // pred_check
      %p496 = pneg %p495
    $region42: #{gen_block_forward.7} parent=5 // pred_check_branch
      %498 = sbr.rel (%p496) target = $region44
    $region43: #{gen_block_forward.7} parent=5 // pred_region
      %s499 = ssub.s32 %s10, 2
      // Predicated region
      $region45: #{gen_block_forward.7} parent=43 // pred_check
        %p500 = pneg %p154
      $region46: #{gen_block_forward.7} parent=43 // pred_check_branch
        %502 = sbr.rel (%p500) target = $region48
      $region47: #{gen_block_forward.7} parent=43 // pred_region
        %s503 = smul.u32 32, %s22
        %p504 = scmp.lt.s32.totalorder %s21, 1
        %s505 = scalar_select %p504, %s21, 1
        %p506 = scmp.lt.s32.totalorder %s503, 31
        %s507 = scalar_select %p506, %s503, 31
        %s508 = smul.addr %s505, 32
        %s509 = sadd.s32 %s507, %s508
        %s510 = smul.addr %s509, 4
        %s511 = scalar_lea.vmem %s4, %s510
      $region48: #{gen_block_forward.7} parent=43 // pred_fallthru
        _
    $region44: #{gen_block_forward.7} parent=5 // pred_fallthru
      _
  $region6: #{gen_block_forward.7} parent=0 // loop_footer
    %s14 = sadd.s32 1, %s10
  $region7: #{gen_block_forward.7} parent=0 // loop_footer_branch
    %9 = sbr.rel target = $region3
  $region8: #{gen_block_forward.7} parent=0 // loop_exit
    _

// kernel: gen_block_forward.6
$region0: #{gen_block_forward.6}
  #allocation0 [shape = 'u32[]', space=smem, size = 0x4, offset = 0x4, fixed_abs, tag = 'smem constant byte address 0x4 - core index']
  #allocation1 [shape = 'u32[72,128]{1,0:T(1,128)}', space=vmem, size = 0x9000, scoped, tag = 'internal scratch']
  #allocation2 [shape = 'f32[1,4]{1,0:T(1,128)}', space=vmem, size = 0x200, scoped, tag = 'scratch operand']
  #allocation3 [shape = 'f32[1,4]{1,0:T(1,128)}', space=vmem, size = 0x200, scoped, tag = 'scratch operand']
  %s0 = inlined_call_operand.vmem [shape: f32[512,4], index: 0, kind: input, shape index: {}]
  %s1 = inlined_call_operand.vmem [shape: f32[2,4], index: 1, kind: output, shape index: {}]
  %s2 = sld [smem:[#allocation0]]
  $region22: #{gen_block_forward.6} parent=0
    _
  %s4 = ssub.s32 1, %s2
  %s5 = scalar_select 0, %s4, %s2
  // Predicated region
  $region2: #{gen_block_forward.6} parent=0 // pred_check
    _
  $region3: #{gen_block_forward.6} parent=0 // pred_check_branch
    %7 = sbr.rel (0) target = $region5
  $region4: #{gen_block_forward.6} parent=0 // pred_region
    _
  $region5: #{gen_block_forward.6} parent=0 // pred_fallthru
    _
  %v8 = vld [vmem:[%s0] sm:$0xff]
  %v9 = vld [vmem:[%s0 + $0x8] sm:$0xff]
  %v10 = vld [vmem:[%s0 + $0x10] sm:$0xff]
  %v11 = vld [vmem:[%s0 + $0x18] sm:$0xff]
  %v12 = vld [vmem:[%s0 + $0x20] sm:$0xff]
  %v13 = vld [vmem:[%s0 + $0x28] sm:$0xff]
  %v14 = vld [vmem:[%s0 + $0x30] sm:$0xff]
  %v15 = vld [vmem:[%s0 + $0x38] sm:$0xff]
  %v16 = vld [vmem:[%s0 + $0x40] sm:$0xff]
  %v17 = vld [vmem:[%s0 + $0x48] sm:$0xff]
  %v18 = vld [vmem:[%s0 + $0x50] sm:$0xff]
  %v19 = vld [vmem:[%s0 + $0x58] sm:$0xff]
  %v20 = vld [vmem:[%s0 + $0x60] sm:$0xff]
  %v21 = vld [vmem:[%s0 + $0x68] sm:$0xff]
  %v22 = vld [vmem:[%s0 + $0x70] sm:$0xff]
  %v23 = vld [vmem:[%s0 + $0x78] sm:$0xff]
  %v24 = vld [vmem:[%s0 + $0x80] sm:$0xff]
  %v25 = vld [vmem:[%s0 + $0x88] sm:$0xff]
  %v26 = vld [vmem:[%s0 + $0x90] sm:$0xff]
  %v27 = vld [vmem:[%s0 + $0x98] sm:$0xff]
  %v28 = vld [vmem:[%s0 + $0xa0] sm:$0xff]
  %v29 = vld [vmem:[%s0 + $0xa8] sm:$0xff]
  %v30 = vld [vmem:[%s0 + $0xb0] sm:$0xff]
  %v31 = vld [vmem:[%s0 + $0xb8] sm:$0xff]
  %v32 = vld [vmem:[%s0 + $0xc0] sm:$0xff]
  %v33 = vld [vmem:[%s0 + $0xc8] sm:$0xff]
  %v34 = vld [vmem:[%s0 + $0xd0] sm:$0xff]
  %v35 = vld [vmem:[%s0 + $0xd8] sm:$0xff]
  %v36 = vld [vmem:[%s0 + $0xe0] sm:$0xff]
  %v37 = vld [vmem:[%s0 + $0xe8] sm:$0xff]
  %v38 = vld [vmem:[%s0 + $0xf0] sm:$0xff]
  %v39 = vld [vmem:[%s0 + $0xf8] sm:$0xff]
  %v40 = vld [vmem:[%s0 + $0x100] sm:$0xff]
  %v41 = vld [vmem:[%s0 + $0x108] sm:$0xff]
  %v42 = vld [vmem:[%s0 + $0x110] sm:$0xff]
  %v43 = vld [vmem:[%s0 + $0x118] sm:$0xff]
  %v44 = vld [vmem:[%s0 + $0x120] sm:$0xff]
  %v45 = vld [vmem:[%s0 + $0x128] sm:$0xff]
  %v46 = vld [vmem:[%s0 + $0x130] sm:$0xff]
  %v47 = vld [vmem:[%s0 + $0x138] sm:$0xff]
  %v48 = vld [vmem:[%s0 + $0x140] sm:$0xff]
  %v49 = vld [vmem:[%s0 + $0x148] sm:$0xff]
  %v50 = vld [vmem:[%s0 + $0x150] sm:$0xff]
  %v51 = vld [vmem:[%s0 + $0x158] sm:$0xff]
  %v52 = vld [vmem:[%s0 + $0x160] sm:$0xff]
  %v53 = vld [vmem:[%s0 + $0x168] sm:$0xff]
  %v54 = vld [vmem:[%s0 + $0x170] sm:$0xff]
  %v55 = vld [vmem:[%s0 + $0x178] sm:$0xff]
  %v56 = vld [vmem:[%s0 + $0x180] sm:$0xff]
  %v57 = vld [vmem:[%s0 + $0x188] sm:$0xff]
  %v58 = vld [vmem:[%s0 + $0x190] sm:$0xff]
  %v59 = vld [vmem:[%s0 + $0x198] sm:$0xff]
  %v60 = vld [vmem:[%s0 + $0x1a0] sm:$0xff]
  %v61 = vld [vmem:[%s0 + $0x1a8] sm:$0xff]
  %v62 = vld [vmem:[%s0 + $0x1b0] sm:$0xff]
  %v63 = vld [vmem:[%s0 + $0x1b8] sm:$0xff]
  %v64 = vld [vmem:[%s0 + $0x1c0] sm:$0xff]
  %v65 = vld [vmem:[%s0 + $0x1c8] sm:$0xff]
  %v66 = vld [vmem:[%s0 + $0x1d0] sm:$0xff]
  %v67 = vld [vmem:[%s0 + $0x1d8] sm:$0xff]
  %v68 = vld [vmem:[%s0 + $0x1e0] sm:$0xff]
  %v69 = vld [vmem:[%s0 + $0x1e8] sm:$0xff]
  %v70 = vld [vmem:[%s0 + $0x1f0] sm:$0xff]
  %v71 = vld [vmem:[%s0 + $0x1f8] sm:$0xff]
  %vm72 = vcmask 31744
  %v73 = vsel %vm72, %v8, 0.0
  %v74 = vsel %vm72, %v9, 0.0
  %v75 = vadd.f32 %v73, %v74
  %v76 = vsel %vm72, %v10, 0.0
  %v77 = vadd.f32 %v75, %v76
  %v78 = vsel %vm72, %v11, 0.0
  %v79 = vadd.f32 %v77, %v78
  %v80 = vsel %vm72, %v12, 0.0
  %v81 = vadd.f32 %v79, %v80
  %v82 = vsel %vm72, %v13, 0.0
  %v83 = vadd.f32 %v81, %v82
  %v84 = vsel %vm72, %v14, 0.0
  %v85 = vadd.f32 %v83, %v84
  %v86 = vsel %vm72, %v15, 0.0
  %v87 = vadd.f32 %v85, %v86
  %v88 = vsel %vm72, %v16, 0.0
  %v89 = vadd.f32 %v87, %v88
  %v90 = vsel %vm72, %v17, 0.0
  %v91 = vadd.f32 %v89, %v90
  %v92 = vsel %vm72, %v18, 0.0
  %v93 = vadd.f32 %v91, %v92
  %v94 = vsel %vm72, %v19, 0.0
  %v95 = vadd.f32 %v93, %v94
  %v96 = vsel %vm72, %v20, 0.0
  %v97 = vadd.f32 %v95, %v96
  %v98 = vsel %vm72, %v21, 0.0
  %v99 = vadd.f32 %v97, %v98
  %v100 = vsel %vm72, %v22, 0.0
  %v101 = vadd.f32 %v99, %v100
  %v102 = vsel %vm72, %v23, 0.0
  %v103 = vadd.f32 %v101, %v102
  %v104 = vsel %vm72, %v24, 0.0
  %v105 = vadd.f32 %v103, %v104
  %v106 = vsel %vm72, %v25, 0.0
  %v107 = vadd.f32 %v105, %v106
  %v108 = vsel %vm72, %v26, 0.0
  %v109 = vadd.f32 %v107, %v108
  %v110 = vsel %vm72, %v27, 0.0
  %v111 = vadd.f32 %v109, %v110
  %v112 = vsel %vm72, %v28, 0.0
  %v113 = vadd.f32 %v111, %v112
  %v114 = vsel %vm72, %v29, 0.0
  %v115 = vadd.f32 %v113, %v114
  %v116 = vsel %vm72, %v30, 0.0
  %v117 = vadd.f32 %v115, %v116
  %v118 = vsel %vm72, %v31, 0.0
  %v119 = vadd.f32 %v117, %v118
  %v120 = vsel %vm72, %v32, 0.0
  %v121 = vadd.f32 %v119, %v120
  %v122 = vsel %vm72, %v33, 0.0
  %v123 = vadd.f32 %v121, %v122
  %v124 = vsel %vm72, %v34, 0.0
  %v125 = vadd.f32 %v123, %v124
  %v126 = vsel %vm72, %v35, 0.0
  %v127 = vadd.f32 %v125, %v126
  %v128 = vsel %vm72, %v36, 0.0
  %v129 = vadd.f32 %v127, %v128
  %v130 = vsel %vm72, %v37, 0.0
  %v131 = vadd.f32 %v129, %v130
  %v132 = vsel %vm72, %v38, 0.0
  %v133 = vadd.f32 %v131, %v132
  %v134 = vsel %vm72, %v39, 0.0
  %v135 = vadd.f32 %v133, %v134
  %v136 = vsel %vm72, %v40, 0.0
  %v137 = vadd.f32 %v135, %v136
  %v138 = vsel %vm72, %v41, 0.0
  %v139 = vadd.f32 %v137, %v138
  %v140 = vsel %vm72, %v42, 0.0
  %v141 = vadd.f32 %v139, %v140
  %v142 = vsel %vm72, %v43, 0.0
  %v143 = vadd.f32 %v141, %v142
  %v144 = vsel %vm72, %v44, 0.0
  %v145 = vadd.f32 %v143, %v144
  %v146 = vsel %vm72, %v45, 0.0
  %v147 = vadd.f32 %v145, %v146
  %v148 = vsel %vm72, %v46, 0.0
  %v149 = vadd.f32 %v147, %v148
  %v150 = vsel %vm72, %v47, 0.0
  %v151 = vadd.f32 %v149, %v150
  %v152 = vsel %vm72, %v48, 0.0
  %v153 = vadd.f32 %v151, %v152
  %v154 = vsel %vm72, %v49, 0.0
  %v155 = vadd.f32 %v153, %v154
  %v156 = vsel %vm72, %v50, 0.0
  %v157 = vadd.f32 %v155, %v156
  %v158 = vsel %vm72, %v51, 0.0
  %v159 = vadd.f32 %v157, %v158
  %v160 = vsel %vm72, %v52, 0.0
  %v161 = vadd.f32 %v159, %v160
  %v162 = vsel %vm72, %v53, 0.0
  %v163 = vadd.f32 %v161, %v162
  %v164 = vsel %vm72, %v54, 0.0
  %v165 = vadd.f32 %v163, %v164
  %v166 = vsel %vm72, %v55, 0.0
  %v167 = vadd.f32 %v165, %v166
  %v168 = vsel %vm72, %v56, 0.0
  %v169 = vadd.f32 %v167, %v168
  %v170 = vsel %vm72, %v57, 0.0
  %v171 = vadd.f32 %v169, %v170
  %v172 = vsel %vm72, %v58, 0.0
  %v173 = vadd.f32 %v171, %v172
  %v174 = vsel %vm72, %v59, 0.0
  %v175 = vadd.f32 %v173, %v174
  %v176 = vsel %vm72, %v60, 0.0
  %v177 = vadd.f32 %v175, %v176
  %v178 = vsel %vm72, %v61, 0.0
  %v179 = vadd.f32 %v177, %v178
  %v180 = vsel %vm72, %v62, 0.0
  %v181 = vadd.f32 %v179, %v180
  %v182 = vsel %vm72, %v63, 0.0
  %v183 = vadd.f32 %v181, %v182
  %v184 = vsel %vm72, %v64, 0.0
  %v185 = vadd.f32 %v183, %v184
  %v186 = vsel %vm72, %v65, 0.0
  %v187 = vadd.f32 %v185, %v186
  %v188 = vsel %vm72, %v66, 0.0
  %v189 = vadd.f32 %v187, %v188
  %v190 = vsel %vm72, %v67, 0.0
  %v191 = vadd.f32 %v189, %v190
  %v192 = vsel %vm72, %v68, 0.0
  %v193 = vadd.f32 %v191, %v192
  %v194 = vsel %vm72, %v69, 0.0
  %v195 = vadd.f32 %v193, %v194
  %v196 = vsel %vm72, %v70, 0.0
  %v197 = vadd.f32 %v195, %v196
  %v198 = vsel %vm72, %v71, 0.0
  %v199 = vadd.f32 %v197, %v198
  %v200 = vrot.slane %v199, 4
  %v201 = vadd.f32 %v199, %v200
  %v202 = vrot.slane %v201, 2
  %v203 = vadd.f32 %v201, %v202
  %v204 = vrot.slane %v203, 1
  %v205 = vadd.f32 %v203, %v204
  %v206 = vrcp.pop 512.0
  %v207 = vmul.f32 512.0, %v206
  %v208 = vsub.f32 1.0, %v207
  %v209 = vmul.f32 %v206, %v208
  %v210 = vadd.f32 %v206, %v209
  %vm211 = vweird.f32 %v206
  %v212 = vsel %vm211, %v206, %v210
  %v213 = vmul.f32 %v205, %v212
  %v214 = vsub.f32 %v8, %v213
  %v215 = vsub.f32 %v9, %v213
  %v216 = vsub.f32 %v10, %v213
  %v217 = vsub.f32 %v11, %v213
  %v218 = vsub.f32 %v12, %v213
  %v219 = vsub.f32 %v13, %v213
  %v220 = vsub.f32 %v14, %v213
  %v221 = vsub.f32 %v15, %v213
  %v222 = vsub.f32 %v16, %v213
  %v223 = vsub.f32 %v17, %v213
  %v224 = vsub.f32 %v18, %v213
  %v225 = vsub.f32 %v19, %v213
  %v226 = vsub.f32 %v20, %v213
  %v227 = vsub.f32 %v21, %v213
  %v228 = vsub.f32 %v22, %v213
  %v229 = vsub.f32 %v23, %v213
  %v230 = vsub.f32 %v24, %v213
  %v231 = vsub.f32 %v25, %v213
  %v232 = vsub.f32 %v26, %v213
  %v233 = vsub.f32 %v27, %v213
  %v234 = vsub.f32 %v28, %v213
  %v235 = vsub.f32 %v29, %v213
  %v236 = vsub.f32 %v30, %v213
  %v237 = vsub.f32 %v31, %v213
  %v238 = vsub.f32 %v32, %v213
  %v239 = vsub.f32 %v33, %v213
  %v240 = vsub.f32 %v34, %v213
  %v241 = vsub.f32 %v35, %v213
  %v242 = vsub.f32 %v36, %v213
  %v243 = vsub.f32 %v37, %v213
  %v244 = vsub.f32 %v38, %v213
  %v245 = vsub.f32 %v39, %v213
  %v246 = vsub.f32 %v40, %v213
  %v247 = vsub.f32 %v41, %v213
  %v248 = vsub.f32 %v42, %v213
  %v249 = vsub.f32 %v43, %v213
  %v250 = vsub.f32 %v44, %v213
  %v251 = vsub.f32 %v45, %v213
  %v252 = vsub.f32 %v46, %v213
  %v253 = vsub.f32 %v47, %v213
  %v254 = vsub.f32 %v48, %v213
  %v255 = vsub.f32 %v49, %v213
  %v256 = vsub.f32 %v50, %v213
  %v257 = vsub.f32 %v51, %v213
  %v258 = vsub.f32 %v52, %v213
  %v259 = vsub.f32 %v53, %v213
  %v260 = vsub.f32 %v54, %v213
  %v261 = vsub.f32 %v55, %v213
  %v262 = vsub.f32 %v56, %v213
  %v263 = vsub.f32 %v57, %v213
  %v264 = vsub.f32 %v58, %v213
  %v265 = vsub.f32 %v59, %v213
  %v266 = vsub.f32 %v60, %v213
  %v267 = vsub.f32 %v61, %v213
  %v268 = vsub.f32 %v62, %v213
  %v269 = vsub.f32 %v63, %v213
  %v270 = vsub.f32 %v64, %v213
  %v271 = vsub.f32 %v65, %v213
  %v272 = vsub.f32 %v66, %v213
  %v273 = vsub.f32 %v67, %v213
  %v274 = vsub.f32 %v68, %v213
  %v275 = vsub.f32 %v69, %v213
  %v276 = vsub.f32 %v70, %v213
  %v277 = vsub.f32 %v71, %v213
  %v278 = vmul.f32 %v214, %v214
  %v279 = vmul.f32 %v215, %v215
  %v280 = vmul.f32 %v216, %v216
  %v281 = vmul.f32 %v217, %v217
  %v282 = vmul.f32 %v218, %v218
  %v283 = vmul.f32 %v219, %v219
  %v284 = vmul.f32 %v220, %v220
  %v285 = vmul.f32 %v221, %v221
  %v286 = vmul.f32 %v222, %v222
  %v287 = vmul.f32 %v223, %v223
  %v288 = vmul.f32 %v224, %v224
  %v289 = vmul.f32 %v225, %v225
  %v290 = vmul.f32 %v226, %v226
  %v291 = vmul.f32 %v227, %v227
  %v292 = vmul.f32 %v228, %v228
  %v293 = vmul.f32 %v229, %v229
  %v294 = vmul.f32 %v230, %v230
  %v295 = vmul.f32 %v231, %v231
  %v296 = vmul.f32 %v232, %v232
  %v297 = vmul.f32 %v233, %v233
  %v298 = vmul.f32 %v234, %v234
  %v299 = vmul.f32 %v235, %v235
  %v300 = vmul.f32 %v236, %v236
  %v301 = vmul.f32 %v237, %v237
  %v302 = vmul.f32 %v238, %v238
  %v303 = vmul.f32 %v239, %v239
  %v304 = vmul.f32 %v240, %v240
  %v305 = vmul.f32 %v241, %v241
  %v306 = vmul.f32 %v242, %v242
  %v307 = vmul.f32 %v243, %v243
  %v308 = vmul.f32 %v244, %v244
  %v309 = vmul.f32 %v245, %v245
  %v310 = vmul.f32 %v246, %v246
  %v311 = vmul.f32 %v247, %v247
  %v312 = vmul.f32 %v248, %v248
  %v313 = vmul.f32 %v249, %v249
  %v314 = vmul.f32 %v250, %v250
  %v315 = vmul.f32 %v251, %v251
  %v316 = vmul.f32 %v252, %v252
  %v317 = vmul.f32 %v253, %v253
  %v318 = vmul.f32 %v254, %v254
  %v319 = vmul.f32 %v255, %v255
  %v320 = vmul.f32 %v256, %v256
  %v321 = vmul.f32 %v257, %v257
  %v322 = vmul.f32 %v258, %v258
  %v323 = vmul.f32 %v259, %v259
  %v324 = vmul.f32 %v260, %v260
  %v325 = vmul.f32 %v261, %v261
  %v326 = vmul.f32 %v262, %v262
  %v327 = vmul.f32 %v263, %v263
  %v328 = vmul.f32 %v264, %v264
  %v329 = vmul.f32 %v265, %v265
  %v330 = vmul.f32 %v266, %v266
  %v331 = vmul.f32 %v267, %v267
  %v332 = vmul.f32 %v268, %v268
  %v333 = vmul.f32 %v269, %v269
  %v334 = vmul.f32 %v270, %v270
  %v335 = vmul.f32 %v271, %v271
  %v336 = vmul.f32 %v272, %v272
  %v337 = vmul.f32 %v273, %v273
  %v338 = vmul.f32 %v274, %v274
  %v339 = vmul.f32 %v275, %v275
  %v340 = vmul.f32 %v276, %v276
  %v341 = vmul.f32 %v277, %v277
  %v342 = vsel %vm72, %v278, 0.0
  %v343 = vsel %vm72, %v279, 0.0
  %v344 = vadd.f32 %v342, %v343
  %v345 = vsel %vm72, %v280, 0.0
  %v346 = vadd.f32 %v344, %v345
  %v347 = vsel %vm72, %v281, 0.0
  %v348 = vadd.f32 %v346, %v347
  %v349 = vsel %vm72, %v282, 0.0
  %v350 = vadd.f32 %v348, %v349
  %v351 = vsel %vm72, %v283, 0.0
  %v352 = vadd.f32 %v350, %v351
  %v353 = vsel %vm72, %v284, 0.0
  %v354 = vadd.f32 %v352, %v353
  %v355 = vsel %vm72, %v285, 0.0
  %v356 = vadd.f32 %v354, %v355
  %v357 = vsel %vm72, %v286, 0.0
  %v358 = vadd.f32 %v356, %v357
  %v359 = vsel %vm72, %v287, 0.0
  %v360 = vadd.f32 %v358, %v359
  %v361 = vsel %vm72, %v288, 0.0
  %v362 = vadd.f32 %v360, %v361
  %v363 = vsel %vm72, %v289, 0.0
  %v364 = vadd.f32 %v362, %v363
  %v365 = vsel %vm72, %v290, 0.0
  %v366 = vadd.f32 %v364, %v365
  %v367 = vsel %vm72, %v291, 0.0
  %v368 = vadd.f32 %v366, %v367
  %v369 = vsel %vm72, %v292, 0.0
  %v370 = vadd.f32 %v368, %v369
  %v371 = vsel %vm72, %v293, 0.0
  %v372 = vadd.f32 %v370, %v371
  %v373 = vsel %vm72, %v294, 0.0
  %v374 = vadd.f32 %v372, %v373
  %v375 = vsel %vm72, %v295, 0.0
  %v376 = vadd.f32 %v374, %v375
  %v377 = vsel %vm72, %v296, 0.0
  %v378 = vadd.f32 %v376, %v377
  %v379 = vsel %vm72, %v297, 0.0
  %v380 = vadd.f32 %v378, %v379
  %v381 = vsel %vm72, %v298, 0.0
  %v382 = vadd.f32 %v380, %v381
  %v383 = vsel %vm72, %v299, 0.0
  %v384 = vadd.f32 %v382, %v383
  %v385 = vsel %vm72, %v300, 0.0
  %v386 = vadd.f32 %v384, %v385
  %v387 = vsel %vm72, %v301, 0.0
  %v388 = vadd.f32 %v386, %v387
  %v389 = vsel %vm72, %v302, 0.0
  %v390 = vadd.f32 %v388, %v389
  %v391 = vsel %vm72, %v303, 0.0
  %v392 = vadd.f32 %v390, %v391
  %v393 = vsel %vm72, %v304, 0.0
  %v394 = vadd.f32 %v392, %v393
  %v395 = vsel %vm72, %v305, 0.0
  %v396 = vadd.f32 %v394, %v395
  %v397 = vsel %vm72, %v306, 0.0
  %v398 = vadd.f32 %v396, %v397
  %v399 = vsel %vm72, %v307, 0.0
  %v400 = vadd.f32 %v398, %v399
  %v401 = vsel %vm72, %v308, 0.0
  %v402 = vadd.f32 %v400, %v401
  %v403 = vsel %vm72, %v309, 0.0
  %v404 = vadd.f32 %v402, %v403
  %v405 = vsel %vm72, %v310, 0.0
  %v406 = vadd.f32 %v404, %v405
  %v407 = vsel %vm72, %v311, 0.0
  %v408 = vadd.f32 %v406, %v407
  %v409 = vsel %vm72, %v312, 0.0
  %v410 = vadd.f32 %v408, %v409
  %v411 = vsel %vm72, %v313, 0.0
  %v412 = vadd.f32 %v410, %v411
  %v413 = vsel %vm72, %v314, 0.0
  %v414 = vadd.f32 %v412, %v413
  %v415 = vsel %vm72, %v315, 0.0
  %v416 = vadd.f32 %v414, %v415
  %v417 = vsel %vm72, %v316, 0.0
  %v418 = vadd.f32 %v416, %v417
  %v419 = vsel %vm72, %v317, 0.0
  %v420 = vadd.f32 %v418, %v419
  %v421 = vsel %vm72, %v318, 0.0
  %v422 = vadd.f32 %v420, %v421
  %v423 = vsel %vm72, %v319, 0.0
  %v424 = vadd.f32 %v422, %v423
  %v425 = vsel %vm72, %v320, 0.0
  %v426 = vadd.f32 %v424, %v425
  %v427 = vsel %vm72, %v321, 0.0
  %v428 = vadd.f32 %v426, %v427
  %v429 = vsel %vm72, %v322, 0.0
  %v430 = vadd.f32 %v428, %v429
  %v431 = vsel %vm72, %v323, 0.0
  %v432 = vadd.f32 %v430, %v431
  %v433 = vsel %vm72, %v324, 0.0
  %v434 = vadd.f32 %v432, %v433
  %v435 = vsel %vm72, %v325, 0.0
  %v436 = vadd.f32 %v434, %v435
  %v437 = vsel %vm72, %v326, 0.0
  %v438 = vadd.f32 %v436, %v437
  %v439 = vsel %vm72, %v327, 0.0
  %v440 = vadd.f32 %v438, %v439
  %v441 = vsel %vm72, %v328, 0.0
  %v442 = vadd.f32 %v440, %v441
  %v443 = vsel %vm72, %v329, 0.0
  %v444 = vadd.f32 %v442, %v443
  %v445 = vsel %vm72, %v330, 0.0
  %v446 = vadd.f32 %v444, %v445
  %v447 = vsel %vm72, %v331, 0.0
  %v448 = vadd.f32 %v446, %v447
  %v449 = vsel %vm72, %v332, 0.0
  %v450 = vadd.f32 %v448, %v449
  %v451 = vsel %vm72, %v333, 0.0
  %v452 = vadd.f32 %v450, %v451
  %v453 = vsel %vm72, %v334, 0.0
  %v454 = vadd.f32 %v452, %v453
  %v455 = vsel %vm72, %v335, 0.0
  %v456 = vadd.f32 %v454, %v455
  %v457 = vsel %vm72, %v336, 0.0
  %v458 = vadd.f32 %v456, %v457
  %v459 = vsel %vm72, %v337, 0.0
  %v460 = vadd.f32 %v458, %v459
  %v461 = vsel %vm72, %v338, 0.0
  %v462 = vadd.f32 %v460, %v461
  %v463 = vsel %vm72, %v339, 0.0
  %v464 = vadd.f32 %v462, %v463
  %v465 = vsel %vm72, %v340, 0.0
  %v466 = vadd.f32 %v464, %v465
  %v467 = vsel %vm72, %v341, 0.0
  %v468 = vadd.f32 %v466, %v467
  %v469 = vrot.slane %v468, 4
  %v470 = vadd.f32 %v468, %v469
  %v471 = vrot.slane %v470, 2
  %v472 = vadd.f32 %v470, %v471
  %v473 = vrot.slane %v472, 1
  %v474 = vadd.f32 %v472, %v473
  %p475 = scmp.eq.s32.totalorder 0, 0
  // Predicated region
  $region6: #{gen_block_forward.6} parent=0 // pred_check
    %p476 = pneg %p475
  $region7: #{gen_block_forward.6} parent=0 // pred_check_branch
    %478 = sbr.rel (%p476) target = $region9
  $region8: #{gen_block_forward.6} parent=0 // pred_region
    %vm479 = vcmask 24576
    %480 = vst.msk [vmem:[#allocation2] sm:$0x1] %vm479, 0.0
    %481 = vst.msk [vmem:[#allocation3] sm:$0x1] %vm479, 0.0
  $region9: #{gen_block_forward.6} parent=0 // pred_fallthru
    _
  %s482 = smul.u32 0, 512
  %s483 = scvt.s32.f32 %s482
  %s484 = sadd.f32 %s483, 512.0
  %v485 = vld [vmem:[#allocation2] sm:$0x1]
  %v486 = vsub.f32 %v213, %v485
  %v487 = vstv %s484
  %v488 = vrcp.pop %v487
  %v489 = vmul.f32 %v487, %v488
  %v490 = vsub.f32 1.0, %v489
  %v491 = vmul.f32 %v488, %v490
  %v492 = vadd.f32 %v488, %v491
  %vm493 = vweird.f32 %v487
  %vm494 = vweird.f32 %v488
  %vm495 = vmor %vm493, %vm494
  %v496 = vsel %vm495, %v488, %v492
  %v497 = vand.u32 2147483647, %v487
  %vm498 = vcmp.eq.f32.partialorder %v497, 8.507059e+37
  %v499 = vand.u32 %v487, 2147483648
  %v500 = vor.u32 1.1754944e-38, %v499
  %v501 = vsel %vm498, %v500, %v496
  %s502 = vtos %v501
  %s503 = smul.f32 512.0, %s502
  %v504 = vstv %s503
  %v505 = vmul.f32 %v486, %v504
  %v506 = vadd.f32 %v485, %v505
  %vm507 = vcmask 24576
  %508 = vst.msk [vmem:[#allocation2] sm:$0x1] %vm507, %v506
  %v509 = vld [vmem:[#allocation3] sm:$0x1]
  %v510 = vadd.f32 %v509, %v474
  %v511 = vmul.f32 %v486, %v486
  %s512 = smul.f32 %s483, 512.0
  %v513 = vstv %s484
  %v514 = vrcp.pop %v513
  %v515 = vmul.f32 %v513, %v514
  %v516 = vsub.f32 1.0, %v515
  %v517 = vmul.f32 %v514, %v516
  %v518 = vadd.f32 %v514, %v517
  %vm519 = vweird.f32 %v513
  %vm520 = vweird.f32 %v514
  %vm521 = vmor %vm519, %vm520
  %v522 = vsel %vm521, %v514, %v518
  %v523 = vand.u32 2147483647, %v513
  %vm524 = vcmp.eq.f32.partialorder %v523, 8.507059e+37
  %v525 = vand.u32 %v513, 2147483648
  %v526 = vor.u32 1.1754944e-38, %v525
  %v527 = vsel %vm524, %v526, %v522
  %s528 = vtos %v527
  %s529 = smul.f32 %s512, %s528
  %v530 = vstv %s529
  %v531 = vmul.f32 %v511, %v530
  %v532 = vadd.f32 %v510, %v531
  %533 = vst.msk [vmem:[#allocation3] sm:$0x1] %vm507, %v532
  // Predicated region
  $region10: #{gen_block_forward.6} parent=0 // pred_check
    %p534 = pneg %p475
  $region11: #{gen_block_forward.6} parent=0 // pred_check_branch
    %536 = sbr.rel (%p534) target = $region13
  $region12: #{gen_block_forward.6} parent=0 // pred_region
    %v537 = vld [vmem:[#allocation2] sm:$0x1]
    %538 = vst.msk [vmem:[%s1] sm:$0x1] %vm507, %v537
    %v539 = vld [vmem:[#allocation3] sm:$0x1]
    %v540 = vstv %s484
    %v541 = vrcp.pop %v540
    %v542 = vmul.f32 %v540, %v541
    %v543 = vsub.f32 1.0, %v542
    %v544 = vmul.f32 %v541, %v543
    %v545 = vadd.f32 %v541, %v544
    %vm546 = vweird.f32 %v540
    %vm547 = vweird.f32 %v541
    %vm548 = vmor %vm546, %vm547
    %v549 = vsel %vm548, %v541, %v545
    %v550 = vand.u32 2147483647, %v540
    %vm551 = vcmp.eq.f32.partialorder %v550, 8.507059e+37
    %v552 = vand.u32 %v540, 2147483648
    %v553 = vor.u32 1.1754944e-38, %v552
    %v554 = vsel %vm551, %v553, %v549
    %v555 = vmul.f32 %v539, %v554
    %556 = vst.msk [vmem:[%s1 + $0x1] sm:$0x1] %vm507, %v555
  $region13: #{gen_block_forward.6} parent=0 // pred_fallthru
    _
  // Predicated region
  $region14: #{gen_block_forward.6} parent=0 // pred_check
    _
  $region15: #{gen_block_forward.6} parent=0 // pred_check_branch
    %558 = sbr.rel (0) target = $region17
  $region16: #{gen_block_forward.6} parent=0 // pred_region
    _
  $region17: #{gen_block_forward.6} parent=0 // pred_fallthru
    _
  // Predicated region
  $region18: #{gen_block_forward.6} parent=0 // pred_check
    _
  $region19: #{gen_block_forward.6} parent=0 // pred_check_branch
    %560 = sbr.rel (0) target = $region21
  $region20: #{gen_block_forward.6} parent=0 // pred_region
    _
  $region21: #{gen_block_forward.6} parent=0 // pred_fallthru
    _

// kernel: gen_block_forward.8
$region0: #{gen_block_forward.8}
  #allocation0 [shape = 'u32[]', space=smem, size = 0x4, offset = 0x4, fixed_abs, tag = 'smem constant byte address 0x4 - core index']
  #allocation1 [shape = 'u32[72,128]{1,0:T(1,128)}', space=vmem, size = 0x9000, scoped, tag = 'internal scratch']
  #allocation2 [shape = 'f32[512,8]{1,0:T(8,128)}', space=vmem, size = 0x40000, scoped, tag = 'scratch operand']
  %s0 = inlined_call_operand.vmem [shape: bf16[2048,36], index: 0, kind: input, shape index: {}]
  %s1 = inlined_call_operand.vmem [shape: bf16[36,8], index: 1, kind: input, shape index: {}]
  %s2 = inlined_call_operand.vmem [shape: f32[1,8], index: 2, kind: input, shape index: {}]
  %s3 = inlined_call_operand.vmem [shape: f32[2048,8], index: 3, kind: output, shape index: {}]
  %s4 = sld [smem:[#allocation0]]
  $region53: #{gen_block_forward.8} parent=0
    _
  %s6 = ssub.s32 1, %s4
  %s7 = scalar_select 0, %s6, %s4
  loop: start=0, step=1, limit=6
  $region2: #{gen_block_forward.8} parent=0 // loop_pre_header
    _
  $region3: #{gen_block_forward.8} parent=0 // loop_header
    %s9 = sphi 0, %s13
    %p10 = scmp.ge.s32.totalorder %s9, 6
    %s16 = sphi 0, %s28
    %s17 = sphi 0, %s24
    %s18 = sphi 0, %s16
    %s19 = sphi 0, %s17
    %s20 = sphi 0, %s18
    %s21 = sphi 0, %s19
    %s33 = sphi 0, %s35
    %s36 = sphi 0, %s33
    %s37 = sphi 0, %s36
    %s53 = sphi 0, %s37
    %s59 = sphi 0, %s61
    %s62 = sphi 0, %s59
    %s63 = sphi 0, %s62
    %s79 = sphi 0, %s63
    %s83 = sphi 0, %s83
    %s85 = sphi 0, %s83
    %s86 = sphi 0, %s85
    %s100 = sphi 0, %s86
    %s106 = sphi 0, %s108
    %s109 = sphi 0, %s106
    %s110 = sphi 0, %s109
    %s126 = sphi 0, %s110
  $region4: #{gen_block_forward.8} parent=0 // loop_header_branch
    %12 = sbr.rel (%p10) target = $region8
  $region5: #{gen_block_forward.8} parent=0 // loop_body
    %s14 = ssub.s32 %s9, 1
    %s15 = ssub.s32 %s9, 2
    %s22 = sadd.s32 1, %s17
    %p23 = scmp.ge.s32.totalorder %s22, 1
    %s24 = scalar_select %p23, 0, %s22
    %s25 = sadd.s32 1, %s16
    %s26 = scalar_select %p23, %s25, %s16
    %p27 = scmp.ge.s32.totalorder %s26, 4
    %s28 = scalar_select %p27, 0, %s26
    %s29 = ssub.s32 %s16, %s28
    %s30 = ssub.s32 %s17, %s24
    %s31 = sor.u32 %s29, %s30
    %p32 = scmp.eq.s32.totalorder %s31, 0
    %s34 = sadd.s32 %s33, 1
    %s35 = scalar_select %p32, %s33, %s34
    %p38 = pneg %p32
    %p39 = scmp.eq.s32.totalorder %s9, 3
    %p40 = por %p38, %p39
    %p41 = scmp.ne.s32.totalorder %s33, %s36
    %p42 = scmp.eq.s32.totalorder %s9, 0
    %p43 = por %p41, %p42
    %p44 = scmp.ne.s32.totalorder %s33, %s36
    %p45 = scmp.eq.s32.totalorder %s14, 3
    %p46 = por %p44, %p45
    %p47 = scmp.ne.s32.totalorder %s36, %s37
    %p48 = scmp.eq.s32.totalorder %s14, 0
    %p49 = por %p47, %p48
    %p50 = scmp.ne.s32.totalorder %s36, %s37
    %p51 = scmp.eq.s32.totalorder %s15, 3
    %p52 = por %p50, %p51
    %p54 = scmp.ne.s32.totalorder %s37, %s53
    %p55 = scmp.eq.s32.totalorder %s15, 0
    %p56 = por %p54, %p55
    %s57 = ssub.s32 %s17, %s24
    %p58 = scmp.eq.s32.totalorder %s57, 0
    %s60 = sadd.s32 %s59, 1
    %s61 = scalar_select %p58, %s59, %s60
    %p64 = pneg %p58
    %p65 = scmp.eq.s32.totalorder %s9, 3
    %p66 = por %p64, %p65
    %p67 = scmp.ne.s32.totalorder %s59, %s62
    %p68 = scmp.eq.s32.totalorder %s9, 0
    %p69 = por %p67, %p68
    %p70 = scmp.ne.s32.totalorder %s59, %s62
    %p71 = scmp.eq.s32.totalorder %s14, 3
    %p72 = por %p70, %p71
    %p73 = scmp.ne.s32.totalorder %s62, %s63
    %p74 = scmp.eq.s32.totalorder %s14, 0
    %p75 = por %p73, %p74
    %p76 = scmp.ne.s32.totalorder %s62, %s63
    %p77 = scmp.eq.s32.totalorder %s15, 3
    %p78 = por %p76, %p77
    %p80 = scmp.ne.s32.totalorder %s63, %s79
    %p81 = scmp.eq.s32.totalorder %s15, 0
    %p82 = por %p80, %p81
    %s84 = sadd.s32 %s83, 1
    %p87 = scmp.eq.s32.totalorder %s9, 3
    %p88 = scmp.ne.s32.totalorder %s83, %s85
    %p89 = scmp.eq.s32.totalorder %s9, 0
    %p90 = por %p88, %p89
    %p91 = scmp.ne.s32.totalorder %s83, %s85
    %p92 = scmp.eq.s32.totalorder %s14, 3
    %p93 = por %p91, %p92
    %p94 = scmp.ne.s32.totalorder %s85, %s86
    %p95 = scmp.eq.s32.totalorder %s14, 0
    %p96 = por %p94, %p95
    %p97 = scmp.ne.s32.totalorder %s85, %s86
    %p98 = scmp.eq.s32.totalorder %s15, 3
    %p99 = por %p97, %p98
    %p101 = scmp.ne.s32.totalorder %s86, %s100
    %p102 = scmp.eq.s32.totalorder %s15, 0
    %p103 = por %p101, %p102
    %s104 = ssub.s32 %s16, %s28
    %p105 = scmp.eq.s32.totalorder %s104, 0
    %s107 = sadd.s32 %s106, 1
    %s108 = scalar_select %p105, %s106, %s107
    %p111 = pneg %p105
    %p112 = scmp.eq.s32.totalorder %s9, 3
    %p113 = por %p111, %p112
    %p114 = scmp.ne.s32.totalorder %s106, %s109
    %p115 = scmp.eq.s32.totalorder %s9, 0
    %p116 = por %p114, %p115
    %p117 = scmp.ne.s32.totalorder %s106, %s109
    %p118 = scmp.eq.s32.totalorder %s14, 3
    %p119 = por %p117, %p118
    %p120 = scmp.ne.s32.totalorder %s109, %s110
    %p121 = scmp.eq.s32.totalorder %s14, 0
    %p122 = por %p120, %p121
    %p123 = scmp.ne.s32.totalorder %s109, %s110
    %p124 = scmp.eq.s32.totalorder %s15, 3
    %p125 = por %p123, %p124
    %p127 = scmp.ne.s32.totalorder %s110, %s126
    %p128 = scmp.eq.s32.totalorder %s15, 0
    %p129 = por %p127, %p128
    %p130 = scmp.le.s32.totalorder 1, %s9
    %p131 = scmp.lt.s32.totalorder %s9, 5
    %p132 = pnand %p130, %p131
    %p133 = pneg %p132
    // Predicated region
    $region9: #{gen_block_forward.8} parent=5 // pred_check
      _
    $region10: #{gen_block_forward.8} parent=5 // pred_check_branch
      %135 = sbr.rel (%p132) target = $region12
    $region11: #{gen_block_forward.8} parent=5 // pred_region
      %s136 = ssub.s32 %s9, 1
      // Predicated region
      $region13: #{gen_block_forward.8} parent=11 // pred_check
        %p137 = pneg %p75
      $region14: #{gen_block_forward.8} parent=11 // pred_check_branch
        %139 = sbr.rel (%p137) target = $region16
      $region15: #{gen_block_forward.8} parent=11 // pred_region
        %s140 = smul.u32 5, %s19
        %p141 = scmp.lt.s32.totalorder %s140, 4
        %s142 = scalar_select %p141, %s140, 4
        %s143 = smul.addr %s142, 4
        %s144 = scalar_lea.vmem %s1, %s143
        %s145 = smul.u32 5, %s19
      $region16: #{gen_block_forward.8} parent=11 // pred_fallthru
        _
      // Predicated region
      $region17: #{gen_block_forward.8} parent=11 // pred_check
        %p146 = pneg %p96
      $region18: #{gen_block_forward.8} parent=11 // pred_check_branch
        %148 = sbr.rel (%p146) target = $region20
      $region19: #{gen_block_forward.8} parent=11 // pred_region
        _
      $region20: #{gen_block_forward.8} parent=11 // pred_fallthru
        _
    $region12: #{gen_block_forward.8} parent=5 // pred_fallthru
      _
    %p149 = scmp.lt.s32.totalorder %s9, 4
    // Predicated region
    $region21: #{gen_block_forward.8} parent=5 // pred_check
      %p150 = pneg %p149
    $region22: #{gen_block_forward.8} parent=5 // pred_check_branch
      %152 = sbr.rel (%p150) target = $region24
    $region23: #{gen_block_forward.8} parent=5 // pred_region
      // Predicated region
      $region25: #{gen_block_forward.8} parent=23 // pred_check
        %p153 = pneg %p43
      $region26: #{gen_block_forward.8} parent=23 // pred_check_branch
        %155 = sbr.rel (%p153) target = $region28
      $region27: #{gen_block_forward.8} parent=23 // pred_region
        %s156 = smul.u32 64, %s16
        %p157 = scmp.lt.s32.totalorder %s156, 255
        %s158 = scalar_select %p157, %s156, 255
        %p159 = scmp.lt.s32.totalorder %s17, 0
        %s160 = scalar_select %p159, %s17, 0
        %s161 = sadd.s32 %s160, %s158
        %s162 = smul.addr %s161, 4
        %s163 = scalar_lea.vmem %s0, %s162
        %s164 = smul.u32 64, %s16
      $region28: #{gen_block_forward.8} parent=23 // pred_fallthru
        _
    $region24: #{gen_block_forward.8} parent=5 // pred_fallthru
      _
    %p165 = scmp.le.s32.totalorder 1, %s9
    %p166 = scmp.lt.s32.totalorder %s9, 5
    %p167 = pnand %p165, %p166
    %p168 = pneg %p167
    // Predicated region
    $region29: #{gen_block_forward.8} parent=5 // pred_check
      _
    $region30: #{gen_block_forward.8} parent=5 // pred_check_branch
      %170 = sbr.rel (%p167) target = $region32
    $region31: #{gen_block_forward.8} parent=5 // pred_region
      %s171 = ssub.s32 %s9, 1
      %s172 = smul.u32 64, %s18
      %p173 = scmp.lt.s32.totalorder %s172, 255
      %s174 = scalar_select %p173, %s172, 255
      %p175 = scmp.lt.s32.totalorder %s19, 0
      %s176 = scalar_select %p175, %s19, 0
      %s177 = sadd.s32 %s176, %s174
      %s178 = smul.addr %s177, 4
      %s179 = scalar_lea.vmem %s0, %s178
      %p180 = pneg %p49
      %p181 = pneg %p46
      %s182 = smul.u32 5, %s19
      %p183 = scmp.lt.s32.totalorder %s182, 4
      %s184 = scalar_select %p183, %s182, 4
      %s185 = smul.addr %s184, 4
      %s186 = scalar_lea.vmem %s1, %s185
      %p187 = pneg %p75
      %p188 = pneg %p72
      %p189 = pneg %p96
      %p190 = pneg %p93
      %p191 = pneg %p122
      %p192 = pneg %p119
      %s193 = smul.u32 64, %s18
      %p194 = scmp.lt.s32.totalorder %s193, 255
      %s195 = scalar_select %p194, %s193, 255
      %s196 = smul.addr %s195, 8
      %s197 = scalar_lea.vmem %s3, %s196
      %s198 = smul.u32 64, %s18
      %p199 = scmp.lt.s32.totalorder %s198, 255
      %s200 = scalar_select %p199, %s198, 255
      %p201 = scmp.lt.s32.totalorder %s19, 0
      %s202 = scalar_select %p201, %s19, 0
      %s203 = sadd.s32 %s202, %s200
      %s204 = smul.addr %s203, 4
      %s205 = scalar_lea.vmem %s0, %s204
      %s206 = smul.u32 64, %s18
      %s207 = smul.u32 5, %s19
      %p208 = scmp.lt.s32.totalorder %s207, 4
      %s209 = scalar_select %p208, %s207, 4
      %s210 = smul.addr %s209, 4
      %s211 = scalar_lea.vmem %s1, %s210
      %s212 = smul.u32 5, %s19
      %s213 = smul.u32 64, %s18
      %p214 = scmp.lt.s32.totalorder %s213, 255
      %s215 = scalar_select %p214, %s213, 255
      %s216 = smul.addr %s215, 8
      %s217 = scalar_lea.vmem %s3, %s216
      %s218 = smul.u32 64, %s18
      %p220 = scmp.eq.s32.totalorder %s19, 0
      // Predicated region
      $region33: #{gen_block_forward.8} parent=31 // pred_check
        %p221 = pneg %p220
      $region34: #{gen_block_forward.8} parent=31 // pred_check_branch
        %223 = sbr.rel (%p221) target = $region36
      $region35: #{gen_block_forward.8} parent=31 // pred_region
        %v224 = vld [vmem:[%s2] sm:$0x1]
        %v226 = vperm.slane %v224, 0
        %vm228 = vcmask 64512
        %229 = vst.msk [vmem:[#allocation2] sm:$0xff] %vm228, %v226
        %230 = vst.msk [vmem:[#allocation2 + $0x8] sm:$0xff] %vm228, %v226
        %231 = vst.msk [vmem:[#allocation2 + $0x10] sm:$0xff] %vm228, %v226
        %232 = vst.msk [vmem:[#allocation2 + $0x18] sm:$0xff] %vm228, %v226
        %233 = vst.msk [vmem:[#allocation2 + $0x20] sm:$0xff] %vm228, %v226
        %234 = vst.msk [vmem:[#allocation2 + $0x28] sm:$0xff] %vm228, %v226
        %235 = vst.msk [vmem:[#allocation2 + $0x30] sm:$0xff] %vm228, %v226
        %236 = vst.msk [vmem:[#allocation2 + $0x38] sm:$0xff] %vm228, %v226
        %237 = vst.msk [vmem:[#allocation2 + $0x40] sm:$0xff] %vm228, %v226
        %238 = vst.msk [vmem:[#allocation2 + $0x48] sm:$0xff] %vm228, %v226
        %239 = vst.msk [vmem:[#allocation2 + $0x50] sm:$0xff] %vm228, %v226
        %240 = vst.msk [vmem:[#allocation2 + $0x58] sm:$0xff] %vm228, %v226
        %241 = vst.msk [vmem:[#allocation2 + $0x60] sm:$0xff] %vm228, %v226
        %242 = vst.msk [vmem:[#allocation2 + $0x68] sm:$0xff] %vm228, %v226
        %243 = vst.msk [vmem:[#allocation2 + $0x70] sm:$0xff] %vm228, %v226
        %244 = vst.msk [vmem:[#allocation2 + $0x78] sm:$0xff] %vm228, %v226
        %245 = vst.msk [vmem:[#allocation2 + $0x80] sm:$0xff] %vm228, %v226
        %246 = vst.msk [vmem:[#allocation2 + $0x88] sm:$0xff] %vm228, %v226
        %247 = vst.msk [vmem:[#allocation2 + $0x90] sm:$0xff] %vm228, %v226
        %248 = vst.msk [vmem:[#allocation2 + $0x98] sm:$0xff] %vm228, %v226
        %249 = vst.msk [vmem:[#allocation2 + $0xa0] sm:$0xff] %vm228, %v226
        %250 = vst.msk [vmem:[#allocation2 + $0xa8] sm:$0xff] %vm228, %v226
        %251 = vst.msk [vmem:[#allocation2 + $0xb0] sm:$0xff] %vm228, %v226
        %252 = vst.msk [vmem:[#allocation2 + $0xb8] sm:$0xff] %vm228, %v226
        %253 = vst.msk [vmem:[#allocation2 + $0xc0] sm:$0xff] %vm228, %v226
        %254 = vst.msk [vmem:[#allocation2 + $0xc8] sm:$0xff] %vm228, %v226
        %255 = vst.msk [vmem:[#allocation2 + $0xd0] sm:$0xff] %vm228, %v226
        %256 = vst.msk [vmem:[#allocation2 + $0xd8] sm:$0xff] %vm228, %v226
        %257 = vst.msk [vmem:[#allocation2 + $0xe0] sm:$0xff] %vm228, %v226
        %258 = vst.msk [vmem:[#allocation2 + $0xe8] sm:$0xff] %vm228, %v226
        %259 = vst.msk [vmem:[#allocation2 + $0xf0] sm:$0xff] %vm228, %v226
        %260 = vst.msk [vmem:[#allocation2 + $0xf8] sm:$0xff] %vm228, %v226
        %261 = vst.msk [vmem:[#allocation2 + $0x100] sm:$0xff] %vm228, %v226
        %262 = vst.msk [vmem:[#allocation2 + $0x108] sm:$0xff] %vm228, %v226
        %263 = vst.msk [vmem:[#allocation2 + $0x110] sm:$0xff] %vm228, %v226
        %264 = vst.msk [vmem:[#allocation2 + $0x118] sm:$0xff] %vm228, %v226
        %265 = vst.msk [vmem:[#allocation2 + $0x120] sm:$0xff] %vm228, %v226
        %266 = vst.msk [vmem:[#allocation2 + $0x128] sm:$0xff] %vm228, %v226
        %267 = vst.msk [vmem:[#allocation2 + $0x130] sm:$0xff] %vm228, %v226
        %268 = vst.msk [vmem:[#allocation2 + $0x138] sm:$0xff] %vm228, %v226
        %269 = vst.msk [vmem:[#allocation2 + $0x140] sm:$0xff] %vm228, %v226
        %270 = vst.msk [vmem:[#allocation2 + $0x148] sm:$0xff] %vm228, %v226
        %271 = vst.msk [vmem:[#allocation2 + $0x150] sm:$0xff] %vm228, %v226
        %272 = vst.msk [vmem:[#allocation2 + $0x158] sm:$0xff] %vm228, %v226
        %273 = vst.msk [vmem:[#allocation2 + $0x160] sm:$0xff] %vm228, %v226
        %274 = vst.msk [vmem:[#allocation2 + $0x168] sm:$0xff] %vm228, %v226
        %275 = vst.msk [vmem:[#allocation2 + $0x170] sm:$0xff] %vm228, %v226
        %276 = vst.msk [vmem:[#allocation2 + $0x178] sm:$0xff] %vm228, %v226
        %277 = vst.msk [vmem:[#allocation2 + $0x180] sm:$0xff] %vm228, %v226
        %278 = vst.msk [vmem:[#allocation2 + $0x188] sm:$0xff] %vm228, %v226
        %279 = vst.msk [vmem:[#allocation2 + $0x190] sm:$0xff] %vm228, %v226
        %280 = vst.msk [vmem:[#allocation2 + $0x198] sm:$0xff] %vm228, %v226
        %281 = vst.msk [vmem:[#allocation2 + $0x1a0] sm:$0xff] %vm228, %v226
        %282 = vst.msk [vmem:[#allocation2 + $0x1a8] sm:$0xff] %vm228, %v226
        %283 = vst.msk [vmem:[#allocation2 + $0x1b0] sm:$0xff] %vm228, %v226
        %284 = vst.msk [vmem:[#allocation2 + $0x1b8] sm:$0xff] %vm228, %v226
        %285 = vst.msk [vmem:[#allocation2 + $0x1c0] sm:$0xff] %vm228, %v226
        %286 = vst.msk [vmem:[#allocation2 + $0x1c8] sm:$0xff] %vm228, %v226
        %287 = vst.msk [vmem:[#allocation2 + $0x1d0] sm:$0xff] %vm228, %v226
        %288 = vst.msk [vmem:[#allocation2 + $0x1d8] sm:$0xff] %vm228, %v226
        %289 = vst.msk [vmem:[#allocation2 + $0x1e0] sm:$0xff] %vm228, %v226
        %290 = vst.msk [vmem:[#allocation2 + $0x1e8] sm:$0xff] %vm228, %v226
        %291 = vst.msk [vmem:[#allocation2 + $0x1f0] sm:$0xff] %vm228, %v226
        %292 = vst.msk [vmem:[#allocation2 + $0x1f8] sm:$0xff] %vm228, %v226
      $region36: #{gen_block_forward.8} parent=31 // pred_fallthru
        _
      %v293 = vld [vmem:[#allocation2] sm:$0xff]
      %v294 = vld [vmem:[#allocation2 + $0x8] sm:$0xff]
      %v295 = vld [vmem:[#allocation2 + $0x10] sm:$0xff]
      %v296 = vld [vmem:[#allocation2 + $0x18] sm:$0xff]
      %v297 = vld [vmem:[#allocation2 + $0x20] sm:$0xff]
      %v298 = vld [vmem:[#allocation2 + $0x28] sm:$0xff]
      %v299 = vld [vmem:[#allocation2 + $0x30] sm:$0xff]
      %v300 = vld [vmem:[#allocation2 + $0x38] sm:$0xff]
      %v301 = vld [vmem:[#allocation2 + $0x40] sm:$0xff]
      %v302 = vld [vmem:[#allocation2 + $0x48] sm:$0xff]
      %v303 = vld [vmem:[#allocation2 + $0x50] sm:$0xff]
      %v304 = vld [vmem:[#allocation2 + $0x58] sm:$0xff]
      %v305 = vld [vmem:[#allocation2 + $0x60] sm:$0xff]
      %v306 = vld [vmem:[#allocation2 + $0x68] sm:$0xff]
      %v307 = vld [vmem:[#allocation2 + $0x70] sm:$0xff]
      %v308 = vld [vmem:[#allocation2 + $0x78] sm:$0xff]
      %v309 = vld [vmem:[#allocation2 + $0x80] sm:$0xff]
      %v310 = vld [vmem:[#allocation2 + $0x88] sm:$0xff]
      %v311 = vld [vmem:[#allocation2 + $0x90] sm:$0xff]
      %v312 = vld [vmem:[#allocation2 + $0x98] sm:$0xff]
      %v313 = vld [vmem:[#allocation2 + $0xa0] sm:$0xff]
      %v314 = vld [vmem:[#allocation2 + $0xa8] sm:$0xff]
      %v315 = vld [vmem:[#allocation2 + $0xb0] sm:$0xff]
      %v316 = vld [vmem:[#allocation2 + $0xb8] sm:$0xff]
      %v317 = vld [vmem:[#allocation2 + $0xc0] sm:$0xff]
      %v318 = vld [vmem:[#allocation2 + $0xc8] sm:$0xff]
      %v319 = vld [vmem:[#allocation2 + $0xd0] sm:$0xff]
      %v320 = vld [vmem:[#allocation2 + $0xd8] sm:$0xff]
      %v321 = vld [vmem:[#allocation2 + $0xe0] sm:$0xff]
      %v322 = vld [vmem:[#allocation2 + $0xe8] sm:$0xff]
      %v323 = vld [vmem:[#allocation2 + $0xf0] sm:$0xff]
      %v324 = vld [vmem:[#allocation2 + $0xf8] sm:$0xff]
      %v325 = vld [vmem:[#allocation2 + $0x100] sm:$0xff]
      %v326 = vld [vmem:[#allocation2 + $0x108] sm:$0xff]
      %v327 = vld [vmem:[#allocation2 + $0x110] sm:$0xff]
      %v328 = vld [vmem:[#allocation2 + $0x118] sm:$0xff]
      %v329 = vld [vmem:[#allocation2 + $0x120] sm:$0xff]
      %v330 = vld [vmem:[#allocation2 + $0x128] sm:$0xff]
      %v331 = vld [vmem:[#allocation2 + $0x130] sm:$0xff]
      %v332 = vld [vmem:[#allocation2 + $0x138] sm:$0xff]
      %v333 = vld [vmem:[#allocation2 + $0x140] sm:$0xff]
      %v334 = vld [vmem:[#allocation2 + $0x148] sm:$0xff]
      %v335 = vld [vmem:[#allocation2 + $0x150] sm:$0xff]
      %v336 = vld [vmem:[#allocation2 + $0x158] sm:$0xff]
      %v337 = vld [vmem:[#allocation2 + $0x160] sm:$0xff]
      %v338 = vld [vmem:[#allocation2 + $0x168] sm:$0xff]
      %v339 = vld [vmem:[#allocation2 + $0x170] sm:$0xff]
      %v340 = vld [vmem:[#allocation2 + $0x178] sm:$0xff]
      %v341 = vld [vmem:[#allocation2 + $0x180] sm:$0xff]
      %v342 = vld [vmem:[#allocation2 + $0x188] sm:$0xff]
      %v343 = vld [vmem:[#allocation2 + $0x190] sm:$0xff]
      %v344 = vld [vmem:[#allocation2 + $0x198] sm:$0xff]
      %v345 = vld [vmem:[#allocation2 + $0x1a0] sm:$0xff]
      %v346 = vld [vmem:[#allocation2 + $0x1a8] sm:$0xff]
      %v347 = vld [vmem:[#allocation2 + $0x1b0] sm:$0xff]
      %v348 = vld [vmem:[#allocation2 + $0x1b8] sm:$0xff]
      %v349 = vld [vmem:[#allocation2 + $0x1c0] sm:$0xff]
      %v350 = vld [vmem:[#allocation2 + $0x1c8] sm:$0xff]
      %v351 = vld [vmem:[#allocation2 + $0x1d0] sm:$0xff]
      %v352 = vld [vmem:[#allocation2 + $0x1d8] sm:$0xff]
      %v353 = vld [vmem:[#allocation2 + $0x1e0] sm:$0xff]
      %v354 = vld [vmem:[#allocation2 + $0x1e8] sm:$0xff]
      %v355 = vld [vmem:[#allocation2 + $0x1f0] sm:$0xff]
      %v356 = vld [vmem:[#allocation2 + $0x1f8] sm:$0xff]
      %v357 = vld [vmem:[%s205] sm:$0xf]
      %v358 = vld [vmem:[%s205 + $0x4] sm:$0xf]
      %v359 = vld [vmem:[%s205 + $0x8] sm:$0xf]
      %v360 = vld [vmem:[%s205 + $0xc] sm:$0xf]
      %v361 = vld [vmem:[%s205 + $0x10] sm:$0xf]
      %v362 = vld [vmem:[%s205 + $0x14] sm:$0xf]
      %v363 = vld [vmem:[%s205 + $0x18] sm:$0xf]
      %v364 = vld [vmem:[%s205 + $0x1c] sm:$0xf]
      %v365 = vld [vmem:[%s205 + $0x20] sm:$0xf]
      %v366 = vld [vmem:[%s205 + $0x24] sm:$0xf]
      %v367 = vld [vmem:[%s205 + $0x28] sm:$0xf]
      %v368 = vld [vmem:[%s205 + $0x2c] sm:$0xf]
      %v369 = vld [vmem:[%s205 + $0x30] sm:$0xf]
      %v370 = vld [vmem:[%s205 + $0x34] sm:$0xf]
      %v371 = vld [vmem:[%s205 + $0x38] sm:$0xf]
      %v372 = vld [vmem:[%s205 + $0x3c] sm:$0xf]
      %v373 = vld [vmem:[%s205 + $0x40] sm:$0xf]
      %v374 = vld [vmem:[%s205 + $0x44] sm:$0xf]
      %v375 = vld [vmem:[%s205 + $0x48] sm:$0xf]
      %v376 = vld [vmem:[%s205 + $0x4c] sm:$0xf]
      %v377 = vld [vmem:[%s205 + $0x50] sm:$0xf]
      %v378 = vld [vmem:[%s205 + $0x54] sm:$0xf]
      %v379 = vld [vmem:[%s205 + $0x58] sm:$0xf]
      %v380 = vld [vmem:[%s205 + $0x5c] sm:$0xf]
      %v381 = vld [vmem:[%s205 + $0x60] sm:$0xf]
      %v382 = vld [vmem:[%s205 + $0x64] sm:$0xf]
      %v383 = vld [vmem:[%s205 + $0x68] sm:$0xf]
      %v384 = vld [vmem:[%s205 + $0x6c] sm:$0xf]
      %v385 = vld [vmem:[%s205 + $0x70] sm:$0xf]
      %v386 = vld [vmem:[%s205 + $0x74] sm:$0xf]
      %v387 = vld [vmem:[%s205 + $0x78] sm:$0xf]
      %v388 = vld [vmem:[%s205 + $0x7c] sm:$0xf]
      %v389 = vld [vmem:[%s205 + $0x80] sm:$0xf]
      %v390 = vld [vmem:[%s205 + $0x84] sm:$0xf]
      %v391 = vld [vmem:[%s205 + $0x88] sm:$0xf]
      %v392 = vld [vmem:[%s205 + $0x8c] sm:$0xf]
      %v393 = vld [vmem:[%s205 + $0x90] sm:$0xf]
      %v394 = vld [vmem:[%s205 + $0x94] sm:$0xf]
      %v395 = vld [vmem:[%s205 + $0x98] sm:$0xf]
      %v396 = vld [vmem:[%s205 + $0x9c] sm:$0xf]
      %v397 = vld [vmem:[%s205 + $0xa0] sm:$0xf]
      %v398 = vld [vmem:[%s205 + $0xa4] sm:$0xf]
      %v399 = vld [vmem:[%s205 + $0xa8] sm:$0xf]
      %v400 = vld [vmem:[%s205 + $0xac] sm:$0xf]
      %v401 = vld [vmem:[%s205 + $0xb0] sm:$0xf]
      %v402 = vld [vmem:[%s205 + $0xb4] sm:$0xf]
      %v403 = vld [vmem:[%s205 + $0xb8] sm:$0xf]
      %v404 = vld [vmem:[%s205 + $0xbc] sm:$0xf]
      %v405 = vld [vmem:[%s205 + $0xc0] sm:$0xf]
      %v406 = vld [vmem:[%s205 + $0xc4] sm:$0xf]
      %v407 = vld [vmem:[%s205 + $0xc8] sm:$0xf]
      %v408 = vld [vmem:[%s205 + $0xcc] sm:$0xf]
      %v409 = vld [vmem:[%s205 + $0xd0] sm:$0xf]
      %v410 = vld [vmem:[%s205 + $0xd4] sm:$0xf]
      %v411 = vld [vmem:[%s205 + $0xd8] sm:$0xf]
      %v412 = vld [vmem:[%s205 + $0xdc] sm:$0xf]
      %v413 = vld [vmem:[%s205 + $0xe0] sm:$0xf]
      %v414 = vld [vmem:[%s205 + $0xe4] sm:$0xf]
      %v415 = vld [vmem:[%s205 + $0xe8] sm:$0xf]
      %v416 = vld [vmem:[%s205 + $0xec] sm:$0xf]
      %v417 = vld [vmem:[%s205 + $0xf0] sm:$0xf]
      %v418 = vld [vmem:[%s205 + $0xf4] sm:$0xf]
      %v419 = vld [vmem:[%s205 + $0xf8] sm:$0xf]
      %v420 = vld [vmem:[%s205 + $0xfc] sm:$0xf]
      %v421 = vld [vmem:[%s211] sm:$0xf]
      %v422 = vld [vmem:[%s211 + $0x4] sm:$0xf]
      %v423 = vld [vmem:[%s211 + $0x8] sm:$0xf]
      %v424 = vld [vmem:[%s211 + $0xc] sm:$0xf]
      %v425 = vld [vmem:[%s211 + $0x10] sm:$0x3]
      %v490 = vunpack.c.l.b16 %v357
      %v491 = vunpack.c.l.b16 %v358
      %v492 = vunpack.c.l.b16 %v359
      %v493 = vunpack.c.l.b16 %v360
      %v494 = vunpack.c.l.b16 %v361
      %v495 = vunpack.c.l.b16 %v362
      %v496 = vunpack.c.l.b16 %v363
      %v497 = vunpack.c.l.b16 %v364
      %v498 = vunpack.c.l.b16 %v365
      %v499 = vunpack.c.l.b16 %v366
      %v500 = vunpack.c.l.b16 %v367
      %v501 = vunpack.c.l.b16 %v368
      %v502 = vunpack.c.l.b16 %v369
      %v503 = vunpack.c.l.b16 %v370
      %v504 = vunpack.c.l.b16 %v371
      %v505 = vunpack.c.l.b16 %v372
      %v506 = vunpack.c.l.b16 %v373
      %v507 = vunpack.c.l.b16 %v374
      %v508 = vunpack.c.l.b16 %v375
      %v509 = vunpack.c.l.b16 %v376
      %v510 = vunpack.c.l.b16 %v377
      %v511 = vunpack.c.l.b16 %v378
      %v512 = vunpack.c.l.b16 %v379
      %v513 = vunpack.c.l.b16 %v380
      %v514 = vunpack.c.l.b16 %v381
      %v515 = vunpack.c.l.b16 %v382
      %v516 = vunpack.c.l.b16 %v383
      %v517 = vunpack.c.l.b16 %v384
      %v518 = vunpack.c.l.b16 %v385
      %v519 = vunpack.c.l.b16 %v386
      %v520 = vunpack.c.l.b16 %v387
      %v521 = vunpack.c.l.b16 %v388
      %v522 = vunpack.c.l.b16 %v389
      %v523 = vunpack.c.l.b16 %v390
      %v524 = vunpack.c.l.b16 %v391
      %v525 = vunpack.c.l.b16 %v392
      %v526 = vunpack.c.l.b16 %v393
      %v527 = vunpack.c.l.b16 %v394
      %v528 = vunpack.c.l.b16 %v395
      %v529 = vunpack.c.l.b16 %v396
      %v530 = vunpack.c.l.b16 %v397
      %v531 = vunpack.c.l.b16 %v398
      %v532 = vunpack.c.l.b16 %v399
      %v533 = vunpack.c.l.b16 %v400
      %v534 = vunpack.c.l.b16 %v401
      %v535 = vunpack.c.l.b16 %v402
      %v536 = vunpack.c.l.b16 %v403
      %v537 = vunpack.c.l.b16 %v404
      %v538 = vunpack.c.l.b16 %v405
      %v539 = vunpack.c.l.b16 %v406
      %v540 = vunpack.c.l.b16 %v407
      %v541 = vunpack.c.l.b16 %v408
      %v542 = vunpack.c.l.b16 %v409
      %v543 = vunpack.c.l.b16 %v410
      %v544 = vunpack.c.l.b16 %v411
      %v545 = vunpack.c.l.b16 %v412
      %v546 = vunpack.c.l.b16 %v413
      %v547 = vunpack.c.l.b16 %v414
      %v548 = vunpack.c.l.b16 %v415
      %v549 = vunpack.c.l.b16 %v416
      %v550 = vunpack.c.l.b16 %v417
      %v551 = vunpack.c.l.b16 %v418
      %v552 = vunpack.c.l.b16 %v419
      %v553 = vunpack.c.l.b16 %v420
      %v554 = vpack.c.b16 %v491, %v490
      %v555 = vpack.c.b16 %v493, %v492
      %v556 = vpack.c.b16 %v495, %v494
      %v557 = vpack.c.b16 %v497, %v496
      %v558 = vpack.c.b16 %v499, %v498
      %v559 = vpack.c.b16 %v501, %v500
      %v560 = vpack.c.b16 %v503, %v502
      %v561 = vpack.c.b16 %v505, %v504
      %v562 = vpack.c.b16 %v507, %v506
      %v563 = vpack.c.b16 %v509, %v508
      %v564 = vpack.c.b16 %v511, %v510
      %v565 = vpack.c.b16 %v513, %v512
      %v566 = vpack.c.b16 %v515, %v514
      %v567 = vpack.c.b16 %v517, %v516
      %v568 = vpack.c.b16 %v519, %v518
      %v569 = vpack.c.b16 %v521, %v520
      %v570 = vpack.c.b16 %v523, %v522
      %v571 = vpack.c.b16 %v525, %v524
      %v572 = vpack.c.b16 %v527, %v526
      %v573 = vpack.c.b16 %v529, %v528
      %v574 = vpack.c.b16 %v531, %v530
      %v575 = vpack.c.b16 %v533, %v532
      %v576 = vpack.c.b16 %v535, %v534
      %v577 = vpack.c.b16 %v537, %v536
      %v578 = vpack.c.b16 %v539, %v538
      %v579 = vpack.c.b16 %v541, %v540
      %v580 = vpack.c.b16 %v543, %v542
      %v581 = vpack.c.b16 %v545, %v544
      %v582 = vpack.c.b16 %v547, %v546
      %v583 = vpack.c.b16 %v549, %v548
      %v584 = vpack.c.b16 %v551, %v550
      %v585 = vpack.c.b16 %v553, %v552
      %v591 = vunpack.c.l.b16 %v421
      %v592 = vunpack.c.l.b16 %v422
      %v593 = vunpack.c.l.b16 %v423
      %v594 = vunpack.c.l.b16 %v424
      %v595 = vunpack.c.l.b16 %v425
      %v596 = vpack.c.b16 %v592, %v591
      %v597 = vpack.c.b16 %v594, %v593
      %v598 = vpack.c.b16 %v595, %v595
      %vm601 = vcmask 293888
      %v603 = vsel %vm601, %v554, 0
      %v606 = vsel %vm601, %v555, 0
      %v609 = vsel %vm601, %v556, 0
      %v612 = vsel %vm601, %v557, 0
      %v615 = vsel %vm601, %v558, 0
      %v618 = vsel %vm601, %v559, 0
      %v621 = vsel %vm601, %v560, 0
      %v624 = vsel %vm601, %v561, 0
      %v627 = vsel %vm601, %v562, 0
      %v630 = vsel %vm601, %v563, 0
      %v633 = vsel %vm601, %v564, 0
      %v636 = vsel %vm601, %v565, 0
      %v639 = vsel %vm601, %v566, 0
      %v642 = vsel %vm601, %v567, 0
      %v645 = vsel %vm601, %v568, 0
      %v648 = vsel %vm601, %v569, 0
      %v651 = vsel %vm601, %v570, 0
      %v654 = vsel %vm601, %v571, 0
      %v657 = vsel %vm601, %v572, 0
      %v660 = vsel %vm601, %v573, 0
      %v663 = vsel %vm601, %v574, 0
      %v666 = vsel %vm601, %v575, 0
      %v669 = vsel %vm601, %v576, 0
      %v672 = vsel %vm601, %v577, 0
      %v675 = vsel %vm601, %v578, 0
      %v678 = vsel %vm601, %v579, 0
      %v681 = vsel %vm601, %v580, 0
      %v684 = vsel %vm601, %v581, 0
      %v687 = vsel %vm601, %v582, 0
      %v690 = vsel %vm601, %v583, 0
      %v693 = vsel %vm601, %v584, 0
      %v696 = vsel %vm601, %v585, 0
      %vm698 = vcmask 1041408
      %v700 = vsel %vm698, %v598, 0
      %702 = vmatpush.bf16.msra.mxu0 0
      %703 = vmatpush.bf16.msra.mxu0 0
      %704 = vmatpush.bf16.msra.mxu0 0
      %705 = vmatpush.bf16.msra.mxu0 0
      %706 = vmatpush.bf16.msra.mxu0 0
      %707 = vmatpush.bf16.msra.mxu0 %v700
      %708 = vmatpush.bf16.msra.mxu0 %v597
      %709 = vmatpush.bf16.msra.mxu0 %v596
      %710 = vmatmul.bf16.gmra.mxu0 %v603
      %v711 = vpop.f32.mrf.mxu0
      %v712 = vadd.f32 0.0, %v711
      %v713 = vpop.f32.mrf.mxu0
      %v714 = vadd.f32 0.0, %v713
      %715 = vmatmul.bf16.gmra.mxu0 %v606
      %v716 = vpop.f32.mrf.mxu0
      %v717 = vadd.f32 0.0, %v716
      %v718 = vpop.f32.mrf.mxu0
      %v719 = vadd.f32 0.0, %v718
      %720 = vmatmul.bf16.gmra.mxu0 %v609
      %v721 = vpop.f32.mrf.mxu0
      %v722 = vadd.f32 0.0, %v721
      %v723 = vpop.f32.mrf.mxu0
      %v724 = vadd.f32 0.0, %v723
      %725 = vmatmul.bf16.gmra.mxu0 %v612
      %v726 = vpop.f32.mrf.mxu0
      %v727 = vadd.f32 0.0, %v726
      %v728 = vpop.f32.mrf.mxu0
      %v729 = vadd.f32 0.0, %v728
      %730 = vmatmul.bf16.gmra.mxu0 %v615
      %v731 = vpop.f32.mrf.mxu0
      %v732 = vadd.f32 0.0, %v731
      %v733 = vpop.f32.mrf.mxu0
      %v734 = vadd.f32 0.0, %v733
      %735 = vmatmul.bf16.gmra.mxu0 %v618
      %v736 = vpop.f32.mrf.mxu0
      %v737 = vadd.f32 0.0, %v736
      %v738 = vpop.f32.mrf.mxu0
      %v739 = vadd.f32 0.0, %v738
      %740 = vmatmul.bf16.gmra.mxu0 %v621
      %v741 = vpop.f32.mrf.mxu0
      %v742 = vadd.f32 0.0, %v741
      %v743 = vpop.f32.mrf.mxu0
      %v744 = vadd.f32 0.0, %v743
      %745 = vmatmul.bf16.gmra.mxu0 %v624
      %v746 = vpop.f32.mrf.mxu0
      %v747 = vadd.f32 0.0, %v746
      %v748 = vpop.f32.mrf.mxu0
      %v749 = vadd.f32 0.0, %v748
      %750 = vmatmul.bf16.gmra.mxu0 %v627
      %v751 = vpop.f32.mrf.mxu0
      %v752 = vadd.f32 0.0, %v751
      %v753 = vpop.f32.mrf.mxu0
      %v754 = vadd.f32 0.0, %v753
      %755 = vmatmul.bf16.gmra.mxu0 %v630
      %v756 = vpop.f32.mrf.mxu0
      %v757 = vadd.f32 0.0, %v756
      %v758 = vpop.f32.mrf.mxu0
      %v759 = vadd.f32 0.0, %v758
      %760 = vmatmul.bf16.gmra.mxu0 %v633
      %v761 = vpop.f32.mrf.mxu0
      %v762 = vadd.f32 0.0, %v761
      %v763 = vpop.f32.mrf.mxu0
      %v764 = vadd.f32 0.0, %v763
      %765 = vmatmul.bf16.gmra.mxu0 %v636
      %v766 = vpop.f32.mrf.mxu0
      %v767 = vadd.f32 0.0, %v766
      %v768 = vpop.f32.mrf.mxu0
      %v769 = vadd.f32 0.0, %v768
      %770 = vmatmul.bf16.gmra.mxu0 %v639
      %v771 = vpop.f32.mrf.mxu0
      %v772 = vadd.f32 0.0, %v771
      %v773 = vpop.f32.mrf.mxu0
      %v774 = vadd.f32 0.0, %v773
      %775 = vmatmul.bf16.gmra.mxu0 %v642
      %v776 = vpop.f32.mrf.mxu0
      %v777 = vadd.f32 0.0, %v776
      %v778 = vpop.f32.mrf.mxu0
      %v779 = vadd.f32 0.0, %v778
      %780 = vmatmul.bf16.gmra.mxu0 %v645
      %v781 = vpop.f32.mrf.mxu0
      %v782 = vadd.f32 0.0, %v781
      %v783 = vpop.f32.mrf.mxu0
      %v784 = vadd.f32 0.0, %v783
      %785 = vmatmul.bf16.gmra.mxu0 %v648
      %v786 = vpop.f32.mrf.mxu0
      %v787 = vadd.f32 0.0, %v786
      %v788 = vpop.f32.mrf.mxu0
      %v789 = vadd.f32 0.0, %v788
      %790 = vmatmul.bf16.gmra.mxu0 %v651
      %v791 = vpop.f32.mrf.mxu0
      %v792 = vadd.f32 0.0, %v791
      %v793 = vpop.f32.mrf.mxu0
      %v794 = vadd.f32 0.0, %v793
      %795 = vmatmul.bf16.gmra.mxu0 %v654
      %v796 = vpop.f32.mrf.mxu0
      %v797 = vadd.f32 0.0, %v796
      %v798 = vpop.f32.mrf.mxu0
      %v799 = vadd.f32 0.0, %v798
      %800 = vmatmul.bf16.gmra.mxu0 %v657
      %v801 = vpop.f32.mrf.mxu0
      %v802 = vadd.f32 0.0, %v801
      %v803 = vpop.f32.mrf.mxu0
      %v804 = vadd.f32 0.0, %v803
      %805 = vmatmul.bf16.gmra.mxu0 %v660
      %v806 = vpop.f32.mrf.mxu0
      %v807 = vadd.f32 0.0, %v806
      %v808 = vpop.f32.mrf.mxu0
      %v809 = vadd.f32 0.0, %v808
      %810 = vmatmul.bf16.gmra.mxu0 %v663
      %v811 = vpop.f32.mrf.mxu0
      %v812 = vadd.f32 0.0, %v811
      %v813 = vpop.f32.mrf.mxu0
      %v814 = vadd.f32 0.0, %v813
      %815 = vmatmul.bf16.gmra.mxu0 %v666
      %v816 = vpop.f32.mrf.mxu0
      %v817 = vadd.f32 0.0, %v816
      %v818 = vpop.f32.mrf.mxu0
      %v819 = vadd.f32 0.0, %v818
      %820 = vmatmul.bf16.gmra.mxu0 %v669
      %v821 = vpop.f32.mrf.mxu0
      %v822 = vadd.f32 0.0, %v821
      %v823 = vpop.f32.mrf.mxu0
      %v824 = vadd.f32 0.0, %v823
      %825 = vmatmul.bf16.gmra.mxu0 %v672
      %v826 = vpop.f32.mrf.mxu0
      %v827 = vadd.f32 0.0, %v826
      %v828 = vpop.f32.mrf.mxu0
      %v829 = vadd.f32 0.0, %v828
      %830 = vmatmul.bf16.gmra.mxu0 %v675
      %v831 = vpop.f32.mrf.mxu0
      %v832 = vadd.f32 0.0, %v831
      %v833 = vpop.f32.mrf.mxu0
      %v834 = vadd.f32 0.0, %v833
      %835 = vmatmul.bf16.gmra.mxu0 %v678
      %v836 = vpop.f32.mrf.mxu0
      %v837 = vadd.f32 0.0, %v836
      %v838 = vpop.f32.mrf.mxu0
      %v839 = vadd.f32 0.0, %v838
      %840 = vmatmul.bf16.gmra.mxu0 %v681
      %v841 = vpop.f32.mrf.mxu0
      %v842 = vadd.f32 0.0, %v841
      %v843 = vpop.f32.mrf.mxu0
      %v844 = vadd.f32 0.0, %v843
      %845 = vmatmul.bf16.gmra.mxu0 %v684
      %v846 = vpop.f32.mrf.mxu0
      %v847 = vadd.f32 0.0, %v846
      %v848 = vpop.f32.mrf.mxu0
      %v849 = vadd.f32 0.0, %v848
      %850 = vmatmul.bf16.gmra.mxu0 %v687
      %v851 = vpop.f32.mrf.mxu0
      %v852 = vadd.f32 0.0, %v851
      %v853 = vpop.f32.mrf.mxu0
      %v854 = vadd.f32 0.0, %v853
      %855 = vmatmul.bf16.gmra.mxu0 %v690
      %v856 = vpop.f32.mrf.mxu0
      %v857 = vadd.f32 0.0, %v856
      %v858 = vpop.f32.mrf.mxu0
      %v859 = vadd.f32 0.0, %v858
      %860 = vmatmul.bf16.gmra.mxu0 %v693
      %v861 = vpop.f32.mrf.mxu0
      %v862 = vadd.f32 0.0, %v861
      %v863 = vpop.f32.mrf.mxu0
      %v864 = vadd.f32 0.0, %v863
      %865 = vmatmul.bf16.gmra.mxu0 %v696
      %v866 = vpop.f32.mrf.mxu0
      %v867 = vadd.f32 0.0, %v866
      %v868 = vpop.f32.mrf.mxu0
      %v869 = vadd.f32 0.0, %v868
      %870 = vdwg.mxu0
      %v871 = vadd.f32 %v293, %v712
      %v872 = vadd.f32 %v294, %v714
      %v873 = vadd.f32 %v295, %v717
      %v874 = vadd.f32 %v296, %v719
      %v875 = vadd.f32 %v297, %v722
      %v876 = vadd.f32 %v298, %v724
      %v877 = vadd.f32 %v299, %v727
      %v878 = vadd.f32 %v300, %v729
      %v879 = vadd.f32 %v301, %v732
      %v880 = vadd.f32 %v302, %v734
      %v881 = vadd.f32 %v303, %v737
      %v882 = vadd.f32 %v304, %v739
      %v883 = vadd.f32 %v305, %v742
      %v884 = vadd.f32 %v306, %v744
      %v885 = vadd.f32 %v307, %v747
      %v886 = vadd.f32 %v308, %v749
      %v887 = vadd.f32 %v309, %v752
      %v888 = vadd.f32 %v310, %v754
      %v889 = vadd.f32 %v311, %v757
      %v890 = vadd.f32 %v312, %v759
      %v891 = vadd.f32 %v313, %v762
      %v892 = vadd.f32 %v314, %v764
      %v893 = vadd.f32 %v315, %v767
      %v894 = vadd.f32 %v316, %v769
      %v895 = vadd.f32 %v317, %v772
      %v896 = vadd.f32 %v318, %v774
      %v897 = vadd.f32 %v319, %v777
      %v898 = vadd.f32 %v320, %v779
      %v899 = vadd.f32 %v321, %v782
      %v900 = vadd.f32 %v322, %v784
      %v901 = vadd.f32 %v323, %v787
      %v902 = vadd.f32 %v324, %v789
      %v903 = vadd.f32 %v325, %v792
      %v904 = vadd.f32 %v326, %v794
      %v905 = vadd.f32 %v327, %v797
      %v906 = vadd.f32 %v328, %v799
      %v907 = vadd.f32 %v329, %v802
      %v908 = vadd.f32 %v330, %v804
      %v909 = vadd.f32 %v331, %v807
      %v910 = vadd.f32 %v332, %v809
      %v911 = vadd.f32 %v333, %v812
      %v912 = vadd.f32 %v334, %v814
      %v913 = vadd.f32 %v335, %v817
      %v914 = vadd.f32 %v336, %v819
      %v915 = vadd.f32 %v337, %v822
      %v916 = vadd.f32 %v338, %v824
      %v917 = vadd.f32 %v339, %v827
      %v918 = vadd.f32 %v340, %v829
      %v919 = vadd.f32 %v341, %v832
      %v920 = vadd.f32 %v342, %v834
      %v921 = vadd.f32 %v343, %v837
      %v922 = vadd.f32 %v344, %v839
      %v923 = vadd.f32 %v345, %v842
      %v924 = vadd.f32 %v346, %v844
      %v925 = vadd.f32 %v347, %v847
      %v926 = vadd.f32 %v348, %v849
      %v927 = vadd.f32 %v349, %v852
      %v928 = vadd.f32 %v350, %v854
      %v929 = vadd.f32 %v351, %v857
      %v930 = vadd.f32 %v352, %v859
      %v931 = vadd.f32 %v353, %v862
      %v932 = vadd.f32 %v354, %v864
      %v933 = vadd.f32 %v355, %v867
      %v934 = vadd.f32 %v356, %v869
      %vm935 = vcmask 64512
      %936 = vst.msk [vmem:[#allocation2] sm:$0xff] %vm935, %v871
      %937 = vst.msk [vmem:[#allocation2 + $0x8] sm:$0xff] %vm935, %v872
      %938 = vst.msk [vmem:[#allocation2 + $0x10] sm:$0xff] %vm935, %v873
      %939 = vst.msk [vmem:[#allocation2 + $0x18] sm:$0xff] %vm935, %v874
      %940 = vst.msk [vmem:[#allocation2 + $0x20] sm:$0xff] %vm935, %v875
      %941 = vst.msk [vmem:[#allocation2 + $0x28] sm:$0xff] %vm935, %v876
      %942 = vst.msk [vmem:[#allocation2 + $0x30] sm:$0xff] %vm935, %v877
      %943 = vst.msk [vmem:[#allocation2 + $0x38] sm:$0xff] %vm935, %v878
      %944 = vst.msk [vmem:[#allocation2 + $0x40] sm:$0xff] %vm935, %v879
      %945 = vst.msk [vmem:[#allocation2 + $0x48] sm:$0xff] %vm935, %v880
      %946 = vst.msk [vmem:[#allocation2 + $0x50] sm:$0xff] %vm935, %v881
      %947 = vst.msk [vmem:[#allocation2 + $0x58] sm:$0xff] %vm935, %v882
      %948 = vst.msk [vmem:[#allocation2 + $0x60] sm:$0xff] %vm935, %v883
      %949 = vst.msk [vmem:[#allocation2 + $0x68] sm:$0xff] %vm935, %v884
      %950 = vst.msk [vmem:[#allocation2 + $0x70] sm:$0xff] %vm935, %v885
      %951 = vst.msk [vmem:[#allocation2 + $0x78] sm:$0xff] %vm935, %v886
      %952 = vst.msk [vmem:[#allocation2 + $0x80] sm:$0xff] %vm935, %v887
      %953 = vst.msk [vmem:[#allocation2 + $0x88] sm:$0xff] %vm935, %v888
      %954 = vst.msk [vmem:[#allocation2 + $0x90] sm:$0xff] %vm935, %v889
      %955 = vst.msk [vmem:[#allocation2 + $0x98] sm:$0xff] %vm935, %v890
      %956 = vst.msk [vmem:[#allocation2 + $0xa0] sm:$0xff] %vm935, %v891
      %957 = vst.msk [vmem:[#allocation2 + $0xa8] sm:$0xff] %vm935, %v892
      %958 = vst.msk [vmem:[#allocation2 + $0xb0] sm:$0xff] %vm935, %v893
      %959 = vst.msk [vmem:[#allocation2 + $0xb8] sm:$0xff] %vm935, %v894
      %960 = vst.msk [vmem:[#allocation2 + $0xc0] sm:$0xff] %vm935, %v895
      %961 = vst.msk [vmem:[#allocation2 + $0xc8] sm:$0xff] %vm935, %v896
      %962 = vst.msk [vmem:[#allocation2 + $0xd0] sm:$0xff] %vm935, %v897
      %963 = vst.msk [vmem:[#allocation2 + $0xd8] sm:$0xff] %vm935, %v898
      %964 = vst.msk [vmem:[#allocation2 + $0xe0] sm:$0xff] %vm935, %v899
      %965 = vst.msk [vmem:[#allocation2 + $0xe8] sm:$0xff] %vm935, %v900
      %966 = vst.msk [vmem:[#allocation2 + $0xf0] sm:$0xff] %vm935, %v901
      %967 = vst.msk [vmem:[#allocation2 + $0xf8] sm:$0xff] %vm935, %v902
      %968 = vst.msk [vmem:[#allocation2 + $0x100] sm:$0xff] %vm935, %v903
      %969 = vst.msk [vmem:[#allocation2 + $0x108] sm:$0xff] %vm935, %v904
      %970 = vst.msk [vmem:[#allocation2 + $0x110] sm:$0xff] %vm935, %v905
      %971 = vst.msk [vmem:[#allocation2 + $0x118] sm:$0xff] %vm935, %v906
      %972 = vst.msk [vmem:[#allocation2 + $0x120] sm:$0xff] %vm935, %v907
      %973 = vst.msk [vmem:[#allocation2 + $0x128] sm:$0xff] %vm935, %v908
      %974 = vst.msk [vmem:[#allocation2 + $0x130] sm:$0xff] %vm935, %v909
      %975 = vst.msk [vmem:[#allocation2 + $0x138] sm:$0xff] %vm935, %v910
      %976 = vst.msk [vmem:[#allocation2 + $0x140] sm:$0xff] %vm935, %v911
      %977 = vst.msk [vmem:[#allocation2 + $0x148] sm:$0xff] %vm935, %v912
      %978 = vst.msk [vmem:[#allocation2 + $0x150] sm:$0xff] %vm935, %v913
      %979 = vst.msk [vmem:[#allocation2 + $0x158] sm:$0xff] %vm935, %v914
      %980 = vst.msk [vmem:[#allocation2 + $0x160] sm:$0xff] %vm935, %v915
      %981 = vst.msk [vmem:[#allocation2 + $0x168] sm:$0xff] %vm935, %v916
      %982 = vst.msk [vmem:[#allocation2 + $0x170] sm:$0xff] %vm935, %v917
      %983 = vst.msk [vmem:[#allocation2 + $0x178] sm:$0xff] %vm935, %v918
      %984 = vst.msk [vmem:[#allocation2 + $0x180] sm:$0xff] %vm935, %v919
      %985 = vst.msk [vmem:[#allocation2 + $0x188] sm:$0xff] %vm935, %v920
      %986 = vst.msk [vmem:[#allocation2 + $0x190] sm:$0xff] %vm935, %v921
      %987 = vst.msk [vmem:[#allocation2 + $0x198] sm:$0xff] %vm935, %v922
      %988 = vst.msk [vmem:[#allocation2 + $0x1a0] sm:$0xff] %vm935, %v923
      %989 = vst.msk [vmem:[#allocation2 + $0x1a8] sm:$0xff] %vm935, %v924
      %990 = vst.msk [vmem:[#allocation2 + $0x1b0] sm:$0xff] %vm935, %v925
      %991 = vst.msk [vmem:[#allocation2 + $0x1b8] sm:$0xff] %vm935, %v926
      %992 = vst.msk [vmem:[#allocation2 + $0x1c0] sm:$0xff] %vm935, %v927
      %993 = vst.msk [vmem:[#allocation2 + $0x1c8] sm:$0xff] %vm935, %v928
      %994 = vst.msk [vmem:[#allocation2 + $0x1d0] sm:$0xff] %vm935, %v929
      %995 = vst.msk [vmem:[#allocation2 + $0x1d8] sm:$0xff] %vm935, %v930
      %996 = vst.msk [vmem:[#allocation2 + $0x1e0] sm:$0xff] %vm935, %v931
      %997 = vst.msk [vmem:[#allocation2 + $0x1e8] sm:$0xff] %vm935, %v932
      %998 = vst.msk [vmem:[#allocation2 + $0x1f0] sm:$0xff] %vm935, %v933
      %999 = vst.msk [vmem:[#allocation2 + $0x1f8] sm:$0xff] %vm935, %v934
      // Predicated region
      $region37: #{gen_block_forward.8} parent=31 // pred_check
        %p1000 = pneg %p220
      $region38: #{gen_block_forward.8} parent=31 // pred_check_branch
        %1002 = sbr.rel (%p1000) target = $region40
      $region39: #{gen_block_forward.8} parent=31 // pred_region
        %v1003 = vld [vmem:[#allocation2] sm:$0xff]
        %v1004 = vld [vmem:[#allocation2 + $0x8] sm:$0xff]
        %v1005 = vld [vmem:[#allocation2 + $0x10] sm:$0xff]
        %v1006 = vld [vmem:[#allocation2 + $0x18] sm:$0xff]
        %v1007 = vld [vmem:[#allocation2 + $0x20] sm:$0xff]
        %v1008 = vld [vmem:[#allocation2 + $0x28] sm:$0xff]
        %v1009 = vld [vmem:[#allocation2 + $0x30] sm:$0xff]
        %v1010 = vld [vmem:[#allocation2 + $0x38] sm:$0xff]
        %v1011 = vld [vmem:[#allocation2 + $0x40] sm:$0xff]
        %v1012 = vld [vmem:[#allocation2 + $0x48] sm:$0xff]
        %v1013 = vld [vmem:[#allocation2 + $0x50] sm:$0xff]
        %v1014 = vld [vmem:[#allocation2 + $0x58] sm:$0xff]
        %v1015 = vld [vmem:[#allocation2 + $0x60] sm:$0xff]
        %v1016 = vld [vmem:[#allocation2 + $0x68] sm:$0xff]
        %v1017 = vld [vmem:[#allocation2 + $0x70] sm:$0xff]
        %v1018 = vld [vmem:[#allocation2 + $0x78] sm:$0xff]
        %v1019 = vld [vmem:[#allocation2 + $0x80] sm:$0xff]
        %v1020 = vld [vmem:[#allocation2 + $0x88] sm:$0xff]
        %v1021 = vld [vmem:[#allocation2 + $0x90] sm:$0xff]
        %v1022 = vld [vmem:[#allocation2 + $0x98] sm:$0xff]
        %v1023 = vld [vmem:[#allocation2 + $0xa0] sm:$0xff]
        %v1024 = vld [vmem:[#allocation2 + $0xa8] sm:$0xff]
        %v1025 = vld [vmem:[#allocation2 + $0xb0] sm:$0xff]
        %v1026 = vld [vmem:[#allocation2 + $0xb8] sm:$0xff]
        %v1027 = vld [vmem:[#allocation2 + $0xc0] sm:$0xff]
        %v1028 = vld [vmem:[#allocation2 + $0xc8] sm:$0xff]
        %v1029 = vld [vmem:[#allocation2 + $0xd0] sm:$0xff]
        %v1030 = vld [vmem:[#allocation2 + $0xd8] sm:$0xff]
        %v1031 = vld [vmem:[#allocation2 + $0xe0] sm:$0xff]
        %v1032 = vld [vmem:[#allocation2 + $0xe8] sm:$0xff]
        %v1033 = vld [vmem:[#allocation2 + $0xf0] sm:$0xff]
        %v1034 = vld [vmem:[#allocation2 + $0xf8] sm:$0xff]
        %v1035 = vld [vmem:[#allocation2 + $0x100] sm:$0xff]
        %v1036 = vld [vmem:[#allocation2 + $0x108] sm:$0xff]
        %v1037 = vld [vmem:[#allocation2 + $0x110] sm:$0xff]
        %v1038 = vld [vmem:[#allocation2 + $0x118] sm:$0xff]
        %v1039 = vld [vmem:[#allocation2 + $0x120] sm:$0xff]
        %v1040 = vld [vmem:[#allocation2 + $0x128] sm:$0xff]
        %v1041 = vld [vmem:[#allocation2 + $0x130] sm:$0xff]
        %v1042 = vld [vmem:[#allocation2 + $0x138] sm:$0xff]
        %v1043 = vld [vmem:[#allocation2 + $0x140] sm:$0xff]
        %v1044 = vld [vmem:[#allocation2 + $0x148] sm:$0xff]
        %v1045 = vld [vmem:[#allocation2 + $0x150] sm:$0xff]
        %v1046 = vld [vmem:[#allocation2 + $0x158] sm:$0xff]
        %v1047 = vld [vmem:[#allocation2 + $0x160] sm:$0xff]
        %v1048 = vld [vmem:[#allocation2 + $0x168] sm:$0xff]
        %v1049 = vld [vmem:[#allocation2 + $0x170] sm:$0xff]
        %v1050 = vld [vmem:[#allocation2 + $0x178] sm:$0xff]
        %v1051 = vld [vmem:[#allocation2 + $0x180] sm:$0xff]
        %v1052 = vld [vmem:[#allocation2 + $0x188] sm:$0xff]
        %v1053 = vld [vmem:[#allocation2 + $0x190] sm:$0xff]
        %v1054 = vld [vmem:[#allocation2 + $0x198] sm:$0xff]
        %v1055 = vld [vmem:[#allocation2 + $0x1a0] sm:$0xff]
        %v1056 = vld [vmem:[#allocation2 + $0x1a8] sm:$0xff]
        %v1057 = vld [vmem:[#allocation2 + $0x1b0] sm:$0xff]
        %v1058 = vld [vmem:[#allocation2 + $0x1b8] sm:$0xff]
        %v1059 = vld [vmem:[#allocation2 + $0x1c0] sm:$0xff]
        %v1060 = vld [vmem:[#allocation2 + $0x1c8] sm:$0xff]
        %v1061 = vld [vmem:[#allocation2 + $0x1d0] sm:$0xff]
        %v1062 = vld [vmem:[#allocation2 + $0x1d8] sm:$0xff]
        %v1063 = vld [vmem:[#allocation2 + $0x1e0] sm:$0xff]
        %v1064 = vld [vmem:[#allocation2 + $0x1e8] sm:$0xff]
        %v1065 = vld [vmem:[#allocation2 + $0x1f0] sm:$0xff]
        %v1066 = vld [vmem:[#allocation2 + $0x1f8] sm:$0xff]
        %1067 = vst.msk [vmem:[%s217] sm:$0xff] %vm935, %v1003
        %1068 = vst.msk [vmem:[%s217 + $0x8] sm:$0xff] %vm935, %v1004
        %1069 = vst.msk [vmem:[%s217 + $0x10] sm:$0xff] %vm935, %v1005
        %1070 = vst.msk [vmem:[%s217 + $0x18] sm:$0xff] %vm935, %v1006
        %1071 = vst.msk [vmem:[%s217 + $0x20] sm:$0xff] %vm935, %v1007
        %1072 = vst.msk [vmem:[%s217 + $0x28] sm:$0xff] %vm935, %v1008
        %1073 = vst.msk [vmem:[%s217 + $0x30] sm:$0xff] %vm935, %v1009
        %1074 = vst.msk [vmem:[%s217 + $0x38] sm:$0xff] %vm935, %v1010
        %1075 = vst.msk [vmem:[%s217 + $0x40] sm:$0xff] %vm935, %v1011
        %1076 = vst.msk [vmem:[%s217 + $0x48] sm:$0xff] %vm935, %v1012
        %1077 = vst.msk [vmem:[%s217 + $0x50] sm:$0xff] %vm935, %v1013
        %1078 = vst.msk [vmem:[%s217 + $0x58] sm:$0xff] %vm935, %v1014
        %1079 = vst.msk [vmem:[%s217 + $0x60] sm:$0xff] %vm935, %v1015
        %1080 = vst.msk [vmem:[%s217 + $0x68] sm:$0xff] %vm935, %v1016
        %1081 = vst.msk [vmem:[%s217 + $0x70] sm:$0xff] %vm935, %v1017
        %1082 = vst.msk [vmem:[%s217 + $0x78] sm:$0xff] %vm935, %v1018
        %1083 = vst.msk [vmem:[%s217 + $0x80] sm:$0xff] %vm935, %v1019
        %1084 = vst.msk [vmem:[%s217 + $0x88] sm:$0xff] %vm935, %v1020
        %1085 = vst.msk [vmem:[%s217 + $0x90] sm:$0xff] %vm935, %v1021
        %1086 = vst.msk [vmem:[%s217 + $0x98] sm:$0xff] %vm935, %v1022
        %1087 = vst.msk [vmem:[%s217 + $0xa0] sm:$0xff] %vm935, %v1023
        %1088 = vst.msk [vmem:[%s217 + $0xa8] sm:$0xff] %vm935, %v1024
        %1089 = vst.msk [vmem:[%s217 + $0xb0] sm:$0xff] %vm935, %v1025
        %1090 = vst.msk [vmem:[%s217 + $0xb8] sm:$0xff] %vm935, %v1026
        %1091 = vst.msk [vmem:[%s217 + $0xc0] sm:$0xff] %vm935, %v1027
        %1092 = vst.msk [vmem:[%s217 + $0xc8] sm:$0xff] %vm935, %v1028
        %1093 = vst.msk [vmem:[%s217 + $0xd0] sm:$0xff] %vm935, %v1029
        %1094 = vst.msk [vmem:[%s217 + $0xd8] sm:$0xff] %vm935, %v1030
        %1095 = vst.msk [vmem:[%s217 + $0xe0] sm:$0xff] %vm935, %v1031
        %1096 = vst.msk [vmem:[%s217 + $0xe8] sm:$0xff] %vm935, %v1032
        %1097 = vst.msk [vmem:[%s217 + $0xf0] sm:$0xff] %vm935, %v1033
        %1098 = vst.msk [vmem:[%s217 + $0xf8] sm:$0xff] %vm935, %v1034
        %1099 = vst.msk [vmem:[%s217 + $0x100] sm:$0xff] %vm935, %v1035
        %1100 = vst.msk [vmem:[%s217 + $0x108] sm:$0xff] %vm935, %v1036
        %1101 = vst.msk [vmem:[%s217 + $0x110] sm:$0xff] %vm935, %v1037
        %1102 = vst.msk [vmem:[%s217 + $0x118] sm:$0xff] %vm935, %v1038
        %1103 = vst.msk [vmem:[%s217 + $0x120] sm:$0xff] %vm935, %v1039
        %1104 = vst.msk [vmem:[%s217 + $0x128] sm:$0xff] %vm935, %v1040
        %1105 = vst.msk [vmem:[%s217 + $0x130] sm:$0xff] %vm935, %v1041
        %1106 = vst.msk [vmem:[%s217 + $0x138] sm:$0xff] %vm935, %v1042
        %1107 = vst.msk [vmem:[%s217 + $0x140] sm:$0xff] %vm935, %v1043
        %1108 = vst.msk [vmem:[%s217 + $0x148] sm:$0xff] %vm935, %v1044
        %1109 = vst.msk [vmem:[%s217 + $0x150] sm:$0xff] %vm935, %v1045
        %1110 = vst.msk [vmem:[%s217 + $0x158] sm:$0xff] %vm935, %v1046
        %1111 = vst.msk [vmem:[%s217 + $0x160] sm:$0xff] %vm935, %v1047
        %1112 = vst.msk [vmem:[%s217 + $0x168] sm:$0xff] %vm935, %v1048
        %1113 = vst.msk [vmem:[%s217 + $0x170] sm:$0xff] %vm935, %v1049
        %1114 = vst.msk [vmem:[%s217 + $0x178] sm:$0xff] %vm935, %v1050
        %1115 = vst.msk [vmem:[%s217 + $0x180] sm:$0xff] %vm935, %v1051
        %1116 = vst.msk [vmem:[%s217 + $0x188] sm:$0xff] %vm935, %v1052
        %1117 = vst.msk [vmem:[%s217 + $0x190] sm:$0xff] %vm935, %v1053
        %1118 = vst.msk [vmem:[%s217 + $0x198] sm:$0xff] %vm935, %v1054
        %1119 = vst.msk [vmem:[%s217 + $0x1a0] sm:$0xff] %vm935, %v1055
        %1120 = vst.msk [vmem:[%s217 + $0x1a8] sm:$0xff] %vm935, %v1056
        %1121 = vst.msk [vmem:[%s217 + $0x1b0] sm:$0xff] %vm935, %v1057
        %1122 = vst.msk [vmem:[%s217 + $0x1b8] sm:$0xff] %vm935, %v1058
        %1123 = vst.msk [vmem:[%s217 + $0x1c0] sm:$0xff] %vm935, %v1059
        %1124 = vst.msk [vmem:[%s217 + $0x1c8] sm:$0xff] %vm935, %v1060
        %1125 = vst.msk [vmem:[%s217 + $0x1d0] sm:$0xff] %vm935, %v1061
        %1126 = vst.msk [vmem:[%s217 + $0x1d8] sm:$0xff] %vm935, %v1062
        %1127 = vst.msk [vmem:[%s217 + $0x1e0] sm:$0xff] %vm935, %v1063
        %1128 = vst.msk [vmem:[%s217 + $0x1e8] sm:$0xff] %vm935, %v1064
        %1129 = vst.msk [vmem:[%s217 + $0x1f0] sm:$0xff] %vm935, %v1065
        %1130 = vst.msk [vmem:[%s217 + $0x1f8] sm:$0xff] %vm935, %v1066
      $region40: #{gen_block_forward.8} parent=31 // pred_fallthru
        _
      %s1131 = smul.u32 64, %s18
      %p1132 = scmp.lt.s32.totalorder %s1131, 255
      %s1133 = scalar_select %p1132, %s1131, 255
      %s1134 = smul.addr %s1133, 8
      %s1135 = scalar_lea.vmem %s3, %s1134
      // Predicated region
      $region41: #{gen_block_forward.8} parent=31 // pred_check
        %p1136 = pneg %p119
      $region42: #{gen_block_forward.8} parent=31 // pred_check_branch
        %1138 = sbr.rel (%p1136) target = $region44
      $region43: #{gen_block_forward.8} parent=31 // pred_region
        %s1139 = smul.u32 64, %s18
      $region44: #{gen_block_forward.8} parent=31 // pred_fallthru
        _
    $region32: #{gen_block_forward.8} parent=5 // pred_fallthru
      _
    %p1140 = scmp.le.s32.totalorder 2, %s9
    // Predicated region
    $region45: #{gen_block_forward.8} parent=5 // pred_check
      %p1141 = pneg %p1140
    $region46: #{gen_block_forward.8} parent=5 // pred_check_branch
      %1143 = sbr.rel (%p1141) target = $region48
    $region47: #{gen_block_forward.8} parent=5 // pred_region
      %s1144 = ssub.s32 %s9, 2
      // Predicated region
      $region49: #{gen_block_forward.8} parent=47 // pred_check
        %p1145 = pneg %p125
      $region50: #{gen_block_forward.8} parent=47 // pred_check_branch
        %1147 = sbr.rel (%p1145) target = $region52
      $region51: #{gen_block_forward.8} parent=47 // pred_region
        %s1148 = smul.u32 64, %s20
        %p1149 = scmp.lt.s32.totalorder %s1148, 255
        %s1150 = scalar_select %p1149, %s1148, 255
        %s1151 = smul.addr %s1150, 8
        %s1152 = scalar_lea.vmem %s3, %s1151
      $region52: #{gen_block_forward.8} parent=47 // pred_fallthru
        _
    $region48: #{gen_block_forward.8} parent=5 // pred_fallthru
      _
  $region6: #{gen_block_forward.8} parent=0 // loop_footer
    %s13 = sadd.s32 1, %s9
  $region7: #{gen_block_forward.8} parent=0 // loop_footer_branch
    %8 = sbr.rel target = $region3
  $region8: #{gen_block_forward.8} parent=0 // loop_exit
    _

// kernel: gen_block_forward.9
$region0: #{gen_block_forward.9}
  #allocation0 [shape = 'u32[]', space=smem, size = 0x4, offset = 0x4, fixed_abs, tag = 'smem constant byte address 0x4 - core index']
  #allocation1 [shape = 'u32[72,128]{1,0:T(1,128)}', space=vmem, size = 0x9000, scoped, tag = 'internal scratch']
  #allocation2 [shape = 'f32[1,8]{1,0:T(1,128)}', space=vmem, size = 0x200, scoped, tag = 'scratch operand']
  #allocation3 [shape = 'f32[1,8]{1,0:T(1,128)}', space=vmem, size = 0x200, scoped, tag = 'scratch operand']
  %s0 = inlined_call_operand.vmem [shape: f32[2048,8], index: 0, kind: input, shape index: {}]
  %s1 = inlined_call_operand.vmem [shape: f32[2,8], index: 1, kind: output, shape index: {}]
  %s2 = sld [smem:[#allocation0]]
  $region45: #{gen_block_forward.9} parent=0
    _
  %s4 = ssub.s32 1, %s2
  %s5 = scalar_select 0, %s4, %s2
  loop: start=0, step=1, limit=6
  $region2: #{gen_block_forward.9} parent=0 // loop_pre_header
    _
  $region3: #{gen_block_forward.9} parent=0 // loop_header
    %s7 = sphi 0, %s11
    %p8 = scmp.ge.s32.totalorder %s7, 6
    %s17 = sphi 0, %s19
    %s20 = sphi 0, %s17
    %s21 = sphi 0, %s20
    %s37 = sphi 0, %s21
    %s41 = sphi 0, %s41
    %s43 = sphi 0, %s41
    %s44 = sphi 0, %s43
    %s58 = sphi 0, %s44
  $region4: #{gen_block_forward.9} parent=0 // loop_header_branch
    %10 = sbr.rel (%p8) target = $region8
  $region5: #{gen_block_forward.9} parent=0 // loop_body
    %s12 = ssub.s32 %s7, 1
    %s13 = ssub.s32 %s7, 2
    %s14 = sadd.s32 %s7, 1
    %s15 = ssub.s32 %s7, %s14
    %p16 = scmp.eq.s32.totalorder %s15, 0
    %s18 = sadd.s32 %s17, 1
    %s19 = scalar_select %p16, %s17, %s18
    %p22 = pneg %p16
    %p23 = scmp.eq.s32.totalorder %s7, 3
    %p24 = por %p22, %p23
    %p25 = scmp.ne.s32.totalorder %s17, %s20
    %p26 = scmp.eq.s32.totalorder %s7, 0
    %p27 = por %p25, %p26
    %p28 = scmp.ne.s32.totalorder %s17, %s20
    %p29 = scmp.eq.s32.totalorder %s12, 3
    %p30 = por %p28, %p29
    %p31 = scmp.ne.s32.totalorder %s20, %s21
    %p32 = scmp.eq.s32.totalorder %s12, 0
    %p33 = por %p31, %p32
    %p34 = scmp.ne.s32.totalorder %s20, %s21
    %p35 = scmp.eq.s32.totalorder %s13, 3
    %p36 = por %p34, %p35
    %p38 = scmp.ne.s32.totalorder %s21, %s37
    %p39 = scmp.eq.s32.totalorder %s13, 0
    %p40 = por %p38, %p39
    %s42 = sadd.s32 %s41, 1
    %p45 = scmp.eq.s32.totalorder %s7, 3
    %p46 = scmp.ne.s32.totalorder %s41, %s43
    %p47 = scmp.eq.s32.totalorder %s7, 0
    %p48 = por %p46, %p47
    %p49 = scmp.ne.s32.totalorder %s41, %s43
    %p50 = scmp.eq.s32.totalorder %s12, 3
    %p51 = por %p49, %p50
    %p52 = scmp.ne.s32.totalorder %s43, %s44
    %p53 = scmp.eq.s32.totalorder %s12, 0
    %p54 = por %p52, %p53
    %p55 = scmp.ne.s32.totalorder %s43, %s44
    %p56 = scmp.eq.s32.totalorder %s13, 3
    %p57 = por %p55, %p56
    %p59 = scmp.ne.s32.totalorder %s44, %s58
    %p60 = scmp.eq.s32.totalorder %s13, 0
    %p61 = por %p59, %p60
    %p62 = scmp.le.s32.totalorder 1, %s7
    %p63 = scmp.lt.s32.totalorder %s7, 5
    %p64 = pnand %p62, %p63
    %p65 = pneg %p64
    // Predicated region
    $region9: #{gen_block_forward.9} parent=5 // pred_check
      _
    $region10: #{gen_block_forward.9} parent=5 // pred_check_branch
      %67 = sbr.rel (%p64) target = $region12
    $region11: #{gen_block_forward.9} parent=5 // pred_region
      %s68 = ssub.s32 %s7, 1
    $region12: #{gen_block_forward.9} parent=5 // pred_fallthru
      _
    %p69 = scmp.lt.s32.totalorder %s7, 4
    // Predicated region
    $region13: #{gen_block_forward.9} parent=5 // pred_check
      %p70 = pneg %p69
    $region14: #{gen_block_forward.9} parent=5 // pred_check_branch
      %72 = sbr.rel (%p70) target = $region16
    $region15: #{gen_block_forward.9} parent=5 // pred_region
      // Predicated region
      $region17: #{gen_block_forward.9} parent=15 // pred_check
        %p73 = pneg %p27
      $region18: #{gen_block_forward.9} parent=15 // pred_check_branch
        %75 = sbr.rel (%p73) target = $region20
      $region19: #{gen_block_forward.9} parent=15 // pred_region
        %s76 = smul.u32 64, %s7
        %p77 = scmp.lt.s32.totalorder %s76, 255
        %s78 = scalar_select %p77, %s76, 255
        %s79 = smul.addr %s78, 8
        %s80 = scalar_lea.vmem %s0, %s79
        %s81 = smul.u32 64, %s7
      $region20: #{gen_block_forward.9} parent=15 // pred_fallthru
        _
    $region16: #{gen_block_forward.9} parent=5 // pred_fallthru
      _
    %p82 = scmp.le.s32.totalorder 1, %s7
    %p83 = scmp.lt.s32.totalorder %s7, 5
    %p84 = pnand %p82, %p83
    %p85 = pneg %p84
    // Predicated region
    $region21: #{gen_block_forward.9} parent=5 // pred_check
      _
    $region22: #{gen_block_forward.9} parent=5 // pred_check_branch
      %87 = sbr.rel (%p84) target = $region24
    $region23: #{gen_block_forward.9} parent=5 // pred_region
      %s88 = ssub.s32 %s7, 1
      %s89 = smul.u32 64, %s12
      %p90 = scmp.lt.s32.totalorder %s89, 255
      %s91 = scalar_select %p90, %s89, 255
      %s92 = smul.addr %s91, 8
      %s93 = scalar_lea.vmem %s0, %s92
      %p94 = pneg %p33
      %p95 = pneg %p30
      %p96 = pneg %p54
      %p97 = pneg %p51
      %s98 = smul.u32 64, %s12
      %p99 = scmp.lt.s32.totalorder %s98, 255
      %s100 = scalar_select %p99, %s98, 255
      %s101 = smul.addr %s100, 8
      %s102 = scalar_lea.vmem %s0, %s101
      %s103 = smul.u32 64, %s12
      %v104 = vld [vmem:[%s102] sm:$0xff]
      %v105 = vld [vmem:[%s102 + $0x8] sm:$0xff]
      %v106 = vld [vmem:[%s102 + $0x10] sm:$0xff]
      %v107 = vld [vmem:[%s102 + $0x18] sm:$0xff]
      %v108 = vld [vmem:[%s102 + $0x20] sm:$0xff]
      %v109 = vld [vmem:[%s102 + $0x28] sm:$0xff]
      %v110 = vld [vmem:[%s102 + $0x30] sm:$0xff]
      %v111 = vld [vmem:[%s102 + $0x38] sm:$0xff]
      %v112 = vld [vmem:[%s102 + $0x40] sm:$0xff]
      %v113 = vld [vmem:[%s102 + $0x48] sm:$0xff]
      %v114 = vld [vmem:[%s102 + $0x50] sm:$0xff]
      %v115 = vld [vmem:[%s102 + $0x58] sm:$0xff]
      %v116 = vld [vmem:[%s102 + $0x60] sm:$0xff]
      %v117 = vld [vmem:[%s102 + $0x68] sm:$0xff]
      %v118 = vld [vmem:[%s102 + $0x70] sm:$0xff]
      %v119 = vld [vmem:[%s102 + $0x78] sm:$0xff]
      %v120 = vld [vmem:[%s102 + $0x80] sm:$0xff]
      %v121 = vld [vmem:[%s102 + $0x88] sm:$0xff]
      %v122 = vld [vmem:[%s102 + $0x90] sm:$0xff]
      %v123 = vld [vmem:[%s102 + $0x98] sm:$0xff]
      %v124 = vld [vmem:[%s102 + $0xa0] sm:$0xff]
      %v125 = vld [vmem:[%s102 + $0xa8] sm:$0xff]
      %v126 = vld [vmem:[%s102 + $0xb0] sm:$0xff]
      %v127 = vld [vmem:[%s102 + $0xb8] sm:$0xff]
      %v128 = vld [vmem:[%s102 + $0xc0] sm:$0xff]
      %v129 = vld [vmem:[%s102 + $0xc8] sm:$0xff]
      %v130 = vld [vmem:[%s102 + $0xd0] sm:$0xff]
      %v131 = vld [vmem:[%s102 + $0xd8] sm:$0xff]
      %v132 = vld [vmem:[%s102 + $0xe0] sm:$0xff]
      %v133 = vld [vmem:[%s102 + $0xe8] sm:$0xff]
      %v134 = vld [vmem:[%s102 + $0xf0] sm:$0xff]
      %v135 = vld [vmem:[%s102 + $0xf8] sm:$0xff]
      %v136 = vld [vmem:[%s102 + $0x100] sm:$0xff]
      %v137 = vld [vmem:[%s102 + $0x108] sm:$0xff]
      %v138 = vld [vmem:[%s102 + $0x110] sm:$0xff]
      %v139 = vld [vmem:[%s102 + $0x118] sm:$0xff]
      %v140 = vld [vmem:[%s102 + $0x120] sm:$0xff]
      %v141 = vld [vmem:[%s102 + $0x128] sm:$0xff]
      %v142 = vld [vmem:[%s102 + $0x130] sm:$0xff]
      %v143 = vld [vmem:[%s102 + $0x138] sm:$0xff]
      %v144 = vld [vmem:[%s102 + $0x140] sm:$0xff]
      %v145 = vld [vmem:[%s102 + $0x148] sm:$0xff]
      %v146 = vld [vmem:[%s102 + $0x150] sm:$0xff]
      %v147 = vld [vmem:[%s102 + $0x158] sm:$0xff]
      %v148 = vld [vmem:[%s102 + $0x160] sm:$0xff]
      %v149 = vld [vmem:[%s102 + $0x168] sm:$0xff]
      %v150 = vld [vmem:[%s102 + $0x170] sm:$0xff]
      %v151 = vld [vmem:[%s102 + $0x178] sm:$0xff]
      %v152 = vld [vmem:[%s102 + $0x180] sm:$0xff]
      %v153 = vld [vmem:[%s102 + $0x188] sm:$0xff]
      %v154 = vld [vmem:[%s102 + $0x190] sm:$0xff]
      %v155 = vld [vmem:[%s102 + $0x198] sm:$0xff]
      %v156 = vld [vmem:[%s102 + $0x1a0] sm:$0xff]
      %v157 = vld [vmem:[%s102 + $0x1a8] sm:$0xff]
      %v158 = vld [vmem:[%s102 + $0x1b0] sm:$0xff]
      %v159 = vld [vmem:[%s102 + $0x1b8] sm:$0xff]
      %v160 = vld [vmem:[%s102 + $0x1c0] sm:$0xff]
      %v161 = vld [vmem:[%s102 + $0x1c8] sm:$0xff]
      %v162 = vld [vmem:[%s102 + $0x1d0] sm:$0xff]
      %v163 = vld [vmem:[%s102 + $0x1d8] sm:$0xff]
      %v164 = vld [vmem:[%s102 + $0x1e0] sm:$0xff]
      %v165 = vld [vmem:[%s102 + $0x1e8] sm:$0xff]
      %v166 = vld [vmem:[%s102 + $0x1f0] sm:$0xff]
      %v167 = vld [vmem:[%s102 + $0x1f8] sm:$0xff]
      %vm168 = vcmask 64512
      %v169 = vsel %vm168, %v104, 0.0
      %v170 = vsel %vm168, %v105, 0.0
      %v171 = vadd.f32 %v169, %v170
      %v172 = vsel %vm168, %v106, 0.0
      %v173 = vadd.f32 %v171, %v172
      %v174 = vsel %vm168, %v107, 0.0
      %v175 = vadd.f32 %v173, %v174
      %v176 = vsel %vm168, %v108, 0.0
      %v177 = vadd.f32 %v175, %v176
      %v178 = vsel %vm168, %v109, 0.0
      %v179 = vadd.f32 %v177, %v178
      %v180 = vsel %vm168, %v110, 0.0
      %v181 = vadd.f32 %v179, %v180
      %v182 = vsel %vm168, %v111, 0.0
      %v183 = vadd.f32 %v181, %v182
      %v184 = vsel %vm168, %v112, 0.0
      %v185 = vadd.f32 %v183, %v184
      %v186 = vsel %vm168, %v113, 0.0
      %v187 = vadd.f32 %v185, %v186
      %v188 = vsel %vm168, %v114, 0.0
      %v189 = vadd.f32 %v187, %v188
      %v190 = vsel %vm168, %v115, 0.0
      %v191 = vadd.f32 %v189, %v190
      %v192 = vsel %vm168, %v116, 0.0
      %v193 = vadd.f32 %v191, %v192
      %v194 = vsel %vm168, %v117, 0.0
      %v195 = vadd.f32 %v193, %v194
      %v196 = vsel %vm168, %v118, 0.0
      %v197 = vadd.f32 %v195, %v196
      %v198 = vsel %vm168, %v119, 0.0
      %v199 = vadd.f32 %v197, %v198
      %v200 = vsel %vm168, %v120, 0.0
      %v201 = vadd.f32 %v199, %v200
      %v202 = vsel %vm168, %v121, 0.0
      %v203 = vadd.f32 %v201, %v202
      %v204 = vsel %vm168, %v122, 0.0
      %v205 = vadd.f32 %v203, %v204
      %v206 = vsel %vm168, %v123, 0.0
      %v207 = vadd.f32 %v205, %v206
      %v208 = vsel %vm168, %v124, 0.0
      %v209 = vadd.f32 %v207, %v208
      %v210 = vsel %vm168, %v125, 0.0
      %v211 = vadd.f32 %v209, %v210
      %v212 = vsel %vm168, %v126, 0.0
      %v213 = vadd.f32 %v211, %v212
      %v214 = vsel %vm168, %v127, 0.0
      %v215 = vadd.f32 %v213, %v214
      %v216 = vsel %vm168, %v128, 0.0
      %v217 = vadd.f32 %v215, %v216
      %v218 = vsel %vm168, %v129, 0.0
      %v219 = vadd.f32 %v217, %v218
      %v220 = vsel %vm168, %v130, 0.0
      %v221 = vadd.f32 %v219, %v220
      %v222 = vsel %vm168, %v131, 0.0
      %v223 = vadd.f32 %v221, %v222
      %v224 = vsel %vm168, %v132, 0.0
      %v225 = vadd.f32 %v223, %v224
      %v226 = vsel %vm168, %v133, 0.0
      %v227 = vadd.f32 %v225, %v226
      %v228 = vsel %vm168, %v134, 0.0
      %v229 = vadd.f32 %v227, %v228
      %v230 = vsel %vm168, %v135, 0.0
      %v231 = vadd.f32 %v229, %v230
      %v232 = vsel %vm168, %v136, 0.0
      %v233 = vadd.f32 %v231, %v232
      %v234 = vsel %vm168, %v137, 0.0
      %v235 = vadd.f32 %v233, %v234
      %v236 = vsel %vm168, %v138, 0.0
      %v237 = vadd.f32 %v235, %v236
      %v238 = vsel %vm168, %v139, 0.0
      %v239 = vadd.f32 %v237, %v238
      %v240 = vsel %vm168, %v140, 0.0
      %v241 = vadd.f32 %v239, %v240
      %v242 = vsel %vm168, %v141, 0.0
      %v243 = vadd.f32 %v241, %v242
      %v244 = vsel %vm168, %v142, 0.0
      %v245 = vadd.f32 %v243, %v244
      %v246 = vsel %vm168, %v143, 0.0
      %v247 = vadd.f32 %v245, %v246
      %v248 = vsel %vm168, %v144, 0.0
      %v249 = vadd.f32 %v247, %v248
      %v250 = vsel %vm168, %v145, 0.0
      %v251 = vadd.f32 %v249, %v250
      %v252 = vsel %vm168, %v146, 0.0
      %v253 = vadd.f32 %v251, %v252
      %v254 = vsel %vm168, %v147, 0.0
      %v255 = vadd.f32 %v253, %v254
      %v256 = vsel %vm168, %v148, 0.0
      %v257 = vadd.f32 %v255, %v256
      %v258 = vsel %vm168, %v149, 0.0
      %v259 = vadd.f32 %v257, %v258
      %v260 = vsel %vm168, %v150, 0.0
      %v261 = vadd.f32 %v259, %v260
      %v262 = vsel %vm168, %v151, 0.0
      %v263 = vadd.f32 %v261, %v262
      %v264 = vsel %vm168, %v152, 0.0
      %v265 = vadd.f32 %v263, %v264
      %v266 = vsel %vm168, %v153, 0.0
      %v267 = vadd.f32 %v265, %v266
      %v268 = vsel %vm168, %v154, 0.0
      %v269 = vadd.f32 %v267, %v268
      %v270 = vsel %vm168, %v155, 0.0
      %v271 = vadd.f32 %v269, %v270
      %v272 = vsel %vm168, %v156, 0.0
      %v273 = vadd.f32 %v271, %v272
      %v274 = vsel %vm168, %v157, 0.0
      %v275 = vadd.f32 %v273, %v274
      %v276 = vsel %vm168, %v158, 0.0
      %v277 = vadd.f32 %v275, %v276
      %v278 = vsel %vm168, %v159, 0.0
      %v279 = vadd.f32 %v277, %v278
      %v280 = vsel %vm168, %v160, 0.0
      %v281 = vadd.f32 %v279, %v280
      %v282 = vsel %vm168, %v161, 0.0
      %v283 = vadd.f32 %v281, %v282
      %v284 = vsel %vm168, %v162, 0.0
      %v285 = vadd.f32 %v283, %v284
      %v286 = vsel %vm168, %v163, 0.0
      %v287 = vadd.f32 %v285, %v286
      %v288 = vsel %vm168, %v164, 0.0
      %v289 = vadd.f32 %v287, %v288
      %v290 = vsel %vm168, %v165, 0.0
      %v291 = vadd.f32 %v289, %v290
      %v292 = vsel %vm168, %v166, 0.0
      %v293 = vadd.f32 %v291, %v292
      %v294 = vsel %vm168, %v167, 0.0
      %v295 = vadd.f32 %v293, %v294
      %v296 = vrot.slane %v295, 4
      %v297 = vadd.f32 %v295, %v296
      %v298 = vrot.slane %v297, 2
      %v299 = vadd.f32 %v297, %v298
      %v300 = vrot.slane %v299, 1
      %v301 = vadd.f32 %v299, %v300
      %v302 = vrcp.pop 512.0
      %v303 = vmul.f32 512.0, %v302
      %v304 = vsub.f32 1.0, %v303
      %v305 = vmul.f32 %v302, %v304
      %v306 = vadd.f32 %v302, %v305
      %vm307 = vweird.f32 %v302
      %v308 = vsel %vm307, %v302, %v306
      %v309 = vmul.f32 %v301, %v308
      %v310 = vsub.f32 %v104, %v309
      %v311 = vsub.f32 %v105, %v309
      %v312 = vsub.f32 %v106, %v309
      %v313 = vsub.f32 %v107, %v309
      %v314 = vsub.f32 %v108, %v309
      %v315 = vsub.f32 %v109, %v309
      %v316 = vsub.f32 %v110, %v309
      %v317 = vsub.f32 %v111, %v309
      %v318 = vsub.f32 %v112, %v309
      %v319 = vsub.f32 %v113, %v309
      %v320 = vsub.f32 %v114, %v309
      %v321 = vsub.f32 %v115, %v309
      %v322 = vsub.f32 %v116, %v309
      %v323 = vsub.f32 %v117, %v309
      %v324 = vsub.f32 %v118, %v309
      %v325 = vsub.f32 %v119, %v309
      %v326 = vsub.f32 %v120, %v309
      %v327 = vsub.f32 %v121, %v309
      %v328 = vsub.f32 %v122, %v309
      %v329 = vsub.f32 %v123, %v309
      %v330 = vsub.f32 %v124, %v309
      %v331 = vsub.f32 %v125, %v309
      %v332 = vsub.f32 %v126, %v309
      %v333 = vsub.f32 %v127, %v309
      %v334 = vsub.f32 %v128, %v309
      %v335 = vsub.f32 %v129, %v309
      %v336 = vsub.f32 %v130, %v309
      %v337 = vsub.f32 %v131, %v309
      %v338 = vsub.f32 %v132, %v309
      %v339 = vsub.f32 %v133, %v309
      %v340 = vsub.f32 %v134, %v309
      %v341 = vsub.f32 %v135, %v309
      %v342 = vsub.f32 %v136, %v309
      %v343 = vsub.f32 %v137, %v309
      %v344 = vsub.f32 %v138, %v309
      %v345 = vsub.f32 %v139, %v309
      %v346 = vsub.f32 %v140, %v309
      %v347 = vsub.f32 %v141, %v309
      %v348 = vsub.f32 %v142, %v309
      %v349 = vsub.f32 %v143, %v309
      %v350 = vsub.f32 %v144, %v309
      %v351 = vsub.f32 %v145, %v309
      %v352 = vsub.f32 %v146, %v309
      %v353 = vsub.f32 %v147, %v309
      %v354 = vsub.f32 %v148, %v309
      %v355 = vsub.f32 %v149, %v309
      %v356 = vsub.f32 %v150, %v309
      %v357 = vsub.f32 %v151, %v309
      %v358 = vsub.f32 %v152, %v309
      %v359 = vsub.f32 %v153, %v309
      %v360 = vsub.f32 %v154, %v309
      %v361 = vsub.f32 %v155, %v309
      %v362 = vsub.f32 %v156, %v309
      %v363 = vsub.f32 %v157, %v309
      %v364 = vsub.f32 %v158, %v309
      %v365 = vsub.f32 %v159, %v309
      %v366 = vsub.f32 %v160, %v309
      %v367 = vsub.f32 %v161, %v309
      %v368 = vsub.f32 %v162, %v309
      %v369 = vsub.f32 %v163, %v309
      %v370 = vsub.f32 %v164, %v309
      %v371 = vsub.f32 %v165, %v309
      %v372 = vsub.f32 %v166, %v309
      %v373 = vsub.f32 %v167, %v309
      %v374 = vmul.f32 %v310, %v310
      %v375 = vmul.f32 %v311, %v311
      %v376 = vmul.f32 %v312, %v312
      %v377 = vmul.f32 %v313, %v313
      %v378 = vmul.f32 %v314, %v314
      %v379 = vmul.f32 %v315, %v315
      %v380 = vmul.f32 %v316, %v316
      %v381 = vmul.f32 %v317, %v317
      %v382 = vmul.f32 %v318, %v318
      %v383 = vmul.f32 %v319, %v319
      %v384 = vmul.f32 %v320, %v320
      %v385 = vmul.f32 %v321, %v321
      %v386 = vmul.f32 %v322, %v322
      %v387 = vmul.f32 %v323, %v323
      %v388 = vmul.f32 %v324, %v324
      %v389 = vmul.f32 %v325, %v325
      %v390 = vmul.f32 %v326, %v326
      %v391 = vmul.f32 %v327, %v327
      %v392 = vmul.f32 %v328, %v328
      %v393 = vmul.f32 %v329, %v329
      %v394 = vmul.f32 %v330, %v330
      %v395 = vmul.f32 %v331, %v331
      %v396 = vmul.f32 %v332, %v332
      %v397 = vmul.f32 %v333, %v333
      %v398 = vmul.f32 %v334, %v334
      %v399 = vmul.f32 %v335, %v335
      %v400 = vmul.f32 %v336, %v336
      %v401 = vmul.f32 %v337, %v337
      %v402 = vmul.f32 %v338, %v338
      %v403 = vmul.f32 %v339, %v339
      %v404 = vmul.f32 %v340, %v340
      %v405 = vmul.f32 %v341, %v341
      %v406 = vmul.f32 %v342, %v342
      %v407 = vmul.f32 %v343, %v343
      %v408 = vmul.f32 %v344, %v344
      %v409 = vmul.f32 %v345, %v345
      %v410 = vmul.f32 %v346, %v346
      %v411 = vmul.f32 %v347, %v347
      %v412 = vmul.f32 %v348, %v348
      %v413 = vmul.f32 %v349, %v349
      %v414 = vmul.f32 %v350, %v350
      %v415 = vmul.f32 %v351, %v351
      %v416 = vmul.f32 %v352, %v352
      %v417 = vmul.f32 %v353, %v353
      %v418 = vmul.f32 %v354, %v354
      %v419 = vmul.f32 %v355, %v355
      %v420 = vmul.f32 %v356, %v356
      %v421 = vmul.f32 %v357, %v357
      %v422 = vmul.f32 %v358, %v358
      %v423 = vmul.f32 %v359, %v359
      %v424 = vmul.f32 %v360, %v360
      %v425 = vmul.f32 %v361, %v361
      %v426 = vmul.f32 %v362, %v362
      %v427 = vmul.f32 %v363, %v363
      %v428 = vmul.f32 %v364, %v364
      %v429 = vmul.f32 %v365, %v365
      %v430 = vmul.f32 %v366, %v366
      %v431 = vmul.f32 %v367, %v367
      %v432 = vmul.f32 %v368, %v368
      %v433 = vmul.f32 %v369, %v369
      %v434 = vmul.f32 %v370, %v370
      %v435 = vmul.f32 %v371, %v371
      %v436 = vmul.f32 %v372, %v372
      %v437 = vmul.f32 %v373, %v373
      %v438 = vsel %vm168, %v374, 0.0
      %v439 = vsel %vm168, %v375, 0.0
      %v440 = vadd.f32 %v438, %v439
      %v441 = vsel %vm168, %v376, 0.0
      %v442 = vadd.f32 %v440, %v441
      %v443 = vsel %vm168, %v377, 0.0
      %v444 = vadd.f32 %v442, %v443
      %v445 = vsel %vm168, %v378, 0.0
      %v446 = vadd.f32 %v444, %v445
      %v447 = vsel %vm168, %v379, 0.0
      %v448 = vadd.f32 %v446, %v447
      %v449 = vsel %vm168, %v380, 0.0
      %v450 = vadd.f32 %v448, %v449
      %v451 = vsel %vm168, %v381, 0.0
      %v452 = vadd.f32 %v450, %v451
      %v453 = vsel %vm168, %v382, 0.0
      %v454 = vadd.f32 %v452, %v453
      %v455 = vsel %vm168, %v383, 0.0
      %v456 = vadd.f32 %v454, %v455
      %v457 = vsel %vm168, %v384, 0.0
      %v458 = vadd.f32 %v456, %v457
      %v459 = vsel %vm168, %v385, 0.0
      %v460 = vadd.f32 %v458, %v459
      %v461 = vsel %vm168, %v386, 0.0
      %v462 = vadd.f32 %v460, %v461
      %v463 = vsel %vm168, %v387, 0.0
      %v464 = vadd.f32 %v462, %v463
      %v465 = vsel %vm168, %v388, 0.0
      %v466 = vadd.f32 %v464, %v465
      %v467 = vsel %vm168, %v389, 0.0
      %v468 = vadd.f32 %v466, %v467
      %v469 = vsel %vm168, %v390, 0.0
      %v470 = vadd.f32 %v468, %v469
      %v471 = vsel %vm168, %v391, 0.0
      %v472 = vadd.f32 %v470, %v471
      %v473 = vsel %vm168, %v392, 0.0
      %v474 = vadd.f32 %v472, %v473
      %v475 = vsel %vm168, %v393, 0.0
      %v476 = vadd.f32 %v474, %v475
      %v477 = vsel %vm168, %v394, 0.0
      %v478 = vadd.f32 %v476, %v477
      %v479 = vsel %vm168, %v395, 0.0
      %v480 = vadd.f32 %v478, %v479
      %v481 = vsel %vm168, %v396, 0.0
      %v482 = vadd.f32 %v480, %v481
      %v483 = vsel %vm168, %v397, 0.0
      %v484 = vadd.f32 %v482, %v483
      %v485 = vsel %vm168, %v398, 0.0
      %v486 = vadd.f32 %v484, %v485
      %v487 = vsel %vm168, %v399, 0.0
      %v488 = vadd.f32 %v486, %v487
      %v489 = vsel %vm168, %v400, 0.0
      %v490 = vadd.f32 %v488, %v489
      %v491 = vsel %vm168, %v401, 0.0
      %v492 = vadd.f32 %v490, %v491
      %v493 = vsel %vm168, %v402, 0.0
      %v494 = vadd.f32 %v492, %v493
      %v495 = vsel %vm168, %v403, 0.0
      %v496 = vadd.f32 %v494, %v495
      %v497 = vsel %vm168, %v404, 0.0
      %v498 = vadd.f32 %v496, %v497
      %v499 = vsel %vm168, %v405, 0.0
      %v500 = vadd.f32 %v498, %v499
      %v501 = vsel %vm168, %v406, 0.0
      %v502 = vadd.f32 %v500, %v501
      %v503 = vsel %vm168, %v407, 0.0
      %v504 = vadd.f32 %v502, %v503
      %v505 = vsel %vm168, %v408, 0.0
      %v506 = vadd.f32 %v504, %v505
      %v507 = vsel %vm168, %v409, 0.0
      %v508 = vadd.f32 %v506, %v507
      %v509 = vsel %vm168, %v410, 0.0
      %v510 = vadd.f32 %v508, %v509
      %v511 = vsel %vm168, %v411, 0.0
      %v512 = vadd.f32 %v510, %v511
      %v513 = vsel %vm168, %v412, 0.0
      %v514 = vadd.f32 %v512, %v513
      %v515 = vsel %vm168, %v413, 0.0
      %v516 = vadd.f32 %v514, %v515
      %v517 = vsel %vm168, %v414, 0.0
      %v518 = vadd.f32 %v516, %v517
      %v519 = vsel %vm168, %v415, 0.0
      %v520 = vadd.f32 %v518, %v519
      %v521 = vsel %vm168, %v416, 0.0
      %v522 = vadd.f32 %v520, %v521
      %v523 = vsel %vm168, %v417, 0.0
      %v524 = vadd.f32 %v522, %v523
      %v525 = vsel %vm168, %v418, 0.0
      %v526 = vadd.f32 %v524, %v525
      %v527 = vsel %vm168, %v419, 0.0
      %v528 = vadd.f32 %v526, %v527
      %v529 = vsel %vm168, %v420, 0.0
      %v530 = vadd.f32 %v528, %v529
      %v531 = vsel %vm168, %v421, 0.0
      %v532 = vadd.f32 %v530, %v531
      %v533 = vsel %vm168, %v422, 0.0
      %v534 = vadd.f32 %v532, %v533
      %v535 = vsel %vm168, %v423, 0.0
      %v536 = vadd.f32 %v534, %v535
      %v537 = vsel %vm168, %v424, 0.0
      %v538 = vadd.f32 %v536, %v537
      %v539 = vsel %vm168, %v425, 0.0
      %v540 = vadd.f32 %v538, %v539
      %v541 = vsel %vm168, %v426, 0.0
      %v542 = vadd.f32 %v540, %v541
      %v543 = vsel %vm168, %v427, 0.0
      %v544 = vadd.f32 %v542, %v543
      %v545 = vsel %vm168, %v428, 0.0
      %v546 = vadd.f32 %v544, %v545
      %v547 = vsel %vm168, %v429, 0.0
      %v548 = vadd.f32 %v546, %v547
      %v549 = vsel %vm168, %v430, 0.0
      %v550 = vadd.f32 %v548, %v549
      %v551 = vsel %vm168, %v431, 0.0
      %v552 = vadd.f32 %v550, %v551
      %v553 = vsel %vm168, %v432, 0.0
      %v554 = vadd.f32 %v552, %v553
      %v555 = vsel %vm168, %v433, 0.0
      %v556 = vadd.f32 %v554, %v555
      %v557 = vsel %vm168, %v434, 0.0
      %v558 = vadd.f32 %v556, %v557
      %v559 = vsel %vm168, %v435, 0.0
      %v560 = vadd.f32 %v558, %v559
      %v561 = vsel %vm168, %v436, 0.0
      %v562 = vadd.f32 %v560, %v561
      %v563 = vsel %vm168, %v437, 0.0
      %v564 = vadd.f32 %v562, %v563
      %v565 = vrot.slane %v564, 4
      %v566 = vadd.f32 %v564, %v565
      %v567 = vrot.slane %v566, 2
      %v568 = vadd.f32 %v566, %v567
      %v569 = vrot.slane %v568, 1
      %v570 = vadd.f32 %v568, %v569
      %p571 = scmp.eq.s32.totalorder %s12, 0
      // Predicated region
      $region25: #{gen_block_forward.9} parent=23 // pred_check
        %p572 = pneg %p571
      $region26: #{gen_block_forward.9} parent=23 // pred_check_branch
        %574 = sbr.rel (%p572) target = $region28
      $region27: #{gen_block_forward.9} parent=23 // pred_region
        %vm575 = vcmask 57344
        %576 = vst.msk [vmem:[#allocation2] sm:$0x1] %vm575, 0.0
        %577 = vst.msk [vmem:[#allocation3] sm:$0x1] %vm575, 0.0
      $region28: #{gen_block_forward.9} parent=23 // pred_fallthru
        _
      %s578 = smul.u32 %s12, 512
      %s579 = scvt.s32.f32 %s578
      %s580 = sadd.f32 %s579, 512.0
      %v581 = vld [vmem:[#allocation2] sm:$0x1]
      %v582 = vsub.f32 %v309, %v581
      %v583 = vstv %s580
      %v584 = vrcp.pop %v583
      %v585 = vmul.f32 %v583, %v584
      %v586 = vsub.f32 1.0, %v585
      %v587 = vmul.f32 %v584, %v586
      %v588 = vadd.f32 %v584, %v587
      %vm589 = vweird.f32 %v583
      %vm590 = vweird.f32 %v584
      %vm591 = vmor %vm589, %vm590
      %v592 = vsel %vm591, %v584, %v588
      %v593 = vand.u32 2147483647, %v583
      %vm594 = vcmp.eq.f32.partialorder %v593, 8.507059e+37
      %v595 = vand.u32 %v583, 2147483648
      %v596 = vor.u32 1.1754944e-38, %v595
      %v597 = vsel %vm594, %v596, %v592
      %s598 = vtos %v597
      %s599 = smul.f32 512.0, %s598
      %v600 = vstv %s599
      %v601 = vmul.f32 %v582, %v600
      %v602 = vadd.f32 %v581, %v601
      %vm603 = vcmask 57344
      %604 = vst.msk [vmem:[#allocation2] sm:$0x1] %vm603, %v602
      %v605 = vld [vmem:[#allocation3] sm:$0x1]
      %v606 = vadd.f32 %v605, %v570
      %v607 = vmul.f32 %v582, %v582
      %s608 = smul.f32 %s579, 512.0
      %v609 = vstv %s580
      %v610 = vrcp.pop %v609
      %v611 = vmul.f32 %v609, %v610
      %v612 = vsub.f32 1.0, %v611
      %v613 = vmul.f32 %v610, %v612
      %v614 = vadd.f32 %v610, %v613
      %vm615 = vweird.f32 %v609
      %vm616 = vweird.f32 %v610
      %vm617 = vmor %vm615, %vm616
      %v618 = vsel %vm617, %v610, %v614
      %v619 = vand.u32 2147483647, %v609
      %vm620 = vcmp.eq.f32.partialorder %v619, 8.507059e+37
      %v621 = vand.u32 %v609, 2147483648
      %v622 = vor.u32 1.1754944e-38, %v621
      %v623 = vsel %vm620, %v622, %v618
      %s624 = vtos %v623
      %s625 = smul.f32 %s608, %s624
      %v626 = vstv %s625
      %v627 = vmul.f32 %v607, %v626
      %v628 = vadd.f32 %v606, %v627
      %629 = vst.msk [vmem:[#allocation3] sm:$0x1] %vm603, %v628
      %p630 = scmp.eq.s32.totalorder %s12, 3
      // Predicated region
      $region29: #{gen_block_forward.9} parent=23 // pred_check
        %p631 = pneg %p630
      $region30: #{gen_block_forward.9} parent=23 // pred_check_branch
        %633 = sbr.rel (%p631) target = $region32
      $region31: #{gen_block_forward.9} parent=23 // pred_region
        %v634 = vld [vmem:[#allocation2] sm:$0x1]
        %635 = vst.msk [vmem:[%s1] sm:$0x1] %vm603, %v634
        %v636 = vld [vmem:[#allocation3] sm:$0x1]
        %v637 = vstv %s580
        %v638 = vrcp.pop %v637
        %v639 = vmul.f32 %v637, %v638
        %v640 = vsub.f32 1.0, %v639
        %v641 = vmul.f32 %v638, %v640
        %v642 = vadd.f32 %v638, %v641
        %vm643 = vweird.f32 %v637
        %vm644 = vweird.f32 %v638
        %vm645 = vmor %vm643, %vm644
        %v646 = vsel %vm645, %v638, %v642
        %v647 = vand.u32 2147483647, %v637
        %vm648 = vcmp.eq.f32.partialorder %v647, 8.507059e+37
        %v649 = vand.u32 %v637, 2147483648
        %v650 = vor.u32 1.1754944e-38, %v649
        %v651 = vsel %vm648, %v650, %v646
        %v652 = vmul.f32 %v636, %v651
        %653 = vst.msk [vmem:[%s1 + $0x1] sm:$0x1] %vm603, %v652
      $region32: #{gen_block_forward.9} parent=23 // pred_fallthru
        _
      // Predicated region
      $region33: #{gen_block_forward.9} parent=23 // pred_check
        %p654 = pneg %p51
      $region34: #{gen_block_forward.9} parent=23 // pred_check_branch
        %656 = sbr.rel (%p654) target = $region36
      $region35: #{gen_block_forward.9} parent=23 // pred_region
        _
      $region36: #{gen_block_forward.9} parent=23 // pred_fallthru
        _
      // Predicated region
      $region37: #{gen_block_forward.9} parent=23 // pred_check
        %p657 = pneg %p51
      $region38: #{gen_block_forward.9} parent=23 // pred_check_branch
        %659 = sbr.rel (%p657) target = $region40
      $region39: #{gen_block_forward.9} parent=23 // pred_region
        _
      $region40: #{gen_block_forward.9} parent=23 // pred_fallthru
        _
    $region24: #{gen_block_forward.9} parent=5 // pred_fallthru
      _
    %p660 = scmp.le.s32.totalorder 2, %s7
    // Predicated region
    $region41: #{gen_block_forward.9} parent=5 // pred_check
      %p661 = pneg %p660
    $region42: #{gen_block_forward.9} parent=5 // pred_check_branch
      %663 = sbr.rel (%p661) target = $region44
    $region43: #{gen_block_forward.9} parent=5 // pred_region
      %s664 = ssub.s32 %s7, 2
    $region44: #{gen_block_forward.9} parent=5 // pred_fallthru
      _
  $region6: #{gen_block_forward.9} parent=0 // loop_footer
    %s11 = sadd.s32 1, %s7
  $region7: #{gen_block_forward.9} parent=0 // loop_footer_branch
    %6 = sbr.rel target = $region3
  $region8: #{gen_block_forward.9} parent=0 // loop_exit
    _

// kernel: gen_block_forward.10
$region0: #{gen_block_forward.10}
  #allocation0 [shape = 'u32[]', space=smem, size = 0x4, offset = 0x4, fixed_abs, tag = 'smem constant byte address 0x4 - core index']
  #allocation1 [shape = 'u32[72,128]{1,0:T(1,128)}', space=vmem, size = 0x9000, scoped, tag = 'internal scratch']
  %s0 = inlined_call_operand.vmem [shape: f32[2,1024,8], index: 0, kind: input, shape index: {}]
  %s1 = inlined_call_operand.vmem [shape: f32[2,8], index: 1, kind: input, shape index: {}]
  %s2 = inlined_call_operand.vmem [shape: f32[2,1,8], index: 2, kind: input, shape index: {}]
  %s3 = inlined_call_operand.vmem [shape: f32[2,1,8], index: 3, kind: input, shape index: {}]
  %s4 = inlined_call_operand.vmem [shape: bf16[2,1024,8], index: 4, kind: output, shape index: {}]
  %s5 = sld [smem:[#allocation0]]
  $region49: #{gen_block_forward.10} parent=0
    _
  %s7 = ssub.s32 1, %s5
  %s8 = scalar_select 0, %s7, %s5
  loop: start=0, step=1, limit=6
  $region2: #{gen_block_forward.10} parent=0 // loop_pre_header
    _
  $region3: #{gen_block_forward.10} parent=0 // loop_header
    %s10 = sphi 0, %s14
    %p11 = scmp.ge.s32.totalorder %s10, 6
    %s17 = sphi 0, %s29
    %s18 = sphi 0, %s25
    %s19 = sphi 0, %s17
    %s20 = sphi 0, %s18
    %s21 = sphi 0, %s19
    %s22 = sphi 0, %s20
    %s34 = sphi 0, %s36
    %s37 = sphi 0, %s34
    %s38 = sphi 0, %s37
    %s54 = sphi 0, %s38
    %s58 = sphi 0, %s58
    %s60 = sphi 0, %s58
    %s61 = sphi 0, %s60
    %s75 = sphi 0, %s61
    %s81 = sphi 0, %s83
    %s84 = sphi 0, %s81
    %s85 = sphi 0, %s84
    %s101 = sphi 0, %s85
    %s107 = sphi 0, %s109
    %s110 = sphi 0, %s107
    %s111 = sphi 0, %s110
    %s127 = sphi 0, %s111
    %s135 = sphi 0, %s137
    %s138 = sphi 0, %s135
    %s139 = sphi 0, %s138
    %s155 = sphi 0, %s139
  $region4: #{gen_block_forward.10} parent=0 // loop_header_branch
    %13 = sbr.rel (%p11) target = $region8
  $region5: #{gen_block_forward.10} parent=0 // loop_body
    %s15 = ssub.s32 %s10, 1
    %s16 = ssub.s32 %s10, 2
    %s23 = sadd.s32 1, %s18
    %p24 = scmp.ge.s32.totalorder %s23, 2
    %s25 = scalar_select %p24, 0, %s23
    %s26 = sadd.s32 1, %s17
    %s27 = scalar_select %p24, %s26, %s17
    %p28 = scmp.ge.s32.totalorder %s27, 2
    %s29 = scalar_select %p28, 0, %s27
    %s30 = ssub.s32 %s17, %s29
    %s31 = ssub.s32 %s18, %s25
    %s32 = sor.u32 %s30, %s31
    %p33 = scmp.eq.s32.totalorder %s32, 0
    %s35 = sadd.s32 %s34, 1
    %s36 = scalar_select %p33, %s34, %s35
    %p39 = pneg %p33
    %p40 = scmp.eq.s32.totalorder %s10, 3
    %p41 = por %p39, %p40
    %p42 = scmp.ne.s32.totalorder %s34, %s37
    %p43 = scmp.eq.s32.totalorder %s10, 0
    %p44 = por %p42, %p43
    %p45 = scmp.ne.s32.totalorder %s34, %s37
    %p46 = scmp.eq.s32.totalorder %s15, 3
    %p47 = por %p45, %p46
    %p48 = scmp.ne.s32.totalorder %s37, %s38
    %p49 = scmp.eq.s32.totalorder %s15, 0
    %p50 = por %p48, %p49
    %p51 = scmp.ne.s32.totalorder %s37, %s38
    %p52 = scmp.eq.s32.totalorder %s16, 3
    %p53 = por %p51, %p52
    %p55 = scmp.ne.s32.totalorder %s38, %s54
    %p56 = scmp.eq.s32.totalorder %s16, 0
    %p57 = por %p55, %p56
    %s59 = sadd.s32 %s58, 1
    %p62 = scmp.eq.s32.totalorder %s10, 3
    %p63 = scmp.ne.s32.totalorder %s58, %s60
    %p64 = scmp.eq.s32.totalorder %s10, 0
    %p65 = por %p63, %p64
    %p66 = scmp.ne.s32.totalorder %s58, %s60
    %p67 = scmp.eq.s32.totalorder %s15, 3
    %p68 = por %p66, %p67
    %p69 = scmp.ne.s32.totalorder %s60, %s61
    %p70 = scmp.eq.s32.totalorder %s15, 0
    %p71 = por %p69, %p70
    %p72 = scmp.ne.s32.totalorder %s60, %s61
    %p73 = scmp.eq.s32.totalorder %s16, 3
    %p74 = por %p72, %p73
    %p76 = scmp.ne.s32.totalorder %s61, %s75
    %p77 = scmp.eq.s32.totalorder %s16, 0
    %p78 = por %p76, %p77
    %s79 = ssub.s32 %s17, %s29
    %p80 = scmp.eq.s32.totalorder %s79, 0
    %s82 = sadd.s32 %s81, 1
    %s83 = scalar_select %p80, %s81, %s82
    %p86 = pneg %p80
    %p87 = scmp.eq.s32.totalorder %s10, 3
    %p88 = por %p86, %p87
    %p89 = scmp.ne.s32.totalorder %s81, %s84
    %p90 = scmp.eq.s32.totalorder %s10, 0
    %p91 = por %p89, %p90
    %p92 = scmp.ne.s32.totalorder %s81, %s84
    %p93 = scmp.eq.s32.totalorder %s15, 3
    %p94 = por %p92, %p93
    %p95 = scmp.ne.s32.totalorder %s84, %s85
    %p96 = scmp.eq.s32.totalorder %s15, 0
    %p97 = por %p95, %p96
    %p98 = scmp.ne.s32.totalorder %s84, %s85
    %p99 = scmp.eq.s32.totalorder %s16, 3
    %p100 = por %p98, %p99
    %p102 = scmp.ne.s32.totalorder %s85, %s101
    %p103 = scmp.eq.s32.totalorder %s16, 0
    %p104 = por %p102, %p103
    %s105 = ssub.s32 %s17, %s29
    %p106 = scmp.eq.s32.totalorder %s105, 0
    %s108 = sadd.s32 %s107, 1
    %s109 = scalar_select %p106, %s107, %s108
    %p112 = pneg %p106
    %p113 = scmp.eq.s32.totalorder %s10, 3
    %p114 = por %p112, %p113
    %p115 = scmp.ne.s32.totalorder %s107, %s110
    %p116 = scmp.eq.s32.totalorder %s10, 0
    %p117 = por %p115, %p116
    %p118 = scmp.ne.s32.totalorder %s107, %s110
    %p119 = scmp.eq.s32.totalorder %s15, 3
    %p120 = por %p118, %p119
    %p121 = scmp.ne.s32.totalorder %s110, %s111
    %p122 = scmp.eq.s32.totalorder %s15, 0
    %p123 = por %p121, %p122
    %p124 = scmp.ne.s32.totalorder %s110, %s111
    %p125 = scmp.eq.s32.totalorder %s16, 3
    %p126 = por %p124, %p125
    %p128 = scmp.ne.s32.totalorder %s111, %s127
    %p129 = scmp.eq.s32.totalorder %s16, 0
    %p130 = por %p128, %p129
    %s131 = ssub.s32 %s17, %s29
    %s132 = ssub.s32 %s18, %s25
    %s133 = sor.u32 %s131, %s132
    %p134 = scmp.eq.s32.totalorder %s133, 0
    %s136 = sadd.s32 %s135, 1
    %s137 = scalar_select %p134, %s135, %s136
    %p140 = pneg %p134
    %p141 = scmp.eq.s32.totalorder %s10, 3
    %p142 = por %p140, %p141
    %p143 = scmp.ne.s32.totalorder %s135, %s138
    %p144 = scmp.eq.s32.totalorder %s10, 0
    %p145 = por %p143, %p144
    %p146 = scmp.ne.s32.totalorder %s135, %s138
    %p147 = scmp.eq.s32.totalorder %s15, 3
    %p148 = por %p146, %p147
    %p149 = scmp.ne.s32.totalorder %s138, %s139
    %p150 = scmp.eq.s32.totalorder %s15, 0
    %p151 = por %p149, %p150
    %p152 = scmp.ne.s32.totalorder %s138, %s139
    %p153 = scmp.eq.s32.totalorder %s16, 3
    %p154 = por %p152, %p153
    %p156 = scmp.ne.s32.totalorder %s139, %s155
    %p157 = scmp.eq.s32.totalorder %s16, 0
    %p158 = por %p156, %p157
    %p159 = scmp.le.s32.totalorder 1, %s10
    %p160 = scmp.lt.s32.totalorder %s10, 5
    %p161 = pnand %p159, %p160
    %p162 = pneg %p161
    // Predicated region
    $region9: #{gen_block_forward.10} parent=5 // pred_check
      _
    $region10: #{gen_block_forward.10} parent=5 // pred_check_branch
      %164 = sbr.rel (%p161) target = $region12
    $region11: #{gen_block_forward.10} parent=5 // pred_region
      %s165 = ssub.s32 %s10, 1
      // Predicated region
      $region13: #{gen_block_forward.10} parent=11 // pred_check
        %p166 = pneg %p71
      $region14: #{gen_block_forward.10} parent=11 // pred_check_branch
        %168 = sbr.rel (%p166) target = $region16
      $region15: #{gen_block_forward.10} parent=11 // pred_region
        _
      $region16: #{gen_block_forward.10} parent=11 // pred_fallthru
        _
    $region12: #{gen_block_forward.10} parent=5 // pred_fallthru
      _
    %p169 = scmp.lt.s32.totalorder %s10, 4
    // Predicated region
    $region17: #{gen_block_forward.10} parent=5 // pred_check
      %p170 = pneg %p169
    $region18: #{gen_block_forward.10} parent=5 // pred_check_branch
      %172 = sbr.rel (%p170) target = $region20
    $region19: #{gen_block_forward.10} parent=5 // pred_region
      // Predicated region
      $region21: #{gen_block_forward.10} parent=19 // pred_check
        %p173 = pneg %p44
      $region22: #{gen_block_forward.10} parent=19 // pred_check_branch
        %175 = sbr.rel (%p173) target = $region24
      $region23: #{gen_block_forward.10} parent=19 // pred_region
        %s176 = smul.u32 64, %s18
        %p177 = scmp.lt.s32.totalorder %s17, 1
        %s178 = scalar_select %p177, %s17, 1
        %p179 = scmp.lt.s32.totalorder %s176, 127
        %s180 = scalar_select %p179, %s176, 127
        %s181 = smul.addr %s178, 128
        %s182 = sadd.s32 %s180, %s181
        %s183 = smul.addr %s182, 8
        %s184 = scalar_lea.vmem %s0, %s183
        %s185 = smul.u32 64, %s18
      $region24: #{gen_block_forward.10} parent=19 // pred_fallthru
        _
      // Predicated region
      $region25: #{gen_block_forward.10} parent=19 // pred_check
        %p186 = pneg %p91
      $region26: #{gen_block_forward.10} parent=19 // pred_check_branch
        %188 = sbr.rel (%p186) target = $region28
      $region27: #{gen_block_forward.10} parent=19 // pred_region
        %p189 = scmp.lt.s32.totalorder %s17, 1
        %s190 = scalar_select %p189, %s17, 1
        %s191 = scalar_lea.vmem %s2, %s190
      $region28: #{gen_block_forward.10} parent=19 // pred_fallthru
        _
      // Predicated region
      $region29: #{gen_block_forward.10} parent=19 // pred_check
        %p192 = pneg %p117
      $region30: #{gen_block_forward.10} parent=19 // pred_check_branch
        %194 = sbr.rel (%p192) target = $region32
      $region31: #{gen_block_forward.10} parent=19 // pred_region
        %p195 = scmp.lt.s32.totalorder %s17, 1
        %s196 = scalar_select %p195, %s17, 1
        %s197 = scalar_lea.vmem %s3, %s196
      $region32: #{gen_block_forward.10} parent=19 // pred_fallthru
        _
    $region20: #{gen_block_forward.10} parent=5 // pred_fallthru
      _
    %p198 = scmp.le.s32.totalorder 1, %s10
    %p199 = scmp.lt.s32.totalorder %s10, 5
    %p200 = pnand %p198, %p199
    %p201 = pneg %p200
    // Predicated region
    $region33: #{gen_block_forward.10} parent=5 // pred_check
      _
    $region34: #{gen_block_forward.10} parent=5 // pred_check_branch
      %203 = sbr.rel (%p200) target = $region36
    $region35: #{gen_block_forward.10} parent=5 // pred_region
      %s204 = ssub.s32 %s10, 1
      %s205 = smul.u32 64, %s20
      %p206 = scmp.lt.s32.totalorder %s19, 1
      %s207 = scalar_select %p206, %s19, 1
      %p208 = scmp.lt.s32.totalorder %s205, 127
      %s209 = scalar_select %p208, %s205, 127
      %s210 = smul.addr %s207, 128
      %s211 = sadd.s32 %s209, %s210
      %s212 = smul.addr %s211, 8
      %s213 = scalar_lea.vmem %s0, %s212
      %p214 = pneg %p50
      %p215 = pneg %p47
      %p216 = pneg %p71
      %p217 = pneg %p68
      %p218 = scmp.lt.s32.totalorder %s19, 1
      %s219 = scalar_select %p218, %s19, 1
      %s220 = scalar_lea.vmem %s2, %s219
      %p221 = pneg %p97
      %p222 = pneg %p94
      %p223 = scmp.lt.s32.totalorder %s19, 1
      %s224 = scalar_select %p223, %s19, 1
      %s225 = scalar_lea.vmem %s3, %s224
      %p226 = pneg %p123
      %p227 = pneg %p120
      %p228 = pneg %p151
      %p229 = pneg %p148
      %s230 = smul.u32 64, %s20
      %p231 = scmp.lt.s32.totalorder %s19, 1
      %s232 = scalar_select %p231, %s19, 1
      %p233 = scmp.lt.s32.totalorder %s230, 127
      %s234 = scalar_select %p233, %s230, 127
      %s235 = smul.addr %s232, 128
      %s236 = sadd.s32 %s234, %s235
      %s237 = smul.addr %s236, 4
      %s238 = scalar_lea.vmem %s4, %s237
      %s239 = smul.u32 64, %s20
      %p240 = scmp.lt.s32.totalorder %s19, 1
      %s241 = scalar_select %p240, %s19, 1
      %p242 = scmp.lt.s32.totalorder %s239, 127
      %s243 = scalar_select %p242, %s239, 127
      %s244 = smul.addr %s241, 128
      %s245 = sadd.s32 %s243, %s244
      %s246 = smul.addr %s245, 8
      %s247 = scalar_lea.vmem %s0, %s246
      %s248 = smul.u32 64, %s20
      %p249 = scmp.lt.s32.totalorder %s19, 1
      %s250 = scalar_select %p249, %s19, 1
      %s251 = scalar_lea.vmem %s2, %s250
      %p252 = scmp.lt.s32.totalorder %s19, 1
      %s253 = scalar_select %p252, %s19, 1
      %s254 = scalar_lea.vmem %s3, %s253
      %s255 = smul.u32 64, %s20
      %p256 = scmp.lt.s32.totalorder %s19, 1
      %s257 = scalar_select %p256, %s19, 1
      %p258 = scmp.lt.s32.totalorder %s255, 127
      %s259 = scalar_select %p258, %s255, 127
      %s260 = smul.addr %s257, 128
      %s261 = sadd.s32 %s259, %s260
      %s262 = smul.addr %s261, 4
      %s263 = scalar_lea.vmem %s4, %s262
      %s264 = smul.u32 64, %s20
      %v265 = vld [vmem:[%s1] sm:$0x1]
      %v266 = vld [vmem:[%s1 + $0x1] sm:$0x1]
      %v267 = vadd.f32 %v266, 1e-05
      %v268 = vrsqrt.pop %v267
      %v269 = vmul.f32 %v268, %v267
      %v270 = vmul.f32 %v269, %v268
      %v271 = vmul.f32 0.5, %v270
      %v272 = vsub.f32 1.5, %v271
      %v273 = vmul.f32 %v268, %v272
      %vm274 = vweird.f32 %v267
      %vm275 = vweird.f32 %v268
      %vm276 = vmor %vm274, %vm275
      %v277 = vsel %vm276, %v268, %v273
      %v278 = vld [vmem:[%s251] sm:$0x1]
      %v279 = vmul.f32 %v278, %v277
      %v280 = vld [vmem:[%s254] sm:$0x1]
      %v281 = vmul.f32 %v265, %v279
      %v282 = vsub.f32 %v280, %v281
      %v283 = vld [vmem:[%s247] sm:$0xff]
      %v284 = vld [vmem:[%s247 + $0x8] sm:$0xff]
      %v285 = vld [vmem:[%s247 + $0x10] sm:$0xff]
      %v286 = vld [vmem:[%s247 + $0x18] sm:$0xff]
      %v287 = vld [vmem:[%s247 + $0x20] sm:$0xff]
      %v288 = vld [vmem:[%s247 + $0x28] sm:$0xff]
      %v289 = vld [vmem:[%s247 + $0x30] sm:$0xff]
      %v290 = vld [vmem:[%s247 + $0x38] sm:$0xff]
      %v291 = vld [vmem:[%s247 + $0x40] sm:$0xff]
      %v292 = vld [vmem:[%s247 + $0x48] sm:$0xff]
      %v293 = vld [vmem:[%s247 + $0x50] sm:$0xff]
      %v294 = vld [vmem:[%s247 + $0x58] sm:$0xff]
      %v295 = vld [vmem:[%s247 + $0x60] sm:$0xff]
      %v296 = vld [vmem:[%s247 + $0x68] sm:$0xff]
      %v297 = vld [vmem:[%s247 + $0x70] sm:$0xff]
      %v298 = vld [vmem:[%s247 + $0x78] sm:$0xff]
      %v299 = vld [vmem:[%s247 + $0x80] sm:$0xff]
      %v300 = vld [vmem:[%s247 + $0x88] sm:$0xff]
      %v301 = vld [vmem:[%s247 + $0x90] sm:$0xff]
      %v302 = vld [vmem:[%s247 + $0x98] sm:$0xff]
      %v303 = vld [vmem:[%s247 + $0xa0] sm:$0xff]
      %v304 = vld [vmem:[%s247 + $0xa8] sm:$0xff]
      %v305 = vld [vmem:[%s247 + $0xb0] sm:$0xff]
      %v306 = vld [vmem:[%s247 + $0xb8] sm:$0xff]
      %v307 = vld [vmem:[%s247 + $0xc0] sm:$0xff]
      %v308 = vld [vmem:[%s247 + $0xc8] sm:$0xff]
      %v309 = vld [vmem:[%s247 + $0xd0] sm:$0xff]
      %v310 = vld [vmem:[%s247 + $0xd8] sm:$0xff]
      %v311 = vld [vmem:[%s247 + $0xe0] sm:$0xff]
      %v312 = vld [vmem:[%s247 + $0xe8] sm:$0xff]
      %v313 = vld [vmem:[%s247 + $0xf0] sm:$0xff]
      %v314 = vld [vmem:[%s247 + $0xf8] sm:$0xff]
      %v315 = vld [vmem:[%s247 + $0x100] sm:$0xff]
      %v316 = vld [vmem:[%s247 + $0x108] sm:$0xff]
      %v317 = vld [vmem:[%s247 + $0x110] sm:$0xff]
      %v318 = vld [vmem:[%s247 + $0x118] sm:$0xff]
      %v319 = vld [vmem:[%s247 + $0x120] sm:$0xff]
      %v320 = vld [vmem:[%s247 + $0x128] sm:$0xff]
      %v321 = vld [vmem:[%s247 + $0x130] sm:$0xff]
      %v322 = vld [vmem:[%s247 + $0x138] sm:$0xff]
      %v323 = vld [vmem:[%s247 + $0x140] sm:$0xff]
      %v324 = vld [vmem:[%s247 + $0x148] sm:$0xff]
      %v325 = vld [vmem:[%s247 + $0x150] sm:$0xff]
      %v326 = vld [vmem:[%s247 + $0x158] sm:$0xff]
      %v327 = vld [vmem:[%s247 + $0x160] sm:$0xff]
      %v328 = vld [vmem:[%s247 + $0x168] sm:$0xff]
      %v329 = vld [vmem:[%s247 + $0x170] sm:$0xff]
      %v330 = vld [vmem:[%s247 + $0x178] sm:$0xff]
      %v331 = vld [vmem:[%s247 + $0x180] sm:$0xff]
      %v332 = vld [vmem:[%s247 + $0x188] sm:$0xff]
      %v333 = vld [vmem:[%s247 + $0x190] sm:$0xff]
      %v334 = vld [vmem:[%s247 + $0x198] sm:$0xff]
      %v335 = vld [vmem:[%s247 + $0x1a0] sm:$0xff]
      %v336 = vld [vmem:[%s247 + $0x1a8] sm:$0xff]
      %v337 = vld [vmem:[%s247 + $0x1b0] sm:$0xff]
      %v338 = vld [vmem:[%s247 + $0x1b8] sm:$0xff]
      %v339 = vld [vmem:[%s247 + $0x1c0] sm:$0xff]
      %v340 = vld [vmem:[%s247 + $0x1c8] sm:$0xff]
      %v341 = vld [vmem:[%s247 + $0x1d0] sm:$0xff]
      %v342 = vld [vmem:[%s247 + $0x1d8] sm:$0xff]
      %v343 = vld [vmem:[%s247 + $0x1e0] sm:$0xff]
      %v344 = vld [vmem:[%s247 + $0x1e8] sm:$0xff]
      %v345 = vld [vmem:[%s247 + $0x1f0] sm:$0xff]
      %v346 = vld [vmem:[%s247 + $0x1f8] sm:$0xff]
      %v348 = vperm.slane %v279, 0
      %v350 = vmul.f32 %v283, %v348
      %v351 = vmul.f32 %v284, %v348
      %v352 = vmul.f32 %v285, %v348
      %v353 = vmul.f32 %v286, %v348
      %v354 = vmul.f32 %v287, %v348
      %v355 = vmul.f32 %v288, %v348
      %v356 = vmul.f32 %v289, %v348
      %v357 = vmul.f32 %v290, %v348
      %v358 = vmul.f32 %v291, %v348
      %v359 = vmul.f32 %v292, %v348
      %v360 = vmul.f32 %v293, %v348
      %v361 = vmul.f32 %v294, %v348
      %v362 = vmul.f32 %v295, %v348
      %v363 = vmul.f32 %v296, %v348
      %v364 = vmul.f32 %v297, %v348
      %v365 = vmul.f32 %v298, %v348
      %v366 = vmul.f32 %v299, %v348
      %v367 = vmul.f32 %v300, %v348
      %v368 = vmul.f32 %v301, %v348
      %v369 = vmul.f32 %v302, %v348
      %v370 = vmul.f32 %v303, %v348
      %v371 = vmul.f32 %v304, %v348
      %v372 = vmul.f32 %v305, %v348
      %v373 = vmul.f32 %v306, %v348
      %v374 = vmul.f32 %v307, %v348
      %v375 = vmul.f32 %v308, %v348
      %v376 = vmul.f32 %v309, %v348
      %v377 = vmul.f32 %v310, %v348
      %v378 = vmul.f32 %v311, %v348
      %v379 = vmul.f32 %v312, %v348
      %v380 = vmul.f32 %v313, %v348
      %v381 = vmul.f32 %v314, %v348
      %v382 = vmul.f32 %v315, %v348
      %v383 = vmul.f32 %v316, %v348
      %v384 = vmul.f32 %v317, %v348
      %v385 = vmul.f32 %v318, %v348
      %v386 = vmul.f32 %v319, %v348
      %v387 = vmul.f32 %v320, %v348
      %v388 = vmul.f32 %v321, %v348
      %v389 = vmul.f32 %v322, %v348
      %v390 = vmul.f32 %v323, %v348
      %v391 = vmul.f32 %v324, %v348
      %v392 = vmul.f32 %v325, %v348
      %v393 = vmul.f32 %v326, %v348
      %v394 = vmul.f32 %v327, %v348
      %v395 = vmul.f32 %v328, %v348
      %v396 = vmul.f32 %v329, %v348
      %v397 = vmul.f32 %v330, %v348
      %v398 = vmul.f32 %v331, %v348
      %v399 = vmul.f32 %v332, %v348
      %v400 = vmul.f32 %v333, %v348
      %v401 = vmul.f32 %v334, %v348
      %v402 = vmul.f32 %v335, %v348
      %v403 = vmul.f32 %v336, %v348
      %v404 = vmul.f32 %v337, %v348
      %v405 = vmul.f32 %v338, %v348
      %v406 = vmul.f32 %v339, %v348
      %v407 = vmul.f32 %v340, %v348
      %v408 = vmul.f32 %v341, %v348
      %v409 = vmul.f32 %v342, %v348
      %v410 = vmul.f32 %v343, %v348
      %v411 = vmul.f32 %v344, %v348
      %v412 = vmul.f32 %v345, %v348
      %v413 = vmul.f32 %v346, %v348
      %v415 = vperm.slane %v282, 0
      %v417 = vadd.f32 %v350, %v415
      %v418 = vadd.f32 %v351, %v415
      %v419 = vadd.f32 %v352, %v415
      %v420 = vadd.f32 %v353, %v415
      %v421 = vadd.f32 %v354, %v415
      %v422 = vadd.f32 %v355, %v415
      %v423 = vadd.f32 %v356, %v415
      %v424 = vadd.f32 %v357, %v415
      %v425 = vadd.f32 %v358, %v415
      %v426 = vadd.f32 %v359, %v415
      %v427 = vadd.f32 %v360, %v415
      %v428 = vadd.f32 %v361, %v415
      %v429 = vadd.f32 %v362, %v415
      %v430 = vadd.f32 %v363, %v415
      %v431 = vadd.f32 %v364, %v415
      %v432 = vadd.f32 %v365, %v415
      %v433 = vadd.f32 %v366, %v415
      %v434 = vadd.f32 %v367, %v415
      %v435 = vadd.f32 %v368, %v415
      %v436 = vadd.f32 %v369, %v415
      %v437 = vadd.f32 %v370, %v415
      %v438 = vadd.f32 %v371, %v415
      %v439 = vadd.f32 %v372, %v415
      %v440 = vadd.f32 %v373, %v415
      %v441 = vadd.f32 %v374, %v415
      %v442 = vadd.f32 %v375, %v415
      %v443 = vadd.f32 %v376, %v415
      %v444 = vadd.f32 %v377, %v415
      %v445 = vadd.f32 %v378, %v415
      %v446 = vadd.f32 %v379, %v415
      %v447 = vadd.f32 %v380, %v415
      %v448 = vadd.f32 %v381, %v415
      %v449 = vadd.f32 %v382, %v415
      %v450 = vadd.f32 %v383, %v415
      %v451 = vadd.f32 %v384, %v415
      %v452 = vadd.f32 %v385, %v415
      %v453 = vadd.f32 %v386, %v415
      %v454 = vadd.f32 %v387, %v415
      %v455 = vadd.f32 %v388, %v415
      %v456 = vadd.f32 %v389, %v415
      %v457 = vadd.f32 %v390, %v415
      %v458 = vadd.f32 %v391, %v415
      %v459 = vadd.f32 %v392, %v415
      %v460 = vadd.f32 %v393, %v415
      %v461 = vadd.f32 %v394, %v415
      %v462 = vadd.f32 %v395, %v415
      %v463 = vadd.f32 %v396, %v415
      %v464 = vadd.f32 %v397, %v415
      %v465 = vadd.f32 %v398, %v415
      %v466 = vadd.f32 %v399, %v415
      %v467 = vadd.f32 %v400, %v415
      %v468 = vadd.f32 %v401, %v415
      %v469 = vadd.f32 %v402, %v415
      %v470 = vadd.f32 %v403, %v415
      %v471 = vadd.f32 %v404, %v415
      %v472 = vadd.f32 %v405, %v415
      %v473 = vadd.f32 %v406, %v415
      %v474 = vadd.f32 %v407, %v415
      %v475 = vadd.f32 %v408, %v415
      %v476 = vadd.f32 %v409, %v415
      %v477 = vadd.f32 %v410, %v415
      %v478 = vadd.f32 %v411, %v415
      %v479 = vadd.f32 %v412, %v415
      %v480 = vadd.f32 %v413, %v415
      %v481 = vmax.f32 %v417, 0.0
      %v482 = vmax.f32 %v418, 0.0
      %v483 = vmax.f32 %v419, 0.0
      %v484 = vmax.f32 %v420, 0.0
      %v485 = vmax.f32 %v421, 0.0
      %v486 = vmax.f32 %v422, 0.0
      %v487 = vmax.f32 %v423, 0.0
      %v488 = vmax.f32 %v424, 0.0
      %v489 = vmax.f32 %v425, 0.0
      %v490 = vmax.f32 %v426, 0.0
      %v491 = vmax.f32 %v427, 0.0
      %v492 = vmax.f32 %v428, 0.0
      %v493 = vmax.f32 %v429, 0.0
      %v494 = vmax.f32 %v430, 0.0
      %v495 = vmax.f32 %v431, 0.0
      %v496 = vmax.f32 %v432, 0.0
      %v497 = vmax.f32 %v433, 0.0
      %v498 = vmax.f32 %v434, 0.0
      %v499 = vmax.f32 %v435, 0.0
      %v500 = vmax.f32 %v436, 0.0
      %v501 = vmax.f32 %v437, 0.0
      %v502 = vmax.f32 %v438, 0.0
      %v503 = vmax.f32 %v439, 0.0
      %v504 = vmax.f32 %v440, 0.0
      %v505 = vmax.f32 %v441, 0.0
      %v506 = vmax.f32 %v442, 0.0
      %v507 = vmax.f32 %v443, 0.0
      %v508 = vmax.f32 %v444, 0.0
      %v509 = vmax.f32 %v445, 0.0
      %v510 = vmax.f32 %v446, 0.0
      %v511 = vmax.f32 %v447, 0.0
      %v512 = vmax.f32 %v448, 0.0
      %v513 = vmax.f32 %v449, 0.0
      %v514 = vmax.f32 %v450, 0.0
      %v515 = vmax.f32 %v451, 0.0
      %v516 = vmax.f32 %v452, 0.0
      %v517 = vmax.f32 %v453, 0.0
      %v518 = vmax.f32 %v454, 0.0
      %v519 = vmax.f32 %v455, 0.0
      %v520 = vmax.f32 %v456, 0.0
      %v521 = vmax.f32 %v457, 0.0
      %v522 = vmax.f32 %v458, 0.0
      %v523 = vmax.f32 %v459, 0.0
      %v524 = vmax.f32 %v460, 0.0
      %v525 = vmax.f32 %v461, 0.0
      %v526 = vmax.f32 %v462, 0.0
      %v527 = vmax.f32 %v463, 0.0
      %v528 = vmax.f32 %v464, 0.0
      %v529 = vmax.f32 %v465, 0.0
      %v530 = vmax.f32 %v466, 0.0
      %v531 = vmax.f32 %v467, 0.0
      %v532 = vmax.f32 %v468, 0.0
      %v533 = vmax.f32 %v469, 0.0
      %v534 = vmax.f32 %v470, 0.0
      %v535 = vmax.f32 %v471, 0.0
      %v536 = vmax.f32 %v472, 0.0
      %v537 = vmax.f32 %v473, 0.0
      %v538 = vmax.f32 %v474, 0.0
      %v539 = vmax.f32 %v475, 0.0
      %v540 = vmax.f32 %v476, 0.0
      %v541 = vmax.f32 %v477, 0.0
      %v542 = vmax.f32 %v478, 0.0
      %v543 = vmax.f32 %v479, 0.0
      %v544 = vmax.f32 %v480, 0.0
      %v545 = vpack.c.bf16 %v481, %v481
      %v546 = vpack.c.bf16 %v482, %v482
      %v547 = vpack.c.bf16 %v483, %v483
      %v548 = vpack.c.bf16 %v484, %v484
      %v549 = vpack.c.bf16 %v485, %v485
      %v550 = vpack.c.bf16 %v486, %v486
      %v551 = vpack.c.bf16 %v487, %v487
      %v552 = vpack.c.bf16 %v488, %v488
      %v553 = vpack.c.bf16 %v489, %v489
      %v554 = vpack.c.bf16 %v490, %v490
      %v555 = vpack.c.bf16 %v491, %v491
      %v556 = vpack.c.bf16 %v492, %v492
      %v557 = vpack.c.bf16 %v493, %v493
      %v558 = vpack.c.bf16 %v494, %v494
      %v559 = vpack.c.bf16 %v495, %v495
      %v560 = vpack.c.bf16 %v496, %v496
      %v561 = vpack.c.bf16 %v497, %v497
      %v562 = vpack.c.bf16 %v498, %v498
      %v563 = vpack.c.bf16 %v499, %v499
      %v564 = vpack.c.bf16 %v500, %v500
      %v565 = vpack.c.bf16 %v501, %v501
      %v566 = vpack.c.bf16 %v502, %v502
      %v567 = vpack.c.bf16 %v503, %v503
      %v568 = vpack.c.bf16 %v504, %v504
      %v569 = vpack.c.bf16 %v505, %v505
      %v570 = vpack.c.bf16 %v506, %v506
      %v571 = vpack.c.bf16 %v507, %v507
      %v572 = vpack.c.bf16 %v508, %v508
      %v573 = vpack.c.bf16 %v509, %v509
      %v574 = vpack.c.bf16 %v510, %v510
      %v575 = vpack.c.bf16 %v511, %v511
      %v576 = vpack.c.bf16 %v512, %v512
      %v577 = vpack.c.bf16 %v513, %v513
      %v578 = vpack.c.bf16 %v514, %v514
      %v579 = vpack.c.bf16 %v515, %v515
      %v580 = vpack.c.bf16 %v516, %v516
      %v581 = vpack.c.bf16 %v517, %v517
      %v582 = vpack.c.bf16 %v518, %v518
      %v583 = vpack.c.bf16 %v519, %v519
      %v584 = vpack.c.bf16 %v520, %v520
      %v585 = vpack.c.bf16 %v521, %v521
      %v586 = vpack.c.bf16 %v522, %v522
      %v587 = vpack.c.bf16 %v523, %v523
      %v588 = vpack.c.bf16 %v524, %v524
      %v589 = vpack.c.bf16 %v525, %v525
      %v590 = vpack.c.bf16 %v526, %v526
      %v591 = vpack.c.bf16 %v527, %v527
      %v592 = vpack.c.bf16 %v528, %v528
      %v593 = vpack.c.bf16 %v529, %v529
      %v594 = vpack.c.bf16 %v530, %v530
      %v595 = vpack.c.bf16 %v531, %v531
      %v596 = vpack.c.bf16 %v532, %v532
      %v597 = vpack.c.bf16 %v533, %v533
      %v598 = vpack.c.bf16 %v534, %v534
      %v599 = vpack.c.bf16 %v535, %v535
      %v600 = vpack.c.bf16 %v536, %v536
      %v601 = vpack.c.bf16 %v537, %v537
      %v602 = vpack.c.bf16 %v538, %v538
      %v603 = vpack.c.bf16 %v539, %v539
      %v604 = vpack.c.bf16 %v540, %v540
      %v605 = vpack.c.bf16 %v541, %v541
      %v606 = vpack.c.bf16 %v542, %v542
      %v607 = vpack.c.bf16 %v543, %v543
      %v608 = vpack.c.bf16 %v544, %v544
      %vm609 = vcmask 60416
      %610 = vst.msk [vmem:[%s263] sm:$0xf] %vm609, %v545
      %611 = vst.msk [vmem:[%s263 + $0x4] sm:$0xf] %vm609, %v546
      %612 = vst.msk [vmem:[%s263 + $0x8] sm:$0xf] %vm609, %v547
      %613 = vst.msk [vmem:[%s263 + $0xc] sm:$0xf] %vm609, %v548
      %614 = vst.msk [vmem:[%s263 + $0x10] sm:$0xf] %vm609, %v549
      %615 = vst.msk [vmem:[%s263 + $0x14] sm:$0xf] %vm609, %v550
      %616 = vst.msk [vmem:[%s263 + $0x18] sm:$0xf] %vm609, %v551
      %617 = vst.msk [vmem:[%s263 + $0x1c] sm:$0xf] %vm609, %v552
      %618 = vst.msk [vmem:[%s263 + $0x20] sm:$0xf] %vm609, %v553
      %619 = vst.msk [vmem:[%s263 + $0x24] sm:$0xf] %vm609, %v554
      %620 = vst.msk [vmem:[%s263 + $0x28] sm:$0xf] %vm609, %v555
      %621 = vst.msk [vmem:[%s263 + $0x2c] sm:$0xf] %vm609, %v556
      %622 = vst.msk [vmem:[%s263 + $0x30] sm:$0xf] %vm609, %v557
      %623 = vst.msk [vmem:[%s263 + $0x34] sm:$0xf] %vm609, %v558
      %624 = vst.msk [vmem:[%s263 + $0x38] sm:$0xf] %vm609, %v559
      %625 = vst.msk [vmem:[%s263 + $0x3c] sm:$0xf] %vm609, %v560
      %626 = vst.msk [vmem:[%s263 + $0x40] sm:$0xf] %vm609, %v561
      %627 = vst.msk [vmem:[%s263 + $0x44] sm:$0xf] %vm609, %v562
      %628 = vst.msk [vmem:[%s263 + $0x48] sm:$0xf] %vm609, %v563
      %629 = vst.msk [vmem:[%s263 + $0x4c] sm:$0xf] %vm609, %v564
      %630 = vst.msk [vmem:[%s263 + $0x50] sm:$0xf] %vm609, %v565
      %631 = vst.msk [vmem:[%s263 + $0x54] sm:$0xf] %vm609, %v566
      %632 = vst.msk [vmem:[%s263 + $0x58] sm:$0xf] %vm609, %v567
      %633 = vst.msk [vmem:[%s263 + $0x5c] sm:$0xf] %vm609, %v568
      %634 = vst.msk [vmem:[%s263 + $0x60] sm:$0xf] %vm609, %v569
      %635 = vst.msk [vmem:[%s263 + $0x64] sm:$0xf] %vm609, %v570
      %636 = vst.msk [vmem:[%s263 + $0x68] sm:$0xf] %vm609, %v571
      %637 = vst.msk [vmem:[%s263 + $0x6c] sm:$0xf] %vm609, %v572
      %638 = vst.msk [vmem:[%s263 + $0x70] sm:$0xf] %vm609, %v573
      %639 = vst.msk [vmem:[%s263 + $0x74] sm:$0xf] %vm609, %v574
      %640 = vst.msk [vmem:[%s263 + $0x78] sm:$0xf] %vm609, %v575
      %641 = vst.msk [vmem:[%s263 + $0x7c] sm:$0xf] %vm609, %v576
      %642 = vst.msk [vmem:[%s263 + $0x80] sm:$0xf] %vm609, %v577
      %643 = vst.msk [vmem:[%s263 + $0x84] sm:$0xf] %vm609, %v578
      %644 = vst.msk [vmem:[%s263 + $0x88] sm:$0xf] %vm609, %v579
      %645 = vst.msk [vmem:[%s263 + $0x8c] sm:$0xf] %vm609, %v580
      %646 = vst.msk [vmem:[%s263 + $0x90] sm:$0xf] %vm609, %v581
      %647 = vst.msk [vmem:[%s263 + $0x94] sm:$0xf] %vm609, %v582
      %648 = vst.msk [vmem:[%s263 + $0x98] sm:$0xf] %vm609, %v583
      %649 = vst.msk [vmem:[%s263 + $0x9c] sm:$0xf] %vm609, %v584
      %650 = vst.msk [vmem:[%s263 + $0xa0] sm:$0xf] %vm609, %v585
      %651 = vst.msk [vmem:[%s263 + $0xa4] sm:$0xf] %vm609, %v586
      %652 = vst.msk [vmem:[%s263 + $0xa8] sm:$0xf] %vm609, %v587
      %653 = vst.msk [vmem:[%s263 + $0xac] sm:$0xf] %vm609, %v588
      %654 = vst.msk [vmem:[%s263 + $0xb0] sm:$0xf] %vm609, %v589
      %655 = vst.msk [vmem:[%s263 + $0xb4] sm:$0xf] %vm609, %v590
      %656 = vst.msk [vmem:[%s263 + $0xb8] sm:$0xf] %vm609, %v591
      %657 = vst.msk [vmem:[%s263 + $0xbc] sm:$0xf] %vm609, %v592
      %658 = vst.msk [vmem:[%s263 + $0xc0] sm:$0xf] %vm609, %v593
      %659 = vst.msk [vmem:[%s263 + $0xc4] sm:$0xf] %vm609, %v594
      %660 = vst.msk [vmem:[%s263 + $0xc8] sm:$0xf] %vm609, %v595
      %661 = vst.msk [vmem:[%s263 + $0xcc] sm:$0xf] %vm609, %v596
      %662 = vst.msk [vmem:[%s263 + $0xd0] sm:$0xf] %vm609, %v597
      %663 = vst.msk [vmem:[%s263 + $0xd4] sm:$0xf] %vm609, %v598
      %664 = vst.msk [vmem:[%s263 + $0xd8] sm:$0xf] %vm609, %v599
      %665 = vst.msk [vmem:[%s263 + $0xdc] sm:$0xf] %vm609, %v600
      %666 = vst.msk [vmem:[%s263 + $0xe0] sm:$0xf] %vm609, %v601
      %667 = vst.msk [vmem:[%s263 + $0xe4] sm:$0xf] %vm609, %v602
      %668 = vst.msk [vmem:[%s263 + $0xe8] sm:$0xf] %vm609, %v603
      %669 = vst.msk [vmem:[%s263 + $0xec] sm:$0xf] %vm609, %v604
      %670 = vst.msk [vmem:[%s263 + $0xf0] sm:$0xf] %vm609, %v605
      %671 = vst.msk [vmem:[%s263 + $0xf4] sm:$0xf] %vm609, %v606
      %672 = vst.msk [vmem:[%s263 + $0xf8] sm:$0xf] %vm609, %v607
      %673 = vst.msk [vmem:[%s263 + $0xfc] sm:$0xf] %vm609, %v608
      %s674 = smul.u32 64, %s20
      %p675 = scmp.lt.s32.totalorder %s19, 1
      %s676 = scalar_select %p675, %s19, 1
      %p677 = scmp.lt.s32.totalorder %s674, 127
      %s678 = scalar_select %p677, %s674, 127
      %s679 = smul.addr %s676, 128
      %s680 = sadd.s32 %s678, %s679
      %s681 = smul.addr %s680, 4
      %s682 = scalar_lea.vmem %s4, %s681
      // Predicated region
      $region37: #{gen_block_forward.10} parent=35 // pred_check
        %p683 = pneg %p148
      $region38: #{gen_block_forward.10} parent=35 // pred_check_branch
        %685 = sbr.rel (%p683) target = $region40
      $region39: #{gen_block_forward.10} parent=35 // pred_region
        %s686 = smul.u32 64, %s20
      $region40: #{gen_block_forward.10} parent=35 // pred_fallthru
        _
    $region36: #{gen_block_forward.10} parent=5 // pred_fallthru
      _
    %p687 = scmp.le.s32.totalorder 2, %s10
    // Predicated region
    $region41: #{gen_block_forward.10} parent=5 // pred_check
      %p688 = pneg %p687
    $region42: #{gen_block_forward.10} parent=5 // pred_check_branch
      %690 = sbr.rel (%p688) target = $region44
    $region43: #{gen_block_forward.10} parent=5 // pred_region
      %s691 = ssub.s32 %s10, 2
      // Predicated region
      $region45: #{gen_block_forward.10} parent=43 // pred_check
        %p692 = pneg %p154
      $region46: #{gen_block_forward.10} parent=43 // pred_check_branch
        %694 = sbr.rel (%p692) target = $region48
      $region47: #{gen_block_forward.10} parent=43 // pred_region
        %s695 = smul.u32 64, %s22
        %p696 = scmp.lt.s32.totalorder %s21, 1
        %s697 = scalar_select %p696, %s21, 1
        %p698 = scmp.lt.s32.totalorder %s695, 127
        %s699 = scalar_select %p698, %s695, 127
        %s700 = smul.addr %s697, 128
        %s701 = sadd.s32 %s699, %s700
        %s702 = smul.addr %s701, 4
        %s703 = scalar_lea.vmem %s4, %s702
      $region48: #{gen_block_forward.10} parent=43 // pred_fallthru
        _
    $region44: #{gen_block_forward.10} parent=5 // pred_fallthru
      _
  $region6: #{gen_block_forward.10} parent=0 // loop_footer
    %s14 = sadd.s32 1, %s10
  $region7: #{gen_block_forward.10} parent=0 // loop_footer_branch
    %9 = sbr.rel target = $region3
  $region8: #{gen_block_forward.10} parent=0 // loop_exit
    _

// kernel: gen_block_forward.11
$region0: #{gen_block_forward.11}
  #allocation0 [shape = 'u32[]', space=smem, size = 0x4, offset = 0x4, fixed_abs, tag = 'smem constant byte address 0x4 - core index']
  #allocation1 [shape = 'u32[72,128]{1,0:T(1,128)}', space=vmem, size = 0x9000, scoped, tag = 'internal scratch']
  #allocation2 [shape = 'f32[512,8]{1,0:T(8,128)}', space=vmem, size = 0x40000, scoped, tag = 'scratch operand']
  %s0 = inlined_call_operand.vmem [shape: bf16[2048,72], index: 0, kind: input, shape index: {}]
  %s1 = inlined_call_operand.vmem [shape: bf16[72,8], index: 1, kind: input, shape index: {}]
  %s2 = inlined_call_operand.vmem [shape: f32[1,8], index: 2, kind: input, shape index: {}]
  %s3 = inlined_call_operand.vmem [shape: bf16[2048,4], index: 3, kind: input, shape index: {}]
  %s4 = inlined_call_operand.vmem [shape: bf16[4,8], index: 4, kind: input, shape index: {}]
  %s5 = inlined_call_operand.vmem [shape: f32[1,8], index: 5, kind: input, shape index: {}]
  %s6 = inlined_call_operand.vmem [shape: f32[2048,8], index: 6, kind: output, shape index: {}]
  %s7 = sld [smem:[#allocation0]]
  $region65: #{gen_block_forward.11} parent=0
    _
  %s9 = ssub.s32 1, %s7
  %s10 = scalar_select 0, %s9, %s7
  loop: start=0, step=1, limit=6
  $region2: #{gen_block_forward.11} parent=0 // loop_pre_header
    _
  $region3: #{gen_block_forward.11} parent=0 // loop_header
    %s12 = sphi 0, %s16
    %p13 = scmp.ge.s32.totalorder %s12, 6
    %s19 = sphi 0, %s31
    %s20 = sphi 0, %s27
    %s21 = sphi 0, %s19
    %s22 = sphi 0, %s20
    %s23 = sphi 0, %s21
    %s24 = sphi 0, %s22
    %s36 = sphi 0, %s38
    %s39 = sphi 0, %s36
    %s40 = sphi 0, %s39
    %s56 = sphi 0, %s40
    %s62 = sphi 0, %s64
    %s65 = sphi 0, %s62
    %s66 = sphi 0, %s65
    %s82 = sphi 0, %s66
    %s86 = sphi 0, %s86
    %s88 = sphi 0, %s86
    %s89 = sphi 0, %s88
    %s103 = sphi 0, %s89
    %s109 = sphi 0, %s111
    %s112 = sphi 0, %s109
    %s113 = sphi 0, %s112
    %s129 = sphi 0, %s113
    %s133 = sphi 0, %s133
    %s135 = sphi 0, %s133
    %s136 = sphi 0, %s135
    %s150 = sphi 0, %s136
    %s154 = sphi 0, %s154
    %s156 = sphi 0, %s154
    %s157 = sphi 0, %s156
    %s171 = sphi 0, %s157
    %s177 = sphi 0, %s179
    %s180 = sphi 0, %s177
    %s181 = sphi 0, %s180
    %s197 = sphi 0, %s181
  $region4: #{gen_block_forward.11} parent=0 // loop_header_branch
    %15 = sbr.rel (%p13) target = $region8
  $region5: #{gen_block_forward.11} parent=0 // loop_body
    %s17 = ssub.s32 %s12, 1
    %s18 = ssub.s32 %s12, 2
    %s25 = sadd.s32 1, %s20
    %p26 = scmp.ge.s32.totalorder %s25, 1
    %s27 = scalar_select %p26, 0, %s25
    %s28 = sadd.s32 1, %s19
    %s29 = scalar_select %p26, %s28, %s19
    %p30 = scmp.ge.s32.totalorder %s29, 4
    %s31 = scalar_select %p30, 0, %s29
    %s32 = ssub.s32 %s19, %s31
    %s33 = ssub.s32 %s20, %s27
    %s34 = sor.u32 %s32, %s33
    %p35 = scmp.eq.s32.totalorder %s34, 0
    %s37 = sadd.s32 %s36, 1
    %s38 = scalar_select %p35, %s36, %s37
    %p41 = pneg %p35
    %p42 = scmp.eq.s32.totalorder %s12, 3
    %p43 = por %p41, %p42
    %p44 = scmp.ne.s32.totalorder %s36, %s39
    %p45 = scmp.eq.s32.totalorder %s12, 0
    %p46 = por %p44, %p45
    %p47 = scmp.ne.s32.totalorder %s36, %s39
    %p48 = scmp.eq.s32.totalorder %s17, 3
    %p49 = por %p47, %p48
    %p50 = scmp.ne.s32.totalorder %s39, %s40
    %p51 = scmp.eq.s32.totalorder %s17, 0
    %p52 = por %p50, %p51
    %p53 = scmp.ne.s32.totalorder %s39, %s40
    %p54 = scmp.eq.s32.totalorder %s18, 3
    %p55 = por %p53, %p54
    %p57 = scmp.ne.s32.totalorder %s40, %s56
    %p58 = scmp.eq.s32.totalorder %s18, 0
    %p59 = por %p57, %p58
    %s60 = ssub.s32 %s20, %s27
    %p61 = scmp.eq.s32.totalorder %s60, 0
    %s63 = sadd.s32 %s62, 1
    %s64 = scalar_select %p61, %s62, %s63
    %p67 = pneg %p61
    %p68 = scmp.eq.s32.totalorder %s12, 3
    %p69 = por %p67, %p68
    %p70 = scmp.ne.s32.totalorder %s62, %s65
    %p71 = scmp.eq.s32.totalorder %s12, 0
    %p72 = por %p70, %p71
    %p73 = scmp.ne.s32.totalorder %s62, %s65
    %p74 = scmp.eq.s32.totalorder %s17, 3
    %p75 = por %p73, %p74
    %p76 = scmp.ne.s32.totalorder %s65, %s66
    %p77 = scmp.eq.s32.totalorder %s17, 0
    %p78 = por %p76, %p77
    %p79 = scmp.ne.s32.totalorder %s65, %s66
    %p80 = scmp.eq.s32.totalorder %s18, 3
    %p81 = por %p79, %p80
    %p83 = scmp.ne.s32.totalorder %s66, %s82
    %p84 = scmp.eq.s32.totalorder %s18, 0
    %p85 = por %p83, %p84
    %s87 = sadd.s32 %s86, 1
    %p90 = scmp.eq.s32.totalorder %s12, 3
    %p91 = scmp.ne.s32.totalorder %s86, %s88
    %p92 = scmp.eq.s32.totalorder %s12, 0
    %p93 = por %p91, %p92
    %p94 = scmp.ne.s32.totalorder %s86, %s88
    %p95 = scmp.eq.s32.totalorder %s17, 3
    %p96 = por %p94, %p95
    %p97 = scmp.ne.s32.totalorder %s88, %s89
    %p98 = scmp.eq.s32.totalorder %s17, 0
    %p99 = por %p97, %p98
    %p100 = scmp.ne.s32.totalorder %s88, %s89
    %p101 = scmp.eq.s32.totalorder %s18, 3
    %p102 = por %p100, %p101
    %p104 = scmp.ne.s32.totalorder %s89, %s103
    %p105 = scmp.eq.s32.totalorder %s18, 0
    %p106 = por %p104, %p105
    %s107 = ssub.s32 %s19, %s31
    %p108 = scmp.eq.s32.totalorder %s107, 0
    %s110 = sadd.s32 %s109, 1
    %s111 = scalar_select %p108, %s109, %s110
    %p114 = pneg %p108
    %p115 = scmp.eq.s32.totalorder %s12, 3
    %p116 = por %p114, %p115
    %p117 = scmp.ne.s32.totalorder %s109, %s112
    %p118 = scmp.eq.s32.totalorder %s12, 0
    %p119 = por %p117, %p118
    %p120 = scmp.ne.s32.totalorder %s109, %s112
    %p121 = scmp.eq.s32.totalorder %s17, 3
    %p122 = por %p120, %p121
    %p123 = scmp.ne.s32.totalorder %s112, %s113
    %p124 = scmp.eq.s32.totalorder %s17, 0
    %p125 = por %p123, %p124
    %p126 = scmp.ne.s32.totalorder %s112, %s113
    %p127 = scmp.eq.s32.totalorder %s18, 3
    %p128 = por %p126, %p127
    %p130 = scmp.ne.s32.totalorder %s113, %s129
    %p131 = scmp.eq.s32.totalorder %s18, 0
    %p132 = por %p130, %p131
    %s134 = sadd.s32 %s133, 1
    %p137 = scmp.eq.s32.totalorder %s12, 3
    %p138 = scmp.ne.s32.totalorder %s133, %s135
    %p139 = scmp.eq.s32.totalorder %s12, 0
    %p140 = por %p138, %p139
    %p141 = scmp.ne.s32.totalorder %s133, %s135
    %p142 = scmp.eq.s32.totalorder %s17, 3
    %p143 = por %p141, %p142
    %p144 = scmp.ne.s32.totalorder %s135, %s136
    %p145 = scmp.eq.s32.totalorder %s17, 0
    %p146 = por %p144, %p145
    %p147 = scmp.ne.s32.totalorder %s135, %s136
    %p148 = scmp.eq.s32.totalorder %s18, 3
    %p149 = por %p147, %p148
    %p151 = scmp.ne.s32.totalorder %s136, %s150
    %p152 = scmp.eq.s32.totalorder %s18, 0
    %p153 = por %p151, %p152
    %s155 = sadd.s32 %s154, 1
    %p158 = scmp.eq.s32.totalorder %s12, 3
    %p159 = scmp.ne.s32.totalorder %s154, %s156
    %p160 = scmp.eq.s32.totalorder %s12, 0
    %p161 = por %p159, %p160
    %p162 = scmp.ne.s32.totalorder %s154, %s156
    %p163 = scmp.eq.s32.totalorder %s17, 3
    %p164 = por %p162, %p163
    %p165 = scmp.ne.s32.totalorder %s156, %s157
    %p166 = scmp.eq.s32.totalorder %s17, 0
    %p167 = por %p165, %p166
    %p168 = scmp.ne.s32.totalorder %s156, %s157
    %p169 = scmp.eq.s32.totalorder %s18, 3
    %p170 = por %p168, %p169
    %p172 = scmp.ne.s32.totalorder %s157, %s171
    %p173 = scmp.eq.s32.totalorder %s18, 0
    %p174 = por %p172, %p173
    %s175 = ssub.s32 %s19, %s31
    %p176 = scmp.eq.s32.totalorder %s175, 0
    %s178 = sadd.s32 %s177, 1
    %s179 = scalar_select %p176, %s177, %s178
    %p182 = pneg %p176
    %p183 = scmp.eq.s32.totalorder %s12, 3
    %p184 = por %p182, %p183
    %p185 = scmp.ne.s32.totalorder %s177, %s180
    %p186 = scmp.eq.s32.totalorder %s12, 0
    %p187 = por %p185, %p186
    %p188 = scmp.ne.s32.totalorder %s177, %s180
    %p189 = scmp.eq.s32.totalorder %s17, 3
    %p190 = por %p188, %p189
    %p191 = scmp.ne.s32.totalorder %s180, %s181
    %p192 = scmp.eq.s32.totalorder %s17, 0
    %p193 = por %p191, %p192
    %p194 = scmp.ne.s32.totalorder %s180, %s181
    %p195 = scmp.eq.s32.totalorder %s18, 3
    %p196 = por %p194, %p195
    %p198 = scmp.ne.s32.totalorder %s181, %s197
    %p199 = scmp.eq.s32.totalorder %s18, 0
    %p200 = por %p198, %p199
    %p201 = scmp.le.s32.totalorder 1, %s12
    %p202 = scmp.lt.s32.totalorder %s12, 5
    %p203 = pnand %p201, %p202
    %p204 = pneg %p203
    // Predicated region
    $region9: #{gen_block_forward.11} parent=5 // pred_check
      _
    $region10: #{gen_block_forward.11} parent=5 // pred_check_branch
      %206 = sbr.rel (%p203) target = $region12
    $region11: #{gen_block_forward.11} parent=5 // pred_region
      %s207 = ssub.s32 %s12, 1
      // Predicated region
      $region13: #{gen_block_forward.11} parent=11 // pred_check
        %p208 = pneg %p78
      $region14: #{gen_block_forward.11} parent=11 // pred_check_branch
        %210 = sbr.rel (%p208) target = $region16
      $region15: #{gen_block_forward.11} parent=11 // pred_region
        %s211 = smul.u32 9, %s22
        %p212 = scmp.lt.s32.totalorder %s211, 8
        %s213 = scalar_select %p212, %s211, 8
        %s214 = smul.addr %s213, 4
        %s215 = scalar_lea.vmem %s1, %s214
        %s216 = smul.u32 9, %s22
      $region16: #{gen_block_forward.11} parent=11 // pred_fallthru
        _
      // Predicated region
      $region17: #{gen_block_forward.11} parent=11 // pred_check
        %p217 = pneg %p99
      $region18: #{gen_block_forward.11} parent=11 // pred_check_branch
        %219 = sbr.rel (%p217) target = $region20
      $region19: #{gen_block_forward.11} parent=11 // pred_region
        _
      $region20: #{gen_block_forward.11} parent=11 // pred_fallthru
        _
      // Predicated region
      $region21: #{gen_block_forward.11} parent=11 // pred_check
        %p220 = pneg %p146
      $region22: #{gen_block_forward.11} parent=11 // pred_check_branch
        %222 = sbr.rel (%p220) target = $region24
      $region23: #{gen_block_forward.11} parent=11 // pred_region
        _
      $region24: #{gen_block_forward.11} parent=11 // pred_fallthru
        _
      // Predicated region
      $region25: #{gen_block_forward.11} parent=11 // pred_check
        %p223 = pneg %p167
      $region26: #{gen_block_forward.11} parent=11 // pred_check_branch
        %225 = sbr.rel (%p223) target = $region28
      $region27: #{gen_block_forward.11} parent=11 // pred_region
        _
      $region28: #{gen_block_forward.11} parent=11 // pred_fallthru
        _
    $region12: #{gen_block_forward.11} parent=5 // pred_fallthru
      _
    %p226 = scmp.lt.s32.totalorder %s12, 4
    // Predicated region
    $region29: #{gen_block_forward.11} parent=5 // pred_check
      %p227 = pneg %p226
    $region30: #{gen_block_forward.11} parent=5 // pred_check_branch
      %229 = sbr.rel (%p227) target = $region32
    $region31: #{gen_block_forward.11} parent=5 // pred_region
      // Predicated region
      $region33: #{gen_block_forward.11} parent=31 // pred_check
        %p230 = pneg %p46
      $region34: #{gen_block_forward.11} parent=31 // pred_check_branch
        %232 = sbr.rel (%p230) target = $region36
      $region35: #{gen_block_forward.11} parent=31 // pred_region
        %s233 = smul.u32 64, %s19
        %p234 = scmp.lt.s32.totalorder %s233, 255
        %s235 = scalar_select %p234, %s233, 255
        %p236 = scmp.lt.s32.totalorder %s20, 0
        %s237 = scalar_select %p236, %s20, 0
        %s238 = sadd.s32 %s237, %s235
        %s239 = smul.addr %s238, 4
        %s240 = scalar_lea.vmem %s0, %s239
        %s241 = smul.u32 64, %s19
      $region36: #{gen_block_forward.11} parent=31 // pred_fallthru
        _
      // Predicated region
      $region37: #{gen_block_forward.11} parent=31 // pred_check
        %p242 = pneg %p119
      $region38: #{gen_block_forward.11} parent=31 // pred_check_branch
        %244 = sbr.rel (%p242) target = $region40
      $region39: #{gen_block_forward.11} parent=31 // pred_region
        %s245 = smul.u32 64, %s19
        %p246 = scmp.lt.s32.totalorder %s245, 255
        %s247 = scalar_select %p246, %s245, 255
        %s248 = smul.addr %s247, 4
        %s249 = scalar_lea.vmem %s3, %s248
        %s250 = smul.u32 64, %s19
      $region40: #{gen_block_forward.11} parent=31 // pred_fallthru
        _
    $region32: #{gen_block_forward.11} parent=5 // pred_fallthru
      _
    %p251 = scmp.le.s32.totalorder 1, %s12
    %p252 = scmp.lt.s32.totalorder %s12, 5
    %p253 = pnand %p251, %p252
    %p254 = pneg %p253
    // Predicated region
    $region41: #{gen_block_forward.11} parent=5 // pred_check
      _
    $region42: #{gen_block_forward.11} parent=5 // pred_check_branch
      %256 = sbr.rel (%p253) target = $region44
    $region43: #{gen_block_forward.11} parent=5 // pred_region
      %s257 = ssub.s32 %s12, 1
      %s258 = smul.u32 64, %s21
      %p259 = scmp.lt.s32.totalorder %s258, 255
      %s260 = scalar_select %p259, %s258, 255
      %p261 = scmp.lt.s32.totalorder %s22, 0
      %s262 = scalar_select %p261, %s22, 0
      %s263 = sadd.s32 %s262, %s260
      %s264 = smul.addr %s263, 4
      %s265 = scalar_lea.vmem %s0, %s264
      %p266 = pneg %p52
      %p267 = pneg %p49
      %s268 = smul.u32 9, %s22
      %p269 = scmp.lt.s32.totalorder %s268, 8
      %s270 = scalar_select %p269, %s268, 8
      %s271 = smul.addr %s270, 4
      %s272 = scalar_lea.vmem %s1, %s271
      %p273 = pneg %p78
      %p274 = pneg %p75
      %p275 = pneg %p99
      %p276 = pneg %p96
      %s277 = smul.u32 64, %s21
      %p278 = scmp.lt.s32.totalorder %s277, 255
      %s279 = scalar_select %p278, %s277, 255
      %s280 = smul.addr %s279, 4
      %s281 = scalar_lea.vmem %s3, %s280
      %p282 = pneg %p125
      %p283 = pneg %p122
      %p284 = pneg %p146
      %p285 = pneg %p143
      %p286 = pneg %p167
      %p287 = pneg %p164
      %p288 = pneg %p193
      %p289 = pneg %p190
      %s290 = smul.u32 64, %s21
      %p291 = scmp.lt.s32.totalorder %s290, 255
      %s292 = scalar_select %p291, %s290, 255
      %s293 = smul.addr %s292, 8
      %s294 = scalar_lea.vmem %s6, %s293
      %s295 = smul.u32 64, %s21
      %p296 = scmp.lt.s32.totalorder %s295, 255
      %s297 = scalar_select %p296, %s295, 255
      %p298 = scmp.lt.s32.totalorder %s22, 0
      %s299 = scalar_select %p298, %s22, 0
      %s300 = sadd.s32 %s299, %s297
      %s301 = smul.addr %s300, 4
      %s302 = scalar_lea.vmem %s0, %s301
      %s303 = smul.u32 64, %s21
      %s304 = smul.u32 9, %s22
      %p305 = scmp.lt.s32.totalorder %s304, 8
      %s306 = scalar_select %p305, %s304, 8
      %s307 = smul.addr %s306, 4
      %s308 = scalar_lea.vmem %s1, %s307
      %s309 = smul.u32 9, %s22
      %s310 = smul.u32 64, %s21
      %p311 = scmp.lt.s32.totalorder %s310, 255
      %s312 = scalar_select %p311, %s310, 255
      %s313 = smul.addr %s312, 4
      %s314 = scalar_lea.vmem %s3, %s313
      %s315 = smul.u32 64, %s21
      %s316 = smul.u32 64, %s21
      %p317 = scmp.lt.s32.totalorder %s316, 255
      %s318 = scalar_select %p317, %s316, 255
      %s319 = smul.addr %s318, 8
      %s320 = scalar_lea.vmem %s6, %s319
      %s321 = smul.u32 64, %s21
      %p323 = scmp.eq.s32.totalorder %s22, 0
      // Predicated region
      $region45: #{gen_block_forward.11} parent=43 // pred_check
        %p324 = pneg %p323
      $region46: #{gen_block_forward.11} parent=43 // pred_check_branch
        %326 = sbr.rel (%p324) target = $region48
      $region47: #{gen_block_forward.11} parent=43 // pred_region
        %v327 = vld [vmem:[%s314] sm:$0xf]
        %v328 = vld [vmem:[%s314 + $0x4] sm:$0xf]
        %v329 = vld [vmem:[%s314 + $0x8] sm:$0xf]
        %v330 = vld [vmem:[%s314 + $0xc] sm:$0xf]
        %v331 = vld [vmem:[%s314 + $0x10] sm:$0xf]
        %v332 = vld [vmem:[%s314 + $0x14] sm:$0xf]
        %v333 = vld [vmem:[%s314 + $0x18] sm:$0xf]
        %v334 = vld [vmem:[%s314 + $0x1c] sm:$0xf]
        %v335 = vld [vmem:[%s314 + $0x20] sm:$0xf]
        %v336 = vld [vmem:[%s314 + $0x24] sm:$0xf]
        %v337 = vld [vmem:[%s314 + $0x28] sm:$0xf]
        %v338 = vld [vmem:[%s314 + $0x2c] sm:$0xf]
        %v339 = vld [vmem:[%s314 + $0x30] sm:$0xf]
        %v340 = vld [vmem:[%s314 + $0x34] sm:$0xf]
        %v341 = vld [vmem:[%s314 + $0x38] sm:$0xf]
        %v342 = vld [vmem:[%s314 + $0x3c] sm:$0xf]
        %v343 = vld [vmem:[%s314 + $0x40] sm:$0xf]
        %v344 = vld [vmem:[%s314 + $0x44] sm:$0xf]
        %v345 = vld [vmem:[%s314 + $0x48] sm:$0xf]
        %v346 = vld [vmem:[%s314 + $0x4c] sm:$0xf]
        %v347 = vld [vmem:[%s314 + $0x50] sm:$0xf]
        %v348 = vld [vmem:[%s314 + $0x54] sm:$0xf]
        %v349 = vld [vmem:[%s314 + $0x58] sm:$0xf]
        %v350 = vld [vmem:[%s314 + $0x5c] sm:$0xf]
        %v351 = vld [vmem:[%s314 + $0x60] sm:$0xf]
        %v352 = vld [vmem:[%s314 + $0x64] sm:$0xf]
        %v353 = vld [vmem:[%s314 + $0x68] sm:$0xf]
        %v354 = vld [vmem:[%s314 + $0x6c] sm:$0xf]
        %v355 = vld [vmem:[%s314 + $0x70] sm:$0xf]
        %v356 = vld [vmem:[%s314 + $0x74] sm:$0xf]
        %v357 = vld [vmem:[%s314 + $0x78] sm:$0xf]
        %v358 = vld [vmem:[%s314 + $0x7c] sm:$0xf]
        %v359 = vld [vmem:[%s314 + $0x80] sm:$0xf]
        %v360 = vld [vmem:[%s314 + $0x84] sm:$0xf]
        %v361 = vld [vmem:[%s314 + $0x88] sm:$0xf]
        %v362 = vld [vmem:[%s314 + $0x8c] sm:$0xf]
        %v363 = vld [vmem:[%s314 + $0x90] sm:$0xf]
        %v364 = vld [vmem:[%s314 + $0x94] sm:$0xf]
        %v365 = vld [vmem:[%s314 + $0x98] sm:$0xf]
        %v366 = vld [vmem:[%s314 + $0x9c] sm:$0xf]
        %v367 = vld [vmem:[%s314 + $0xa0] sm:$0xf]
        %v368 = vld [vmem:[%s314 + $0xa4] sm:$0xf]
        %v369 = vld [vmem:[%s314 + $0xa8] sm:$0xf]
        %v370 = vld [vmem:[%s314 + $0xac] sm:$0xf]
        %v371 = vld [vmem:[%s314 + $0xb0] sm:$0xf]
        %v372 = vld [vmem:[%s314 + $0xb4] sm:$0xf]
        %v373 = vld [vmem:[%s314 + $0xb8] sm:$0xf]
        %v374 = vld [vmem:[%s314 + $0xbc] sm:$0xf]
        %v375 = vld [vmem:[%s314 + $0xc0] sm:$0xf]
        %v376 = vld [vmem:[%s314 + $0xc4] sm:$0xf]
        %v377 = vld [vmem:[%s314 + $0xc8] sm:$0xf]
        %v378 = vld [vmem:[%s314 + $0xcc] sm:$0xf]
        %v379 = vld [vmem:[%s314 + $0xd0] sm:$0xf]
        %v380 = vld [vmem:[%s314 + $0xd4] sm:$0xf]
        %v381 = vld [vmem:[%s314 + $0xd8] sm:$0xf]
        %v382 = vld [vmem:[%s314 + $0xdc] sm:$0xf]
        %v383 = vld [vmem:[%s314 + $0xe0] sm:$0xf]
        %v384 = vld [vmem:[%s314 + $0xe4] sm:$0xf]
        %v385 = vld [vmem:[%s314 + $0xe8] sm:$0xf]
        %v386 = vld [vmem:[%s314 + $0xec] sm:$0xf]
        %v387 = vld [vmem:[%s314 + $0xf0] sm:$0xf]
        %v388 = vld [vmem:[%s314 + $0xf4] sm:$0xf]
        %v389 = vld [vmem:[%s314 + $0xf8] sm:$0xf]
        %v390 = vld [vmem:[%s314 + $0xfc] sm:$0xf]
        %v391 = vld [vmem:[%s4] sm:$0x3]
        %v392 = vld [vmem:[%s5] sm:$0x1]
        %v394 = vperm.slane %v392, 0
        %v460 = vunpack.c.l.b16 %v327
        %v461 = vunpack.c.l.b16 %v328
        %v462 = vunpack.c.l.b16 %v329
        %v463 = vunpack.c.l.b16 %v330
        %v464 = vunpack.c.l.b16 %v331
        %v465 = vunpack.c.l.b16 %v332
        %v466 = vunpack.c.l.b16 %v333
        %v467 = vunpack.c.l.b16 %v334
        %v468 = vunpack.c.l.b16 %v335
        %v469 = vunpack.c.l.b16 %v336
        %v470 = vunpack.c.l.b16 %v337
        %v471 = vunpack.c.l.b16 %v338
        %v472 = vunpack.c.l.b16 %v339
        %v473 = vunpack.c.l.b16 %v340
        %v474 = vunpack.c.l.b16 %v341
        %v475 = vunpack.c.l.b16 %v342
        %v476 = vunpack.c.l.b16 %v343
        %v477 = vunpack.c.l.b16 %v344
        %v478 = vunpack.c.l.b16 %v345
        %v479 = vunpack.c.l.b16 %v346
        %v480 = vunpack.c.l.b16 %v347
        %v481 = vunpack.c.l.b16 %v348
        %v482 = vunpack.c.l.b16 %v349
        %v483 = vunpack.c.l.b16 %v350
        %v484 = vunpack.c.l.b16 %v351
        %v485 = vunpack.c.l.b16 %v352
        %v486 = vunpack.c.l.b16 %v353
        %v487 = vunpack.c.l.b16 %v354
        %v488 = vunpack.c.l.b16 %v355
        %v489 = vunpack.c.l.b16 %v356
        %v490 = vunpack.c.l.b16 %v357
        %v491 = vunpack.c.l.b16 %v358
        %v492 = vunpack.c.l.b16 %v359
        %v493 = vunpack.c.l.b16 %v360
        %v494 = vunpack.c.l.b16 %v361
        %v495 = vunpack.c.l.b16 %v362
        %v496 = vunpack.c.l.b16 %v363
        %v497 = vunpack.c.l.b16 %v364
        %v498 = vunpack.c.l.b16 %v365
        %v499 = vunpack.c.l.b16 %v366
        %v500 = vunpack.c.l.b16 %v367
        %v501 = vunpack.c.l.b16 %v368
        %v502 = vunpack.c.l.b16 %v369
        %v503 = vunpack.c.l.b16 %v370
        %v504 = vunpack.c.l.b16 %v371
        %v505 = vunpack.c.l.b16 %v372
        %v506 = vunpack.c.l.b16 %v373
        %v507 = vunpack.c.l.b16 %v374
        %v508 = vunpack.c.l.b16 %v375
        %v509 = vunpack.c.l.b16 %v376
        %v510 = vunpack.c.l.b16 %v377
        %v511 = vunpack.c.l.b16 %v378
        %v512 = vunpack.c.l.b16 %v379
        %v513 = vunpack.c.l.b16 %v380
        %v514 = vunpack.c.l.b16 %v381
        %v515 = vunpack.c.l.b16 %v382
        %v516 = vunpack.c.l.b16 %v383
        %v517 = vunpack.c.l.b16 %v384
        %v518 = vunpack.c.l.b16 %v385
        %v519 = vunpack.c.l.b16 %v386
        %v520 = vunpack.c.l.b16 %v387
        %v521 = vunpack.c.l.b16 %v388
        %v522 = vunpack.c.l.b16 %v389
        %v523 = vunpack.c.l.b16 %v390
        %v524 = vpack.c.b16 %v461, %v460
        %v525 = vpack.c.b16 %v463, %v462
        %v526 = vpack.c.b16 %v465, %v464
        %v527 = vpack.c.b16 %v467, %v466
        %v528 = vpack.c.b16 %v469, %v468
        %v529 = vpack.c.b16 %v471, %v470
        %v530 = vpack.c.b16 %v473, %v472
        %v531 = vpack.c.b16 %v475, %v474
        %v532 = vpack.c.b16 %v477, %v476
        %v533 = vpack.c.b16 %v479, %v478
        %v534 = vpack.c.b16 %v481, %v480
        %v535 = vpack.c.b16 %v483, %v482
        %v536 = vpack.c.b16 %v485, %v484
        %v537 = vpack.c.b16 %v487, %v486
        %v538 = vpack.c.b16 %v489, %v488
        %v539 = vpack.c.b16 %v491, %v490
        %v540 = vpack.c.b16 %v493, %v492
        %v541 = vpack.c.b16 %v495, %v494
        %v542 = vpack.c.b16 %v497, %v496
        %v543 = vpack.c.b16 %v499, %v498
        %v544 = vpack.c.b16 %v501, %v500
        %v545 = vpack.c.b16 %v503, %v502
        %v546 = vpack.c.b16 %v505, %v504
        %v547 = vpack.c.b16 %v507, %v506
        %v548 = vpack.c.b16 %v509, %v508
        %v549 = vpack.c.b16 %v511, %v510
        %v550 = vpack.c.b16 %v513, %v512
        %v551 = vpack.c.b16 %v515, %v514
        %v552 = vpack.c.b16 %v517, %v516
        %v553 = vpack.c.b16 %v519, %v518
        %v554 = vpack.c.b16 %v521, %v520
        %v555 = vpack.c.b16 %v523, %v522
        %vm556 = vcmask 31744
        %v558 = vsel %vm556, %v524, 0
        %v561 = vsel %vm556, %v525, 0
        %v564 = vsel %vm556, %v526, 0
        %v567 = vsel %vm556, %v527, 0
        %v570 = vsel %vm556, %v528, 0
        %v573 = vsel %vm556, %v529, 0
        %v576 = vsel %vm556, %v530, 0
        %v579 = vsel %vm556, %v531, 0
        %v582 = vsel %vm556, %v532, 0
        %v585 = vsel %vm556, %v533, 0
        %v588 = vsel %vm556, %v534, 0
        %v591 = vsel %vm556, %v535, 0
        %v594 = vsel %vm556, %v536, 0
        %v597 = vsel %vm556, %v537, 0
        %v600 = vsel %vm556, %v538, 0
        %v603 = vsel %vm556, %v539, 0
        %v606 = vsel %vm556, %v540, 0
        %v609 = vsel %vm556, %v541, 0
        %v612 = vsel %vm556, %v542, 0
        %v615 = vsel %vm556, %v543, 0
        %v618 = vsel %vm556, %v544, 0
        %v621 = vsel %vm556, %v545, 0
        %v624 = vsel %vm556, %v546, 0
        %v627 = vsel %vm556, %v547, 0
        %v630 = vsel %vm556, %v548, 0
        %v633 = vsel %vm556, %v549, 0
        %v636 = vsel %vm556, %v550, 0
        %v639 = vsel %vm556, %v551, 0
        %v642 = vsel %vm556, %v552, 0
        %v645 = vsel %vm556, %v553, 0
        %v648 = vsel %vm556, %v554, 0
        %v651 = vsel %vm556, %v555, 0
        %vm653 = vcmask 1041408
        %v655 = vsel %vm653, %v391, 0
        %657 = vmatpush.bf16.msra.mxu0 0
        %658 = vmatpush.bf16.msra.mxu0 0
        %659 = vmatpush.bf16.msra.mxu0 0
        %660 = vmatpush.bf16.msra.mxu0 0
        %661 = vmatpush.bf16.msra.mxu0 0
        %662 = vmatpush.bf16.msra.mxu0 0
        %663 = vmatpush.bf16.msra.mxu0 0
        %664 = vmatpush.bf16.msra.mxu0 %v655
        %665 = vmatmul.bf16.gmra.mxu0 %v558
        %v666 = vpop.f32.mrf.mxu0
        %v667 = vadd.f32 %v394, %v666
        %v668 = vpop.f32.mrf.mxu0
        %v669 = vadd.f32 %v394, %v668
        %670 = vmatmul.bf16.gmra.mxu0 %v561
        %v671 = vpop.f32.mrf.mxu0
        %v672 = vadd.f32 %v394, %v671
        %v673 = vpop.f32.mrf.mxu0
        %v674 = vadd.f32 %v394, %v673
        %675 = vmatmul.bf16.gmra.mxu0 %v564
        %v676 = vpop.f32.mrf.mxu0
        %v677 = vadd.f32 %v394, %v676
        %v678 = vpop.f32.mrf.mxu0
        %v679 = vadd.f32 %v394, %v678
        %680 = vmatmul.bf16.gmra.mxu0 %v567
        %v681 = vpop.f32.mrf.mxu0
        %v682 = vadd.f32 %v394, %v681
        %v683 = vpop.f32.mrf.mxu0
        %v684 = vadd.f32 %v394, %v683
        %685 = vmatmul.bf16.gmra.mxu0 %v570
        %v686 = vpop.f32.mrf.mxu0
        %v687 = vadd.f32 %v394, %v686
        %v688 = vpop.f32.mrf.mxu0
        %v689 = vadd.f32 %v394, %v688
        %690 = vmatmul.bf16.gmra.mxu0 %v573
        %v691 = vpop.f32.mrf.mxu0
        %v692 = vadd.f32 %v394, %v691
        %v693 = vpop.f32.mrf.mxu0
        %v694 = vadd.f32 %v394, %v693
        %695 = vmatmul.bf16.gmra.mxu0 %v576
        %v696 = vpop.f32.mrf.mxu0
        %v697 = vadd.f32 %v394, %v696
        %v698 = vpop.f32.mrf.mxu0
        %v699 = vadd.f32 %v394, %v698
        %700 = vmatmul.bf16.gmra.mxu0 %v579
        %v701 = vpop.f32.mrf.mxu0
        %v702 = vadd.f32 %v394, %v701
        %v703 = vpop.f32.mrf.mxu0
        %v704 = vadd.f32 %v394, %v703
        %705 = vmatmul.bf16.gmra.mxu0 %v582
        %v706 = vpop.f32.mrf.mxu0
        %v707 = vadd.f32 %v394, %v706
        %v708 = vpop.f32.mrf.mxu0
        %v709 = vadd.f32 %v394, %v708
        %710 = vmatmul.bf16.gmra.mxu0 %v585
        %v711 = vpop.f32.mrf.mxu0
        %v712 = vadd.f32 %v394, %v711
        %v713 = vpop.f32.mrf.mxu0
        %v714 = vadd.f32 %v394, %v713
        %715 = vmatmul.bf16.gmra.mxu0 %v588
        %v716 = vpop.f32.mrf.mxu0
        %v717 = vadd.f32 %v394, %v716
        %v718 = vpop.f32.mrf.mxu0
        %v719 = vadd.f32 %v394, %v718
        %720 = vmatmul.bf16.gmra.mxu0 %v591
        %v721 = vpop.f32.mrf.mxu0
        %v722 = vadd.f32 %v394, %v721
        %v723 = vpop.f32.mrf.mxu0
        %v724 = vadd.f32 %v394, %v723
        %725 = vmatmul.bf16.gmra.mxu0 %v594
        %v726 = vpop.f32.mrf.mxu0
        %v727 = vadd.f32 %v394, %v726
        %v728 = vpop.f32.mrf.mxu0
        %v729 = vadd.f32 %v394, %v728
        %730 = vmatmul.bf16.gmra.mxu0 %v597
        %v731 = vpop.f32.mrf.mxu0
        %v732 = vadd.f32 %v394, %v731
        %v733 = vpop.f32.mrf.mxu0
        %v734 = vadd.f32 %v394, %v733
        %735 = vmatmul.bf16.gmra.mxu0 %v600
        %v736 = vpop.f32.mrf.mxu0
        %v737 = vadd.f32 %v394, %v736
        %v738 = vpop.f32.mrf.mxu0
        %v739 = vadd.f32 %v394, %v738
        %740 = vmatmul.bf16.gmra.mxu0 %v603
        %v741 = vpop.f32.mrf.mxu0
        %v742 = vadd.f32 %v394, %v741
        %v743 = vpop.f32.mrf.mxu0
        %v744 = vadd.f32 %v394, %v743
        %745 = vmatmul.bf16.gmra.mxu0 %v606
        %v746 = vpop.f32.mrf.mxu0
        %v747 = vadd.f32 %v394, %v746
        %v748 = vpop.f32.mrf.mxu0
        %v749 = vadd.f32 %v394, %v748
        %750 = vmatmul.bf16.gmra.mxu0 %v609
        %v751 = vpop.f32.mrf.mxu0
        %v752 = vadd.f32 %v394, %v751
        %v753 = vpop.f32.mrf.mxu0
        %v754 = vadd.f32 %v394, %v753
        %755 = vmatmul.bf16.gmra.mxu0 %v612
        %v756 = vpop.f32.mrf.mxu0
        %v757 = vadd.f32 %v394, %v756
        %v758 = vpop.f32.mrf.mxu0
        %v759 = vadd.f32 %v394, %v758
        %760 = vmatmul.bf16.gmra.mxu0 %v615
        %v761 = vpop.f32.mrf.mxu0
        %v762 = vadd.f32 %v394, %v761
        %v763 = vpop.f32.mrf.mxu0
        %v764 = vadd.f32 %v394, %v763
        %765 = vmatmul.bf16.gmra.mxu0 %v618
        %v766 = vpop.f32.mrf.mxu0
        %v767 = vadd.f32 %v394, %v766
        %v768 = vpop.f32.mrf.mxu0
        %v769 = vadd.f32 %v394, %v768
        %770 = vmatmul.bf16.gmra.mxu0 %v621
        %v771 = vpop.f32.mrf.mxu0
        %v772 = vadd.f32 %v394, %v771
        %v773 = vpop.f32.mrf.mxu0
        %v774 = vadd.f32 %v394, %v773
        %775 = vmatmul.bf16.gmra.mxu0 %v624
        %v776 = vpop.f32.mrf.mxu0
        %v777 = vadd.f32 %v394, %v776
        %v778 = vpop.f32.mrf.mxu0
        %v779 = vadd.f32 %v394, %v778
        %780 = vmatmul.bf16.gmra.mxu0 %v627
        %v781 = vpop.f32.mrf.mxu0
        %v782 = vadd.f32 %v394, %v781
        %v783 = vpop.f32.mrf.mxu0
        %v784 = vadd.f32 %v394, %v783
        %785 = vmatmul.bf16.gmra.mxu0 %v630
        %v786 = vpop.f32.mrf.mxu0
        %v787 = vadd.f32 %v394, %v786
        %v788 = vpop.f32.mrf.mxu0
        %v789 = vadd.f32 %v394, %v788
        %790 = vmatmul.bf16.gmra.mxu0 %v633
        %v791 = vpop.f32.mrf.mxu0
        %v792 = vadd.f32 %v394, %v791
        %v793 = vpop.f32.mrf.mxu0
        %v794 = vadd.f32 %v394, %v793
        %795 = vmatmul.bf16.gmra.mxu0 %v636
        %v796 = vpop.f32.mrf.mxu0
        %v797 = vadd.f32 %v394, %v796
        %v798 = vpop.f32.mrf.mxu0
        %v799 = vadd.f32 %v394, %v798
        %800 = vmatmul.bf16.gmra.mxu0 %v639
        %v801 = vpop.f32.mrf.mxu0
        %v802 = vadd.f32 %v394, %v801
        %v803 = vpop.f32.mrf.mxu0
        %v804 = vadd.f32 %v394, %v803
        %805 = vmatmul.bf16.gmra.mxu0 %v642
        %v806 = vpop.f32.mrf.mxu0
        %v807 = vadd.f32 %v394, %v806
        %v808 = vpop.f32.mrf.mxu0
        %v809 = vadd.f32 %v394, %v808
        %810 = vmatmul.bf16.gmra.mxu0 %v645
        %v811 = vpop.f32.mrf.mxu0
        %v812 = vadd.f32 %v394, %v811
        %v813 = vpop.f32.mrf.mxu0
        %v814 = vadd.f32 %v394, %v813
        %815 = vmatmul.bf16.gmra.mxu0 %v648
        %v816 = vpop.f32.mrf.mxu0
        %v817 = vadd.f32 %v394, %v816
        %v818 = vpop.f32.mrf.mxu0
        %v819 = vadd.f32 %v394, %v818
        %820 = vmatmul.bf16.gmra.mxu0 %v651
        %v821 = vpop.f32.mrf.mxu0
        %v822 = vadd.f32 %v394, %v821
        %v823 = vpop.f32.mrf.mxu0
        %v824 = vadd.f32 %v394, %v823
        %825 = vdwg.mxu0
        %v826 = vld [vmem:[%s2] sm:$0x1]
        %v828 = vperm.slane %v826, 0
        %v830 = vadd.f32 %v667, %v828
        %v831 = vadd.f32 %v669, %v828
        %v832 = vadd.f32 %v672, %v828
        %v833 = vadd.f32 %v674, %v828
        %v834 = vadd.f32 %v677, %v828
        %v835 = vadd.f32 %v679, %v828
        %v836 = vadd.f32 %v682, %v828
        %v837 = vadd.f32 %v684, %v828
        %v838 = vadd.f32 %v687, %v828
        %v839 = vadd.f32 %v689, %v828
        %v840 = vadd.f32 %v692, %v828
        %v841 = vadd.f32 %v694, %v828
        %v842 = vadd.f32 %v697, %v828
        %v843 = vadd.f32 %v699, %v828
        %v844 = vadd.f32 %v702, %v828
        %v845 = vadd.f32 %v704, %v828
        %v846 = vadd.f32 %v707, %v828
        %v847 = vadd.f32 %v709, %v828
        %v848 = vadd.f32 %v712, %v828
        %v849 = vadd.f32 %v714, %v828
        %v850 = vadd.f32 %v717, %v828
        %v851 = vadd.f32 %v719, %v828
        %v852 = vadd.f32 %v722, %v828
        %v853 = vadd.f32 %v724, %v828
        %v854 = vadd.f32 %v727, %v828
        %v855 = vadd.f32 %v729, %v828
        %v856 = vadd.f32 %v732, %v828
        %v857 = vadd.f32 %v734, %v828
        %v858 = vadd.f32 %v737, %v828
        %v859 = vadd.f32 %v739, %v828
        %v860 = vadd.f32 %v742, %v828
        %v861 = vadd.f32 %v744, %v828
        %v862 = vadd.f32 %v747, %v828
        %v863 = vadd.f32 %v749, %v828
        %v864 = vadd.f32 %v752, %v828
        %v865 = vadd.f32 %v754, %v828
        %v866 = vadd.f32 %v757, %v828
        %v867 = vadd.f32 %v759, %v828
        %v868 = vadd.f32 %v762, %v828
        %v869 = vadd.f32 %v764, %v828
        %v870 = vadd.f32 %v767, %v828
        %v871 = vadd.f32 %v769, %v828
        %v872 = vadd.f32 %v772, %v828
        %v873 = vadd.f32 %v774, %v828
        %v874 = vadd.f32 %v777, %v828
        %v875 = vadd.f32 %v779, %v828
        %v876 = vadd.f32 %v782, %v828
        %v877 = vadd.f32 %v784, %v828
        %v878 = vadd.f32 %v787, %v828
        %v879 = vadd.f32 %v789, %v828
        %v880 = vadd.f32 %v792, %v828
        %v881 = vadd.f32 %v794, %v828
        %v882 = vadd.f32 %v797, %v828
        %v883 = vadd.f32 %v799, %v828
        %v884 = vadd.f32 %v802, %v828
        %v885 = vadd.f32 %v804, %v828
        %v886 = vadd.f32 %v807, %v828
        %v887 = vadd.f32 %v809, %v828
        %v888 = vadd.f32 %v812, %v828
        %v889 = vadd.f32 %v814, %v828
        %v890 = vadd.f32 %v817, %v828
        %v891 = vadd.f32 %v819, %v828
        %v892 = vadd.f32 %v822, %v828
        %v893 = vadd.f32 %v824, %v828
        %vm894 = vcmask 64512
        %895 = vst.msk [vmem:[#allocation2] sm:$0xff] %vm894, %v830
        %896 = vst.msk [vmem:[#allocation2 + $0x8] sm:$0xff] %vm894, %v831
        %897 = vst.msk [vmem:[#allocation2 + $0x10] sm:$0xff] %vm894, %v832
        %898 = vst.msk [vmem:[#allocation2 + $0x18] sm:$0xff] %vm894, %v833
        %899 = vst.msk [vmem:[#allocation2 + $0x20] sm:$0xff] %vm894, %v834
        %900 = vst.msk [vmem:[#allocation2 + $0x28] sm:$0xff] %vm894, %v835
        %901 = vst.msk [vmem:[#allocation2 + $0x30] sm:$0xff] %vm894, %v836
        %902 = vst.msk [vmem:[#allocation2 + $0x38] sm:$0xff] %vm894, %v837
        %903 = vst.msk [vmem:[#allocation2 + $0x40] sm:$0xff] %vm894, %v838
        %904 = vst.msk [vmem:[#allocation2 + $0x48] sm:$0xff] %vm894, %v839
        %905 = vst.msk [vmem:[#allocation2 + $0x50] sm:$0xff] %vm894, %v840
        %906 = vst.msk [vmem:[#allocation2 + $0x58] sm:$0xff] %vm894, %v841
        %907 = vst.msk [vmem:[#allocation2 + $0x60] sm:$0xff] %vm894, %v842
        %908 = vst.msk [vmem:[#allocation2 + $0x68] sm:$0xff] %vm894, %v843
        %909 = vst.msk [vmem:[#allocation2 + $0x70] sm:$0xff] %vm894, %v844
        %910 = vst.msk [vmem:[#allocation2 + $0x78] sm:$0xff] %vm894, %v845
        %911 = vst.msk [vmem:[#allocation2 + $0x80] sm:$0xff] %vm894, %v846
        %912 = vst.msk [vmem:[#allocation2 + $0x88] sm:$0xff] %vm894, %v847
        %913 = vst.msk [vmem:[#allocation2 + $0x90] sm:$0xff] %vm894, %v848
        %914 = vst.msk [vmem:[#allocation2 + $0x98] sm:$0xff] %vm894, %v849
        %915 = vst.msk [vmem:[#allocation2 + $0xa0] sm:$0xff] %vm894, %v850
        %916 = vst.msk [vmem:[#allocation2 + $0xa8] sm:$0xff] %vm894, %v851
        %917 = vst.msk [vmem:[#allocation2 + $0xb0] sm:$0xff] %vm894, %v852
        %918 = vst.msk [vmem:[#allocation2 + $0xb8] sm:$0xff] %vm894, %v853
        %919 = vst.msk [vmem:[#allocation2 + $0xc0] sm:$0xff] %vm894, %v854
        %920 = vst.msk [vmem:[#allocation2 + $0xc8] sm:$0xff] %vm894, %v855
        %921 = vst.msk [vmem:[#allocation2 + $0xd0] sm:$0xff] %vm894, %v856
        %922 = vst.msk [vmem:[#allocation2 + $0xd8] sm:$0xff] %vm894, %v857
        %923 = vst.msk [vmem:[#allocation2 + $0xe0] sm:$0xff] %vm894, %v858
        %924 = vst.msk [vmem:[#allocation2 + $0xe8] sm:$0xff] %vm894, %v859
        %925 = vst.msk [vmem:[#allocation2 + $0xf0] sm:$0xff] %vm894, %v860
        %926 = vst.msk [vmem:[#allocation2 + $0xf8] sm:$0xff] %vm894, %v861
        %927 = vst.msk [vmem:[#allocation2 + $0x100] sm:$0xff] %vm894, %v862
        %928 = vst.msk [vmem:[#allocation2 + $0x108] sm:$0xff] %vm894, %v863
        %929 = vst.msk [vmem:[#allocation2 + $0x110] sm:$0xff] %vm894, %v864
        %930 = vst.msk [vmem:[#allocation2 + $0x118] sm:$0xff] %vm894, %v865
        %931 = vst.msk [vmem:[#allocation2 + $0x120] sm:$0xff] %vm894, %v866
        %932 = vst.msk [vmem:[#allocation2 + $0x128] sm:$0xff] %vm894, %v867
        %933 = vst.msk [vmem:[#allocation2 + $0x130] sm:$0xff] %vm894, %v868
        %934 = vst.msk [vmem:[#allocation2 + $0x138] sm:$0xff] %vm894, %v869
        %935 = vst.msk [vmem:[#allocation2 + $0x140] sm:$0xff] %vm894, %v870
        %936 = vst.msk [vmem:[#allocation2 + $0x148] sm:$0xff] %vm894, %v871
        %937 = vst.msk [vmem:[#allocation2 + $0x150] sm:$0xff] %vm894, %v872
        %938 = vst.msk [vmem:[#allocation2 + $0x158] sm:$0xff] %vm894, %v873
        %939 = vst.msk [vmem:[#allocation2 + $0x160] sm:$0xff] %vm894, %v874
        %940 = vst.msk [vmem:[#allocation2 + $0x168] sm:$0xff] %vm894, %v875
        %941 = vst.msk [vmem:[#allocation2 + $0x170] sm:$0xff] %vm894, %v876
        %942 = vst.msk [vmem:[#allocation2 + $0x178] sm:$0xff] %vm894, %v877
        %943 = vst.msk [vmem:[#allocation2 + $0x180] sm:$0xff] %vm894, %v878
        %944 = vst.msk [vmem:[#allocation2 + $0x188] sm:$0xff] %vm894, %v879
        %945 = vst.msk [vmem:[#allocation2 + $0x190] sm:$0xff] %vm894, %v880
        %946 = vst.msk [vmem:[#allocation2 + $0x198] sm:$0xff] %vm894, %v881
        %947 = vst.msk [vmem:[#allocation2 + $0x1a0] sm:$0xff] %vm894, %v882
        %948 = vst.msk [vmem:[#allocation2 + $0x1a8] sm:$0xff] %vm894, %v883
        %949 = vst.msk [vmem:[#allocation2 + $0x1b0] sm:$0xff] %vm894, %v884
        %950 = vst.msk [vmem:[#allocation2 + $0x1b8] sm:$0xff] %vm894, %v885
        %951 = vst.msk [vmem:[#allocation2 + $0x1c0] sm:$0xff] %vm894, %v886
        %952 = vst.msk [vmem:[#allocation2 + $0x1c8] sm:$0xff] %vm894, %v887
        %953 = vst.msk [vmem:[#allocation2 + $0x1d0] sm:$0xff] %vm894, %v888
        %954 = vst.msk [vmem:[#allocation2 + $0x1d8] sm:$0xff] %vm894, %v889
        %955 = vst.msk [vmem:[#allocation2 + $0x1e0] sm:$0xff] %vm894, %v890
        %956 = vst.msk [vmem:[#allocation2 + $0x1e8] sm:$0xff] %vm894, %v891
        %957 = vst.msk [vmem:[#allocation2 + $0x1f0] sm:$0xff] %vm894, %v892
        %958 = vst.msk [vmem:[#allocation2 + $0x1f8] sm:$0xff] %vm894, %v893
      $region48: #{gen_block_forward.11} parent=43 // pred_fallthru
        _
      %v959 = vld [vmem:[#allocation2] sm:$0xff]
      %v960 = vld [vmem:[#allocation2 + $0x8] sm:$0xff]
      %v961 = vld [vmem:[#allocation2 + $0x10] sm:$0xff]
      %v962 = vld [vmem:[#allocation2 + $0x18] sm:$0xff]
      %v963 = vld [vmem:[#allocation2 + $0x20] sm:$0xff]
      %v964 = vld [vmem:[#allocation2 + $0x28] sm:$0xff]
      %v965 = vld [vmem:[#allocation2 + $0x30] sm:$0xff]
      %v966 = vld [vmem:[#allocation2 + $0x38] sm:$0xff]
      %v967 = vld [vmem:[#allocation2 + $0x40] sm:$0xff]
      %v968 = vld [vmem:[#allocation2 + $0x48] sm:$0xff]
      %v969 = vld [vmem:[#allocation2 + $0x50] sm:$0xff]
      %v970 = vld [vmem:[#allocation2 + $0x58] sm:$0xff]
      %v971 = vld [vmem:[#allocation2 + $0x60] sm:$0xff]
      %v972 = vld [vmem:[#allocation2 + $0x68] sm:$0xff]
      %v973 = vld [vmem:[#allocation2 + $0x70] sm:$0xff]
      %v974 = vld [vmem:[#allocation2 + $0x78] sm:$0xff]
      %v975 = vld [vmem:[#allocation2 + $0x80] sm:$0xff]
      %v976 = vld [vmem:[#allocation2 + $0x88] sm:$0xff]
      %v977 = vld [vmem:[#allocation2 + $0x90] sm:$0xff]
      %v978 = vld [vmem:[#allocation2 + $0x98] sm:$0xff]
      %v979 = vld [vmem:[#allocation2 + $0xa0] sm:$0xff]
      %v980 = vld [vmem:[#allocation2 + $0xa8] sm:$0xff]
      %v981 = vld [vmem:[#allocation2 + $0xb0] sm:$0xff]
      %v982 = vld [vmem:[#allocation2 + $0xb8] sm:$0xff]
      %v983 = vld [vmem:[#allocation2 + $0xc0] sm:$0xff]
      %v984 = vld [vmem:[#allocation2 + $0xc8] sm:$0xff]
      %v985 = vld [vmem:[#allocation2 + $0xd0] sm:$0xff]
      %v986 = vld [vmem:[#allocation2 + $0xd8] sm:$0xff]
      %v987 = vld [vmem:[#allocation2 + $0xe0] sm:$0xff]
      %v988 = vld [vmem:[#allocation2 + $0xe8] sm:$0xff]
      %v989 = vld [vmem:[#allocation2 + $0xf0] sm:$0xff]
      %v990 = vld [vmem:[#allocation2 + $0xf8] sm:$0xff]
      %v991 = vld [vmem:[#allocation2 + $0x100] sm:$0xff]
      %v992 = vld [vmem:[#allocation2 + $0x108] sm:$0xff]
      %v993 = vld [vmem:[#allocation2 + $0x110] sm:$0xff]
      %v994 = vld [vmem:[#allocation2 + $0x118] sm:$0xff]
      %v995 = vld [vmem:[#allocation2 + $0x120] sm:$0xff]
      %v996 = vld [vmem:[#allocation2 + $0x128] sm:$0xff]
      %v997 = vld [vmem:[#allocation2 + $0x130] sm:$0xff]
      %v998 = vld [vmem:[#allocation2 + $0x138] sm:$0xff]
      %v999 = vld [vmem:[#allocation2 + $0x140] sm:$0xff]
      %v1000 = vld [vmem:[#allocation2 + $0x148] sm:$0xff]
      %v1001 = vld [vmem:[#allocation2 + $0x150] sm:$0xff]
      %v1002 = vld [vmem:[#allocation2 + $0x158] sm:$0xff]
      %v1003 = vld [vmem:[#allocation2 + $0x160] sm:$0xff]
      %v1004 = vld [vmem:[#allocation2 + $0x168] sm:$0xff]
      %v1005 = vld [vmem:[#allocation2 + $0x170] sm:$0xff]
      %v1006 = vld [vmem:[#allocation2 + $0x178] sm:$0xff]
      %v1007 = vld [vmem:[#allocation2 + $0x180] sm:$0xff]
      %v1008 = vld [vmem:[#allocation2 + $0x188] sm:$0xff]
      %v1009 = vld [vmem:[#allocation2 + $0x190] sm:$0xff]
      %v1010 = vld [vmem:[#allocation2 + $0x198] sm:$0xff]
      %v1011 = vld [vmem:[#allocation2 + $0x1a0] sm:$0xff]
      %v1012 = vld [vmem:[#allocation2 + $0x1a8] sm:$0xff]
      %v1013 = vld [vmem:[#allocation2 + $0x1b0] sm:$0xff]
      %v1014 = vld [vmem:[#allocation2 + $0x1b8] sm:$0xff]
      %v1015 = vld [vmem:[#allocation2 + $0x1c0] sm:$0xff]
      %v1016 = vld [vmem:[#allocation2 + $0x1c8] sm:$0xff]
      %v1017 = vld [vmem:[#allocation2 + $0x1d0] sm:$0xff]
      %v1018 = vld [vmem:[#allocation2 + $0x1d8] sm:$0xff]
      %v1019 = vld [vmem:[#allocation2 + $0x1e0] sm:$0xff]
      %v1020 = vld [vmem:[#allocation2 + $0x1e8] sm:$0xff]
      %v1021 = vld [vmem:[#allocation2 + $0x1f0] sm:$0xff]
      %v1022 = vld [vmem:[#allocation2 + $0x1f8] sm:$0xff]
      %v1023 = vld [vmem:[%s302] sm:$0xf]
      %v1024 = vld [vmem:[%s302 + $0x4] sm:$0xf]
      %v1025 = vld [vmem:[%s302 + $0x8] sm:$0xf]
      %v1026 = vld [vmem:[%s302 + $0xc] sm:$0xf]
      %v1027 = vld [vmem:[%s302 + $0x10] sm:$0xf]
      %v1028 = vld [vmem:[%s302 + $0x14] sm:$0xf]
      %v1029 = vld [vmem:[%s302 + $0x18] sm:$0xf]
      %v1030 = vld [vmem:[%s302 + $0x1c] sm:$0xf]
      %v1031 = vld [vmem:[%s302 + $0x20] sm:$0xf]
      %v1032 = vld [vmem:[%s302 + $0x24] sm:$0xf]
      %v1033 = vld [vmem:[%s302 + $0x28] sm:$0xf]
      %v1034 = vld [vmem:[%s302 + $0x2c] sm:$0xf]
      %v1035 = vld [vmem:[%s302 + $0x30] sm:$0xf]
      %v1036 = vld [vmem:[%s302 + $0x34] sm:$0xf]
      %v1037 = vld [vmem:[%s302 + $0x38] sm:$0xf]
      %v1038 = vld [vmem:[%s302 + $0x3c] sm:$0xf]
      %v1039 = vld [vmem:[%s302 + $0x40] sm:$0xf]
      %v1040 = vld [vmem:[%s302 + $0x44] sm:$0xf]
      %v1041 = vld [vmem:[%s302 + $0x48] sm:$0xf]
      %v1042 = vld [vmem:[%s302 + $0x4c] sm:$0xf]
      %v1043 = vld [vmem:[%s302 + $0x50] sm:$0xf]
      %v1044 = vld [vmem:[%s302 + $0x54] sm:$0xf]
      %v1045 = vld [vmem:[%s302 + $0x58] sm:$0xf]
      %v1046 = vld [vmem:[%s302 + $0x5c] sm:$0xf]
      %v1047 = vld [vmem:[%s302 + $0x60] sm:$0xf]
      %v1048 = vld [vmem:[%s302 + $0x64] sm:$0xf]
      %v1049 = vld [vmem:[%s302 + $0x68] sm:$0xf]
      %v1050 = vld [vmem:[%s302 + $0x6c] sm:$0xf]
      %v1051 = vld [vmem:[%s302 + $0x70] sm:$0xf]
      %v1052 = vld [vmem:[%s302 + $0x74] sm:$0xf]
      %v1053 = vld [vmem:[%s302 + $0x78] sm:$0xf]
      %v1054 = vld [vmem:[%s302 + $0x7c] sm:$0xf]
      %v1055 = vld [vmem:[%s302 + $0x80] sm:$0xf]
      %v1056 = vld [vmem:[%s302 + $0x84] sm:$0xf]
      %v1057 = vld [vmem:[%s302 + $0x88] sm:$0xf]
      %v1058 = vld [vmem:[%s302 + $0x8c] sm:$0xf]
      %v1059 = vld [vmem:[%s302 + $0x90] sm:$0xf]
      %v1060 = vld [vmem:[%s302 + $0x94] sm:$0xf]
      %v1061 = vld [vmem:[%s302 + $0x98] sm:$0xf]
      %v1062 = vld [vmem:[%s302 + $0x9c] sm:$0xf]
      %v1063 = vld [vmem:[%s302 + $0xa0] sm:$0xf]
      %v1064 = vld [vmem:[%s302 + $0xa4] sm:$0xf]
      %v1065 = vld [vmem:[%s302 + $0xa8] sm:$0xf]
      %v1066 = vld [vmem:[%s302 + $0xac] sm:$0xf]
      %v1067 = vld [vmem:[%s302 + $0xb0] sm:$0xf]
      %v1068 = vld [vmem:[%s302 + $0xb4] sm:$0xf]
      %v1069 = vld [vmem:[%s302 + $0xb8] sm:$0xf]
      %v1070 = vld [vmem:[%s302 + $0xbc] sm:$0xf]
      %v1071 = vld [vmem:[%s302 + $0xc0] sm:$0xf]
      %v1072 = vld [vmem:[%s302 + $0xc4] sm:$0xf]
      %v1073 = vld [vmem:[%s302 + $0xc8] sm:$0xf]
      %v1074 = vld [vmem:[%s302 + $0xcc] sm:$0xf]
      %v1075 = vld [vmem:[%s302 + $0xd0] sm:$0xf]
      %v1076 = vld [vmem:[%s302 + $0xd4] sm:$0xf]
      %v1077 = vld [vmem:[%s302 + $0xd8] sm:$0xf]
      %v1078 = vld [vmem:[%s302 + $0xdc] sm:$0xf]
      %v1079 = vld [vmem:[%s302 + $0xe0] sm:$0xf]
      %v1080 = vld [vmem:[%s302 + $0xe4] sm:$0xf]
      %v1081 = vld [vmem:[%s302 + $0xe8] sm:$0xf]
      %v1082 = vld [vmem:[%s302 + $0xec] sm:$0xf]
      %v1083 = vld [vmem:[%s302 + $0xf0] sm:$0xf]
      %v1084 = vld [vmem:[%s302 + $0xf4] sm:$0xf]
      %v1085 = vld [vmem:[%s302 + $0xf8] sm:$0xf]
      %v1086 = vld [vmem:[%s302 + $0xfc] sm:$0xf]
      %v1087 = vld [vmem:[%s308] sm:$0xf]
      %v1088 = vld [vmem:[%s308 + $0x4] sm:$0xf]
      %v1089 = vld [vmem:[%s308 + $0x8] sm:$0xf]
      %v1090 = vld [vmem:[%s308 + $0xc] sm:$0xf]
      %v1091 = vld [vmem:[%s308 + $0x10] sm:$0xf]
      %v1092 = vld [vmem:[%s308 + $0x14] sm:$0xf]
      %v1093 = vld [vmem:[%s308 + $0x18] sm:$0xf]
      %v1094 = vld [vmem:[%s308 + $0x1c] sm:$0xf]
      %v1095 = vld [vmem:[%s308 + $0x20] sm:$0xf]
      %v1160 = vunpack.c.l.b16 %v1023
      %v1161 = vunpack.c.l.b16 %v1024
      %v1162 = vunpack.c.l.b16 %v1025
      %v1163 = vunpack.c.l.b16 %v1026
      %v1164 = vunpack.c.l.b16 %v1027
      %v1165 = vunpack.c.l.b16 %v1028
      %v1166 = vunpack.c.l.b16 %v1029
      %v1167 = vunpack.c.l.b16 %v1030
      %v1168 = vunpack.c.l.b16 %v1031
      %v1169 = vunpack.c.l.b16 %v1032
      %v1170 = vunpack.c.l.b16 %v1033
      %v1171 = vunpack.c.l.b16 %v1034
      %v1172 = vunpack.c.l.b16 %v1035
      %v1173 = vunpack.c.l.b16 %v1036
      %v1174 = vunpack.c.l.b16 %v1037
      %v1175 = vunpack.c.l.b16 %v1038
      %v1176 = vunpack.c.l.b16 %v1039
      %v1177 = vunpack.c.l.b16 %v1040
      %v1178 = vunpack.c.l.b16 %v1041
      %v1179 = vunpack.c.l.b16 %v1042
      %v1180 = vunpack.c.l.b16 %v1043
      %v1181 = vunpack.c.l.b16 %v1044
      %v1182 = vunpack.c.l.b16 %v1045
      %v1183 = vunpack.c.l.b16 %v1046
      %v1184 = vunpack.c.l.b16 %v1047
      %v1185 = vunpack.c.l.b16 %v1048
      %v1186 = vunpack.c.l.b16 %v1049
      %v1187 = vunpack.c.l.b16 %v1050
      %v1188 = vunpack.c.l.b16 %v1051
      %v1189 = vunpack.c.l.b16 %v1052
      %v1190 = vunpack.c.l.b16 %v1053
      %v1191 = vunpack.c.l.b16 %v1054
      %v1192 = vunpack.c.l.b16 %v1055
      %v1193 = vunpack.c.l.b16 %v1056
      %v1194 = vunpack.c.l.b16 %v1057
      %v1195 = vunpack.c.l.b16 %v1058
      %v1196 = vunpack.c.l.b16 %v1059
      %v1197 = vunpack.c.l.b16 %v1060
      %v1198 = vunpack.c.l.b16 %v1061
      %v1199 = vunpack.c.l.b16 %v1062
      %v1200 = vunpack.c.l.b16 %v1063
      %v1201 = vunpack.c.l.b16 %v1064
      %v1202 = vunpack.c.l.b16 %v1065
      %v1203 = vunpack.c.l.b16 %v1066
      %v1204 = vunpack.c.l.b16 %v1067
      %v1205 = vunpack.c.l.b16 %v1068
      %v1206 = vunpack.c.l.b16 %v1069
      %v1207 = vunpack.c.l.b16 %v1070
      %v1208 = vunpack.c.l.b16 %v1071
      %v1209 = vunpack.c.l.b16 %v1072
      %v1210 = vunpack.c.l.b16 %v1073
      %v1211 = vunpack.c.l.b16 %v1074
      %v1212 = vunpack.c.l.b16 %v1075
      %v1213 = vunpack.c.l.b16 %v1076
      %v1214 = vunpack.c.l.b16 %v1077
      %v1215 = vunpack.c.l.b16 %v1078
      %v1216 = vunpack.c.l.b16 %v1079
      %v1217 = vunpack.c.l.b16 %v1080
      %v1218 = vunpack.c.l.b16 %v1081
      %v1219 = vunpack.c.l.b16 %v1082
      %v1220 = vunpack.c.l.b16 %v1083
      %v1221 = vunpack.c.l.b16 %v1084
      %v1222 = vunpack.c.l.b16 %v1085
      %v1223 = vunpack.c.l.b16 %v1086
      %v1224 = vpack.c.b16 %v1161, %v1160
      %v1225 = vpack.c.b16 %v1163, %v1162
      %v1226 = vpack.c.b16 %v1165, %v1164
      %v1227 = vpack.c.b16 %v1167, %v1166
      %v1228 = vpack.c.b16 %v1169, %v1168
      %v1229 = vpack.c.b16 %v1171, %v1170
      %v1230 = vpack.c.b16 %v1173, %v1172
      %v1231 = vpack.c.b16 %v1175, %v1174
      %v1232 = vpack.c.b16 %v1177, %v1176
      %v1233 = vpack.c.b16 %v1179, %v1178
      %v1234 = vpack.c.b16 %v1181, %v1180
      %v1235 = vpack.c.b16 %v1183, %v1182
      %v1236 = vpack.c.b16 %v1185, %v1184
      %v1237 = vpack.c.b16 %v1187, %v1186
      %v1238 = vpack.c.b16 %v1189, %v1188
      %v1239 = vpack.c.b16 %v1191, %v1190
      %v1240 = vpack.c.b16 %v1193, %v1192
      %v1241 = vpack.c.b16 %v1195, %v1194
      %v1242 = vpack.c.b16 %v1197, %v1196
      %v1243 = vpack.c.b16 %v1199, %v1198
      %v1244 = vpack.c.b16 %v1201, %v1200
      %v1245 = vpack.c.b16 %v1203, %v1202
      %v1246 = vpack.c.b16 %v1205, %v1204
      %v1247 = vpack.c.b16 %v1207, %v1206
      %v1248 = vpack.c.b16 %v1209, %v1208
      %v1249 = vpack.c.b16 %v1211, %v1210
      %v1250 = vpack.c.b16 %v1213, %v1212
      %v1251 = vpack.c.b16 %v1215, %v1214
      %v1252 = vpack.c.b16 %v1217, %v1216
      %v1253 = vpack.c.b16 %v1219, %v1218
      %v1254 = vpack.c.b16 %v1221, %v1220
      %v1255 = vpack.c.b16 %v1223, %v1222
      %v1265 = vunpack.c.l.b16 %v1087
      %v1266 = vunpack.c.l.b16 %v1088
      %v1267 = vunpack.c.l.b16 %v1089
      %v1268 = vunpack.c.l.b16 %v1090
      %v1269 = vunpack.c.l.b16 %v1091
      %v1270 = vunpack.c.l.b16 %v1092
      %v1271 = vunpack.c.l.b16 %v1093
      %v1272 = vunpack.c.l.b16 %v1094
      %v1273 = vunpack.c.l.b16 %v1095
      %v1274 = vpack.c.b16 %v1266, %v1265
      %v1275 = vpack.c.b16 %v1268, %v1267
      %v1276 = vpack.c.b16 %v1270, %v1269
      %v1277 = vpack.c.b16 %v1272, %v1271
      %v1278 = vpack.c.b16 %v1273, %v1273
      %vm1283 = vcmask 588800
      %v1285 = vsel %vm1283, %v1224, 0
      %v1288 = vsel %vm1283, %v1225, 0
      %v1291 = vsel %vm1283, %v1226, 0
      %v1294 = vsel %vm1283, %v1227, 0
      %v1297 = vsel %vm1283, %v1228, 0
      %v1300 = vsel %vm1283, %v1229, 0
      %v1303 = vsel %vm1283, %v1230, 0
      %v1306 = vsel %vm1283, %v1231, 0
      %v1309 = vsel %vm1283, %v1232, 0
      %v1312 = vsel %vm1283, %v1233, 0
      %v1315 = vsel %vm1283, %v1234, 0
      %v1318 = vsel %vm1283, %v1235, 0
      %v1321 = vsel %vm1283, %v1236, 0
      %v1324 = vsel %vm1283, %v1237, 0
      %v1327 = vsel %vm1283, %v1238, 0
      %v1330 = vsel %vm1283, %v1239, 0
      %v1333 = vsel %vm1283, %v1240, 0
      %v1336 = vsel %vm1283, %v1241, 0
      %v1339 = vsel %vm1283, %v1242, 0
      %v1342 = vsel %vm1283, %v1243, 0
      %v1345 = vsel %vm1283, %v1244, 0
      %v1348 = vsel %vm1283, %v1245, 0
      %v1351 = vsel %vm1283, %v1246, 0
      %v1354 = vsel %vm1283, %v1247, 0
      %v1357 = vsel %vm1283, %v1248, 0
      %v1360 = vsel %vm1283, %v1249, 0
      %v1363 = vsel %vm1283, %v1250, 0
      %v1366 = vsel %vm1283, %v1251, 0
      %v1369 = vsel %vm1283, %v1252, 0
      %v1372 = vsel %vm1283, %v1253, 0
      %v1375 = vsel %vm1283, %v1254, 0
      %v1378 = vsel %vm1283, %v1255, 0
      %vm1380 = vcmask 1043456
      %v1382 = vsel %vm1380, %v1278, 0
      %1384 = vmatpush.bf16.msra.mxu0 0
      %1385 = vmatpush.bf16.msra.mxu0 0
      %1386 = vmatpush.bf16.msra.mxu0 0
      %1387 = vmatpush.bf16.msra.mxu0 %v1382
      %1388 = vmatpush.bf16.msra.mxu0 %v1277
      %1389 = vmatpush.bf16.msra.mxu0 %v1276
      %1390 = vmatpush.bf16.msra.mxu0 %v1275
      %1391 = vmatpush.bf16.msra.mxu0 %v1274
      %1392 = vmatmul.bf16.gmra.mxu0 %v1285
      %v1393 = vpop.f32.mrf.mxu0
      %v1394 = vadd.f32 0.0, %v1393
      %v1395 = vpop.f32.mrf.mxu0
      %v1396 = vadd.f32 0.0, %v1395
      %1397 = vmatmul.bf16.gmra.mxu0 %v1288
      %v1398 = vpop.f32.mrf.mxu0
      %v1399 = vadd.f32 0.0, %v1398
      %v1400 = vpop.f32.mrf.mxu0
      %v1401 = vadd.f32 0.0, %v1400
      %1402 = vmatmul.bf16.gmra.mxu0 %v1291
      %v1403 = vpop.f32.mrf.mxu0
      %v1404 = vadd.f32 0.0, %v1403
      %v1405 = vpop.f32.mrf.mxu0
      %v1406 = vadd.f32 0.0, %v1405
      %1407 = vmatmul.bf16.gmra.mxu0 %v1294
      %v1408 = vpop.f32.mrf.mxu0
      %v1409 = vadd.f32 0.0, %v1408
      %v1410 = vpop.f32.mrf.mxu0
      %v1411 = vadd.f32 0.0, %v1410
      %1412 = vmatmul.bf16.gmra.mxu0 %v1297
      %v1413 = vpop.f32.mrf.mxu0
      %v1414 = vadd.f32 0.0, %v1413
      %v1415 = vpop.f32.mrf.mxu0
      %v1416 = vadd.f32 0.0, %v1415
      %1417 = vmatmul.bf16.gmra.mxu0 %v1300
      %v1418 = vpop.f32.mrf.mxu0
      %v1419 = vadd.f32 0.0, %v1418
      %v1420 = vpop.f32.mrf.mxu0
      %v1421 = vadd.f32 0.0, %v1420
      %1422 = vmatmul.bf16.gmra.mxu0 %v1303
      %v1423 = vpop.f32.mrf.mxu0
      %v1424 = vadd.f32 0.0, %v1423
      %v1425 = vpop.f32.mrf.mxu0
      %v1426 = vadd.f32 0.0, %v1425
      %1427 = vmatmul.bf16.gmra.mxu0 %v1306
      %v1428 = vpop.f32.mrf.mxu0
      %v1429 = vadd.f32 0.0, %v1428
      %v1430 = vpop.f32.mrf.mxu0
      %v1431 = vadd.f32 0.0, %v1430
      %1432 = vmatmul.bf16.gmra.mxu0 %v1309
      %v1433 = vpop.f32.mrf.mxu0
      %v1434 = vadd.f32 0.0, %v1433
      %v1435 = vpop.f32.mrf.mxu0
      %v1436 = vadd.f32 0.0, %v1435
      %1437 = vmatmul.bf16.gmra.mxu0 %v1312
      %v1438 = vpop.f32.mrf.mxu0
      %v1439 = vadd.f32 0.0, %v1438
      %v1440 = vpop.f32.mrf.mxu0
      %v1441 = vadd.f32 0.0, %v1440
      %1442 = vmatmul.bf16.gmra.mxu0 %v1315
      %v1443 = vpop.f32.mrf.mxu0
      %v1444 = vadd.f32 0.0, %v1443
      %v1445 = vpop.f32.mrf.mxu0
      %v1446 = vadd.f32 0.0, %v1445
      %1447 = vmatmul.bf16.gmra.mxu0 %v1318
      %v1448 = vpop.f32.mrf.mxu0
      %v1449 = vadd.f32 0.0, %v1448
      %v1450 = vpop.f32.mrf.mxu0
      %v1451 = vadd.f32 0.0, %v1450
      %1452 = vmatmul.bf16.gmra.mxu0 %v1321
      %v1453 = vpop.f32.mrf.mxu0
      %v1454 = vadd.f32 0.0, %v1453
      %v1455 = vpop.f32.mrf.mxu0
      %v1456 = vadd.f32 0.0, %v1455
      %1457 = vmatmul.bf16.gmra.mxu0 %v1324
      %v1458 = vpop.f32.mrf.mxu0
      %v1459 = vadd.f32 0.0, %v1458
      %v1460 = vpop.f32.mrf.mxu0
      %v1461 = vadd.f32 0.0, %v1460
      %1462 = vmatmul.bf16.gmra.mxu0 %v1327
      %v1463 = vpop.f32.mrf.mxu0
      %v1464 = vadd.f32 0.0, %v1463
      %v1465 = vpop.f32.mrf.mxu0
      %v1466 = vadd.f32 0.0, %v1465
      %1467 = vmatmul.bf16.gmra.mxu0 %v1330
      %v1468 = vpop.f32.mrf.mxu0
      %v1469 = vadd.f32 0.0, %v1468
      %v1470 = vpop.f32.mrf.mxu0
      %v1471 = vadd.f32 0.0, %v1470
      %1472 = vmatmul.bf16.gmra.mxu0 %v1333
      %v1473 = vpop.f32.mrf.mxu0
      %v1474 = vadd.f32 0.0, %v1473
      %v1475 = vpop.f32.mrf.mxu0
      %v1476 = vadd.f32 0.0, %v1475
      %1477 = vmatmul.bf16.gmra.mxu0 %v1336
      %v1478 = vpop.f32.mrf.mxu0
      %v1479 = vadd.f32 0.0, %v1478
      %v1480 = vpop.f32.mrf.mxu0
      %v1481 = vadd.f32 0.0, %v1480
      %1482 = vmatmul.bf16.gmra.mxu0 %v1339
      %v1483 = vpop.f32.mrf.mxu0
      %v1484 = vadd.f32 0.0, %v1483
      %v1485 = vpop.f32.mrf.mxu0
      %v1486 = vadd.f32 0.0, %v1485
      %1487 = vmatmul.bf16.gmra.mxu0 %v1342
      %v1488 = vpop.f32.mrf.mxu0
      %v1489 = vadd.f32 0.0, %v1488
      %v1490 = vpop.f32.mrf.mxu0
      %v1491 = vadd.f32 0.0, %v1490
      %1492 = vmatmul.bf16.gmra.mxu0 %v1345
      %v1493 = vpop.f32.mrf.mxu0
      %v1494 = vadd.f32 0.0, %v1493
      %v1495 = vpop.f32.mrf.mxu0
      %v1496 = vadd.f32 0.0, %v1495
      %1497 = vmatmul.bf16.gmra.mxu0 %v1348
      %v1498 = vpop.f32.mrf.mxu0
      %v1499 = vadd.f32 0.0, %v1498
      %v1500 = vpop.f32.mrf.mxu0
      %v1501 = vadd.f32 0.0, %v1500
      %1502 = vmatmul.bf16.gmra.mxu0 %v1351
      %v1503 = vpop.f32.mrf.mxu0
      %v1504 = vadd.f32 0.0, %v1503
      %v1505 = vpop.f32.mrf.mxu0
      %v1506 = vadd.f32 0.0, %v1505
      %1507 = vmatmul.bf16.gmra.mxu0 %v1354
      %v1508 = vpop.f32.mrf.mxu0
      %v1509 = vadd.f32 0.0, %v1508
      %v1510 = vpop.f32.mrf.mxu0
      %v1511 = vadd.f32 0.0, %v1510
      %1512 = vmatmul.bf16.gmra.mxu0 %v1357
      %v1513 = vpop.f32.mrf.mxu0
      %v1514 = vadd.f32 0.0, %v1513
      %v1515 = vpop.f32.mrf.mxu0
      %v1516 = vadd.f32 0.0, %v1515
      %1517 = vmatmul.bf16.gmra.mxu0 %v1360
      %v1518 = vpop.f32.mrf.mxu0
      %v1519 = vadd.f32 0.0, %v1518
      %v1520 = vpop.f32.mrf.mxu0
      %v1521 = vadd.f32 0.0, %v1520
      %1522 = vmatmul.bf16.gmra.mxu0 %v1363
      %v1523 = vpop.f32.mrf.mxu0
      %v1524 = vadd.f32 0.0, %v1523
      %v1525 = vpop.f32.mrf.mxu0
      %v1526 = vadd.f32 0.0, %v1525
      %1527 = vmatmul.bf16.gmra.mxu0 %v1366
      %v1528 = vpop.f32.mrf.mxu0
      %v1529 = vadd.f32 0.0, %v1528
      %v1530 = vpop.f32.mrf.mxu0
      %v1531 = vadd.f32 0.0, %v1530
      %1532 = vmatmul.bf16.gmra.mxu0 %v1369
      %v1533 = vpop.f32.mrf.mxu0
      %v1534 = vadd.f32 0.0, %v1533
      %v1535 = vpop.f32.mrf.mxu0
      %v1536 = vadd.f32 0.0, %v1535
      %1537 = vmatmul.bf16.gmra.mxu0 %v1372
      %v1538 = vpop.f32.mrf.mxu0
      %v1539 = vadd.f32 0.0, %v1538
      %v1540 = vpop.f32.mrf.mxu0
      %v1541 = vadd.f32 0.0, %v1540
      %1542 = vmatmul.bf16.gmra.mxu0 %v1375
      %v1543 = vpop.f32.mrf.mxu0
      %v1544 = vadd.f32 0.0, %v1543
      %v1545 = vpop.f32.mrf.mxu0
      %v1546 = vadd.f32 0.0, %v1545
      %1547 = vmatmul.bf16.gmra.mxu0 %v1378
      %v1548 = vpop.f32.mrf.mxu0
      %v1549 = vadd.f32 0.0, %v1548
      %v1550 = vpop.f32.mrf.mxu0
      %v1551 = vadd.f32 0.0, %v1550
      %1552 = vdwg.mxu0
      %v1553 = vadd.f32 %v959, %v1394
      %v1554 = vadd.f32 %v960, %v1396
      %v1555 = vadd.f32 %v961, %v1399
      %v1556 = vadd.f32 %v962, %v1401
      %v1557 = vadd.f32 %v963, %v1404
      %v1558 = vadd.f32 %v964, %v1406
      %v1559 = vadd.f32 %v965, %v1409
      %v1560 = vadd.f32 %v966, %v1411
      %v1561 = vadd.f32 %v967, %v1414
      %v1562 = vadd.f32 %v968, %v1416
      %v1563 = vadd.f32 %v969, %v1419
      %v1564 = vadd.f32 %v970, %v1421
      %v1565 = vadd.f32 %v971, %v1424
      %v1566 = vadd.f32 %v972, %v1426
      %v1567 = vadd.f32 %v973, %v1429
      %v1568 = vadd.f32 %v974, %v1431
      %v1569 = vadd.f32 %v975, %v1434
      %v1570 = vadd.f32 %v976, %v1436
      %v1571 = vadd.f32 %v977, %v1439
      %v1572 = vadd.f32 %v978, %v1441
      %v1573 = vadd.f32 %v979, %v1444
      %v1574 = vadd.f32 %v980, %v1446
      %v1575 = vadd.f32 %v981, %v1449
      %v1576 = vadd.f32 %v982, %v1451
      %v1577 = vadd.f32 %v983, %v1454
      %v1578 = vadd.f32 %v984, %v1456
      %v1579 = vadd.f32 %v985, %v1459
      %v1580 = vadd.f32 %v986, %v1461
      %v1581 = vadd.f32 %v987, %v1464
      %v1582 = vadd.f32 %v988, %v1466
      %v1583 = vadd.f32 %v989, %v1469
      %v1584 = vadd.f32 %v990, %v1471
      %v1585 = vadd.f32 %v991, %v1474
      %v1586 = vadd.f32 %v992, %v1476
      %v1587 = vadd.f32 %v993, %v1479
      %v1588 = vadd.f32 %v994, %v1481
      %v1589 = vadd.f32 %v995, %v1484
      %v1590 = vadd.f32 %v996, %v1486
      %v1591 = vadd.f32 %v997, %v1489
      %v1592 = vadd.f32 %v998, %v1491
      %v1593 = vadd.f32 %v999, %v1494
      %v1594 = vadd.f32 %v1000, %v1496
      %v1595 = vadd.f32 %v1001, %v1499
      %v1596 = vadd.f32 %v1002, %v1501
      %v1597 = vadd.f32 %v1003, %v1504
      %v1598 = vadd.f32 %v1004, %v1506
      %v1599 = vadd.f32 %v1005, %v1509
      %v1600 = vadd.f32 %v1006, %v1511
      %v1601 = vadd.f32 %v1007, %v1514
      %v1602 = vadd.f32 %v1008, %v1516
      %v1603 = vadd.f32 %v1009, %v1519
      %v1604 = vadd.f32 %v1010, %v1521
      %v1605 = vadd.f32 %v1011, %v1524
      %v1606 = vadd.f32 %v1012, %v1526
      %v1607 = vadd.f32 %v1013, %v1529
      %v1608 = vadd.f32 %v1014, %v1531
      %v1609 = vadd.f32 %v1015, %v1534
      %v1610 = vadd.f32 %v1016, %v1536
      %v1611 = vadd.f32 %v1017, %v1539
      %v1612 = vadd.f32 %v1018, %v1541
      %v1613 = vadd.f32 %v1019, %v1544
      %v1614 = vadd.f32 %v1020, %v1546
      %v1615 = vadd.f32 %v1021, %v1549
      %v1616 = vadd.f32 %v1022, %v1551
      %vm1617 = vcmask 64512
      %1618 = vst.msk [vmem:[#allocation2] sm:$0xff] %vm1617, %v1553
      %1619 = vst.msk [vmem:[#allocation2 + $0x8] sm:$0xff] %vm1617, %v1554
      %1620 = vst.msk [vmem:[#allocation2 + $0x10] sm:$0xff] %vm1617, %v1555
      %1621 = vst.msk [vmem:[#allocation2 + $0x18] sm:$0xff] %vm1617, %v1556
      %1622 = vst.msk [vmem:[#allocation2 + $0x20] sm:$0xff] %vm1617, %v1557
      %1623 = vst.msk [vmem:[#allocation2 + $0x28] sm:$0xff] %vm1617, %v1558
      %1624 = vst.msk [vmem:[#allocation2 + $0x30] sm:$0xff] %vm1617, %v1559
      %1625 = vst.msk [vmem:[#allocation2 + $0x38] sm:$0xff] %vm1617, %v1560
      %1626 = vst.msk [vmem:[#allocation2 + $0x40] sm:$0xff] %vm1617, %v1561
      %1627 = vst.msk [vmem:[#allocation2 + $0x48] sm:$0xff] %vm1617, %v1562
      %1628 = vst.msk [vmem:[#allocation2 + $0x50] sm:$0xff] %vm1617, %v1563
      %1629 = vst.msk [vmem:[#allocation2 + $0x58] sm:$0xff] %vm1617, %v1564
      %1630 = vst.msk [vmem:[#allocation2 + $0x60] sm:$0xff] %vm1617, %v1565
      %1631 = vst.msk [vmem:[#allocation2 + $0x68] sm:$0xff] %vm1617, %v1566
      %1632 = vst.msk [vmem:[#allocation2 + $0x70] sm:$0xff] %vm1617, %v1567
      %1633 = vst.msk [vmem:[#allocation2 + $0x78] sm:$0xff] %vm1617, %v1568
      %1634 = vst.msk [vmem:[#allocation2 + $0x80] sm:$0xff] %vm1617, %v1569
      %1635 = vst.msk [vmem:[#allocation2 + $0x88] sm:$0xff] %vm1617, %v1570
      %1636 = vst.msk [vmem:[#allocation2 + $0x90] sm:$0xff] %vm1617, %v1571
      %1637 = vst.msk [vmem:[#allocation2 + $0x98] sm:$0xff] %vm1617, %v1572
      %1638 = vst.msk [vmem:[#allocation2 + $0xa0] sm:$0xff] %vm1617, %v1573
      %1639 = vst.msk [vmem:[#allocation2 + $0xa8] sm:$0xff] %vm1617, %v1574
      %1640 = vst.msk [vmem:[#allocation2 + $0xb0] sm:$0xff] %vm1617, %v1575
      %1641 = vst.msk [vmem:[#allocation2 + $0xb8] sm:$0xff] %vm1617, %v1576
      %1642 = vst.msk [vmem:[#allocation2 + $0xc0] sm:$0xff] %vm1617, %v1577
      %1643 = vst.msk [vmem:[#allocation2 + $0xc8] sm:$0xff] %vm1617, %v1578
      %1644 = vst.msk [vmem:[#allocation2 + $0xd0] sm:$0xff] %vm1617, %v1579
      %1645 = vst.msk [vmem:[#allocation2 + $0xd8] sm:$0xff] %vm1617, %v1580
      %1646 = vst.msk [vmem:[#allocation2 + $0xe0] sm:$0xff] %vm1617, %v1581
      %1647 = vst.msk [vmem:[#allocation2 + $0xe8] sm:$0xff] %vm1617, %v1582
      %1648 = vst.msk [vmem:[#allocation2 + $0xf0] sm:$0xff] %vm1617, %v1583
      %1649 = vst.msk [vmem:[#allocation2 + $0xf8] sm:$0xff] %vm1617, %v1584
      %1650 = vst.msk [vmem:[#allocation2 + $0x100] sm:$0xff] %vm1617, %v1585
      %1651 = vst.msk [vmem:[#allocation2 + $0x108] sm:$0xff] %vm1617, %v1586
      %1652 = vst.msk [vmem:[#allocation2 + $0x110] sm:$0xff] %vm1617, %v1587
      %1653 = vst.msk [vmem:[#allocation2 + $0x118] sm:$0xff] %vm1617, %v1588
      %1654 = vst.msk [vmem:[#allocation2 + $0x120] sm:$0xff] %vm1617, %v1589
      %1655 = vst.msk [vmem:[#allocation2 + $0x128] sm:$0xff] %vm1617, %v1590
      %1656 = vst.msk [vmem:[#allocation2 + $0x130] sm:$0xff] %vm1617, %v1591
      %1657 = vst.msk [vmem:[#allocation2 + $0x138] sm:$0xff] %vm1617, %v1592
      %1658 = vst.msk [vmem:[#allocation2 + $0x140] sm:$0xff] %vm1617, %v1593
      %1659 = vst.msk [vmem:[#allocation2 + $0x148] sm:$0xff] %vm1617, %v1594
      %1660 = vst.msk [vmem:[#allocation2 + $0x150] sm:$0xff] %vm1617, %v1595
      %1661 = vst.msk [vmem:[#allocation2 + $0x158] sm:$0xff] %vm1617, %v1596
      %1662 = vst.msk [vmem:[#allocation2 + $0x160] sm:$0xff] %vm1617, %v1597
      %1663 = vst.msk [vmem:[#allocation2 + $0x168] sm:$0xff] %vm1617, %v1598
      %1664 = vst.msk [vmem:[#allocation2 + $0x170] sm:$0xff] %vm1617, %v1599
      %1665 = vst.msk [vmem:[#allocation2 + $0x178] sm:$0xff] %vm1617, %v1600
      %1666 = vst.msk [vmem:[#allocation2 + $0x180] sm:$0xff] %vm1617, %v1601
      %1667 = vst.msk [vmem:[#allocation2 + $0x188] sm:$0xff] %vm1617, %v1602
      %1668 = vst.msk [vmem:[#allocation2 + $0x190] sm:$0xff] %vm1617, %v1603
      %1669 = vst.msk [vmem:[#allocation2 + $0x198] sm:$0xff] %vm1617, %v1604
      %1670 = vst.msk [vmem:[#allocation2 + $0x1a0] sm:$0xff] %vm1617, %v1605
      %1671 = vst.msk [vmem:[#allocation2 + $0x1a8] sm:$0xff] %vm1617, %v1606
      %1672 = vst.msk [vmem:[#allocation2 + $0x1b0] sm:$0xff] %vm1617, %v1607
      %1673 = vst.msk [vmem:[#allocation2 + $0x1b8] sm:$0xff] %vm1617, %v1608
      %1674 = vst.msk [vmem:[#allocation2 + $0x1c0] sm:$0xff] %vm1617, %v1609
      %1675 = vst.msk [vmem:[#allocation2 + $0x1c8] sm:$0xff] %vm1617, %v1610
      %1676 = vst.msk [vmem:[#allocation2 + $0x1d0] sm:$0xff] %vm1617, %v1611
      %1677 = vst.msk [vmem:[#allocation2 + $0x1d8] sm:$0xff] %vm1617, %v1612
      %1678 = vst.msk [vmem:[#allocation2 + $0x1e0] sm:$0xff] %vm1617, %v1613
      %1679 = vst.msk [vmem:[#allocation2 + $0x1e8] sm:$0xff] %vm1617, %v1614
      %1680 = vst.msk [vmem:[#allocation2 + $0x1f0] sm:$0xff] %vm1617, %v1615
      %1681 = vst.msk [vmem:[#allocation2 + $0x1f8] sm:$0xff] %vm1617, %v1616
      // Predicated region
      $region49: #{gen_block_forward.11} parent=43 // pred_check
        %p1682 = pneg %p323
      $region50: #{gen_block_forward.11} parent=43 // pred_check_branch
        %1684 = sbr.rel (%p1682) target = $region52
      $region51: #{gen_block_forward.11} parent=43 // pred_region
        %v1685 = vld [vmem:[#allocation2] sm:$0xff]
        %v1686 = vld [vmem:[#allocation2 + $0x8] sm:$0xff]
        %v1687 = vld [vmem:[#allocation2 + $0x10] sm:$0xff]
        %v1688 = vld [vmem:[#allocation2 + $0x18] sm:$0xff]
        %v1689 = vld [vmem:[#allocation2 + $0x20] sm:$0xff]
        %v1690 = vld [vmem:[#allocation2 + $0x28] sm:$0xff]
        %v1691 = vld [vmem:[#allocation2 + $0x30] sm:$0xff]
        %v1692 = vld [vmem:[#allocation2 + $0x38] sm:$0xff]
        %v1693 = vld [vmem:[#allocation2 + $0x40] sm:$0xff]
        %v1694 = vld [vmem:[#allocation2 + $0x48] sm:$0xff]
        %v1695 = vld [vmem:[#allocation2 + $0x50] sm:$0xff]
        %v1696 = vld [vmem:[#allocation2 + $0x58] sm:$0xff]
        %v1697 = vld [vmem:[#allocation2 + $0x60] sm:$0xff]
        %v1698 = vld [vmem:[#allocation2 + $0x68] sm:$0xff]
        %v1699 = vld [vmem:[#allocation2 + $0x70] sm:$0xff]
        %v1700 = vld [vmem:[#allocation2 + $0x78] sm:$0xff]
        %v1701 = vld [vmem:[#allocation2 + $0x80] sm:$0xff]
        %v1702 = vld [vmem:[#allocation2 + $0x88] sm:$0xff]
        %v1703 = vld [vmem:[#allocation2 + $0x90] sm:$0xff]
        %v1704 = vld [vmem:[#allocation2 + $0x98] sm:$0xff]
        %v1705 = vld [vmem:[#allocation2 + $0xa0] sm:$0xff]
        %v1706 = vld [vmem:[#allocation2 + $0xa8] sm:$0xff]
        %v1707 = vld [vmem:[#allocation2 + $0xb0] sm:$0xff]
        %v1708 = vld [vmem:[#allocation2 + $0xb8] sm:$0xff]
        %v1709 = vld [vmem:[#allocation2 + $0xc0] sm:$0xff]
        %v1710 = vld [vmem:[#allocation2 + $0xc8] sm:$0xff]
        %v1711 = vld [vmem:[#allocation2 + $0xd0] sm:$0xff]
        %v1712 = vld [vmem:[#allocation2 + $0xd8] sm:$0xff]
        %v1713 = vld [vmem:[#allocation2 + $0xe0] sm:$0xff]
        %v1714 = vld [vmem:[#allocation2 + $0xe8] sm:$0xff]
        %v1715 = vld [vmem:[#allocation2 + $0xf0] sm:$0xff]
        %v1716 = vld [vmem:[#allocation2 + $0xf8] sm:$0xff]
        %v1717 = vld [vmem:[#allocation2 + $0x100] sm:$0xff]
        %v1718 = vld [vmem:[#allocation2 + $0x108] sm:$0xff]
        %v1719 = vld [vmem:[#allocation2 + $0x110] sm:$0xff]
        %v1720 = vld [vmem:[#allocation2 + $0x118] sm:$0xff]
        %v1721 = vld [vmem:[#allocation2 + $0x120] sm:$0xff]
        %v1722 = vld [vmem:[#allocation2 + $0x128] sm:$0xff]
        %v1723 = vld [vmem:[#allocation2 + $0x130] sm:$0xff]
        %v1724 = vld [vmem:[#allocation2 + $0x138] sm:$0xff]
        %v1725 = vld [vmem:[#allocation2 + $0x140] sm:$0xff]
        %v1726 = vld [vmem:[#allocation2 + $0x148] sm:$0xff]
        %v1727 = vld [vmem:[#allocation2 + $0x150] sm:$0xff]
        %v1728 = vld [vmem:[#allocation2 + $0x158] sm:$0xff]
        %v1729 = vld [vmem:[#allocation2 + $0x160] sm:$0xff]
        %v1730 = vld [vmem:[#allocation2 + $0x168] sm:$0xff]
        %v1731 = vld [vmem:[#allocation2 + $0x170] sm:$0xff]
        %v1732 = vld [vmem:[#allocation2 + $0x178] sm:$0xff]
        %v1733 = vld [vmem:[#allocation2 + $0x180] sm:$0xff]
        %v1734 = vld [vmem:[#allocation2 + $0x188] sm:$0xff]
        %v1735 = vld [vmem:[#allocation2 + $0x190] sm:$0xff]
        %v1736 = vld [vmem:[#allocation2 + $0x198] sm:$0xff]
        %v1737 = vld [vmem:[#allocation2 + $0x1a0] sm:$0xff]
        %v1738 = vld [vmem:[#allocation2 + $0x1a8] sm:$0xff]
        %v1739 = vld [vmem:[#allocation2 + $0x1b0] sm:$0xff]
        %v1740 = vld [vmem:[#allocation2 + $0x1b8] sm:$0xff]
        %v1741 = vld [vmem:[#allocation2 + $0x1c0] sm:$0xff]
        %v1742 = vld [vmem:[#allocation2 + $0x1c8] sm:$0xff]
        %v1743 = vld [vmem:[#allocation2 + $0x1d0] sm:$0xff]
        %v1744 = vld [vmem:[#allocation2 + $0x1d8] sm:$0xff]
        %v1745 = vld [vmem:[#allocation2 + $0x1e0] sm:$0xff]
        %v1746 = vld [vmem:[#allocation2 + $0x1e8] sm:$0xff]
        %v1747 = vld [vmem:[#allocation2 + $0x1f0] sm:$0xff]
        %v1748 = vld [vmem:[#allocation2 + $0x1f8] sm:$0xff]
        %1749 = vst.msk [vmem:[%s320] sm:$0xff] %vm1617, %v1685
        %1750 = vst.msk [vmem:[%s320 + $0x8] sm:$0xff] %vm1617, %v1686
        %1751 = vst.msk [vmem:[%s320 + $0x10] sm:$0xff] %vm1617, %v1687
        %1752 = vst.msk [vmem:[%s320 + $0x18] sm:$0xff] %vm1617, %v1688
        %1753 = vst.msk [vmem:[%s320 + $0x20] sm:$0xff] %vm1617, %v1689
        %1754 = vst.msk [vmem:[%s320 + $0x28] sm:$0xff] %vm1617, %v1690
        %1755 = vst.msk [vmem:[%s320 + $0x30] sm:$0xff] %vm1617, %v1691
        %1756 = vst.msk [vmem:[%s320 + $0x38] sm:$0xff] %vm1617, %v1692
        %1757 = vst.msk [vmem:[%s320 + $0x40] sm:$0xff] %vm1617, %v1693
        %1758 = vst.msk [vmem:[%s320 + $0x48] sm:$0xff] %vm1617, %v1694
        %1759 = vst.msk [vmem:[%s320 + $0x50] sm:$0xff] %vm1617, %v1695
        %1760 = vst.msk [vmem:[%s320 + $0x58] sm:$0xff] %vm1617, %v1696
        %1761 = vst.msk [vmem:[%s320 + $0x60] sm:$0xff] %vm1617, %v1697
        %1762 = vst.msk [vmem:[%s320 + $0x68] sm:$0xff] %vm1617, %v1698
        %1763 = vst.msk [vmem:[%s320 + $0x70] sm:$0xff] %vm1617, %v1699
        %1764 = vst.msk [vmem:[%s320 + $0x78] sm:$0xff] %vm1617, %v1700
        %1765 = vst.msk [vmem:[%s320 + $0x80] sm:$0xff] %vm1617, %v1701
        %1766 = vst.msk [vmem:[%s320 + $0x88] sm:$0xff] %vm1617, %v1702
        %1767 = vst.msk [vmem:[%s320 + $0x90] sm:$0xff] %vm1617, %v1703
        %1768 = vst.msk [vmem:[%s320 + $0x98] sm:$0xff] %vm1617, %v1704
        %1769 = vst.msk [vmem:[%s320 + $0xa0] sm:$0xff] %vm1617, %v1705
        %1770 = vst.msk [vmem:[%s320 + $0xa8] sm:$0xff] %vm1617, %v1706
        %1771 = vst.msk [vmem:[%s320 + $0xb0] sm:$0xff] %vm1617, %v1707
        %1772 = vst.msk [vmem:[%s320 + $0xb8] sm:$0xff] %vm1617, %v1708
        %1773 = vst.msk [vmem:[%s320 + $0xc0] sm:$0xff] %vm1617, %v1709
        %1774 = vst.msk [vmem:[%s320 + $0xc8] sm:$0xff] %vm1617, %v1710
        %1775 = vst.msk [vmem:[%s320 + $0xd0] sm:$0xff] %vm1617, %v1711
        %1776 = vst.msk [vmem:[%s320 + $0xd8] sm:$0xff] %vm1617, %v1712
        %1777 = vst.msk [vmem:[%s320 + $0xe0] sm:$0xff] %vm1617, %v1713
        %1778 = vst.msk [vmem:[%s320 + $0xe8] sm:$0xff] %vm1617, %v1714
        %1779 = vst.msk [vmem:[%s320 + $0xf0] sm:$0xff] %vm1617, %v1715
        %1780 = vst.msk [vmem:[%s320 + $0xf8] sm:$0xff] %vm1617, %v1716
        %1781 = vst.msk [vmem:[%s320 + $0x100] sm:$0xff] %vm1617, %v1717
        %1782 = vst.msk [vmem:[%s320 + $0x108] sm:$0xff] %vm1617, %v1718
        %1783 = vst.msk [vmem:[%s320 + $0x110] sm:$0xff] %vm1617, %v1719
        %1784 = vst.msk [vmem:[%s320 + $0x118] sm:$0xff] %vm1617, %v1720
        %1785 = vst.msk [vmem:[%s320 + $0x120] sm:$0xff] %vm1617, %v1721
        %1786 = vst.msk [vmem:[%s320 + $0x128] sm:$0xff] %vm1617, %v1722
        %1787 = vst.msk [vmem:[%s320 + $0x130] sm:$0xff] %vm1617, %v1723
        %1788 = vst.msk [vmem:[%s320 + $0x138] sm:$0xff] %vm1617, %v1724
        %1789 = vst.msk [vmem:[%s320 + $0x140] sm:$0xff] %vm1617, %v1725
        %1790 = vst.msk [vmem:[%s320 + $0x148] sm:$0xff] %vm1617, %v1726
        %1791 = vst.msk [vmem:[%s320 + $0x150] sm:$0xff] %vm1617, %v1727
        %1792 = vst.msk [vmem:[%s320 + $0x158] sm:$0xff] %vm1617, %v1728
        %1793 = vst.msk [vmem:[%s320 + $0x160] sm:$0xff] %vm1617, %v1729
        %1794 = vst.msk [vmem:[%s320 + $0x168] sm:$0xff] %vm1617, %v1730
        %1795 = vst.msk [vmem:[%s320 + $0x170] sm:$0xff] %vm1617, %v1731
        %1796 = vst.msk [vmem:[%s320 + $0x178] sm:$0xff] %vm1617, %v1732
        %1797 = vst.msk [vmem:[%s320 + $0x180] sm:$0xff] %vm1617, %v1733
        %1798 = vst.msk [vmem:[%s320 + $0x188] sm:$0xff] %vm1617, %v1734
        %1799 = vst.msk [vmem:[%s320 + $0x190] sm:$0xff] %vm1617, %v1735
        %1800 = vst.msk [vmem:[%s320 + $0x198] sm:$0xff] %vm1617, %v1736
        %1801 = vst.msk [vmem:[%s320 + $0x1a0] sm:$0xff] %vm1617, %v1737
        %1802 = vst.msk [vmem:[%s320 + $0x1a8] sm:$0xff] %vm1617, %v1738
        %1803 = vst.msk [vmem:[%s320 + $0x1b0] sm:$0xff] %vm1617, %v1739
        %1804 = vst.msk [vmem:[%s320 + $0x1b8] sm:$0xff] %vm1617, %v1740
        %1805 = vst.msk [vmem:[%s320 + $0x1c0] sm:$0xff] %vm1617, %v1741
        %1806 = vst.msk [vmem:[%s320 + $0x1c8] sm:$0xff] %vm1617, %v1742
        %1807 = vst.msk [vmem:[%s320 + $0x1d0] sm:$0xff] %vm1617, %v1743
        %1808 = vst.msk [vmem:[%s320 + $0x1d8] sm:$0xff] %vm1617, %v1744
        %1809 = vst.msk [vmem:[%s320 + $0x1e0] sm:$0xff] %vm1617, %v1745
        %1810 = vst.msk [vmem:[%s320 + $0x1e8] sm:$0xff] %vm1617, %v1746
        %1811 = vst.msk [vmem:[%s320 + $0x1f0] sm:$0xff] %vm1617, %v1747
        %1812 = vst.msk [vmem:[%s320 + $0x1f8] sm:$0xff] %vm1617, %v1748
      $region52: #{gen_block_forward.11} parent=43 // pred_fallthru
        _
      %s1813 = smul.u32 64, %s21
      %p1814 = scmp.lt.s32.totalorder %s1813, 255
      %s1815 = scalar_select %p1814, %s1813, 255
      %s1816 = smul.addr %s1815, 8
      %s1817 = scalar_lea.vmem %s6, %s1816
      // Predicated region
      $region53: #{gen_block_forward.11} parent=43 // pred_check
        %p1818 = pneg %p190
      $region54: #{gen_block_forward.11} parent=43 // pred_check_branch
        %1820 = sbr.rel (%p1818) target = $region56
      $region55: #{gen_block_forward.11} parent=43 // pred_region
        %s1821 = smul.u32 64, %s21
      $region56: #{gen_block_forward.11} parent=43 // pred_fallthru
        _
    $region44: #{gen_block_forward.11} parent=5 // pred_fallthru
      _
    %p1822 = scmp.le.s32.totalorder 2, %s12
    // Predicated region
    $region57: #{gen_block_forward.11} parent=5 // pred_check
      %p1823 = pneg %p1822
    $region58: #{gen_block_forward.11} parent=5 // pred_check_branch
      %1825 = sbr.rel (%p1823) target = $region60
    $region59: #{gen_block_forward.11} parent=5 // pred_region
      %s1826 = ssub.s32 %s12, 2
      // Predicated region
      $region61: #{gen_block_forward.11} parent=59 // pred_check
        %p1827 = pneg %p196
      $region62: #{gen_block_forward.11} parent=59 // pred_check_branch
        %1829 = sbr.rel (%p1827) target = $region64
      $region63: #{gen_block_forward.11} parent=59 // pred_region
        %s1830 = smul.u32 64, %s23
        %p1831 = scmp.lt.s32.totalorder %s1830, 255
        %s1832 = scalar_select %p1831, %s1830, 255
        %s1833 = smul.addr %s1832, 8
        %s1834 = scalar_lea.vmem %s6, %s1833
      $region64: #{gen_block_forward.11} parent=59 // pred_fallthru
        _
    $region60: #{gen_block_forward.11} parent=5 // pred_fallthru
      _
  $region6: #{gen_block_forward.11} parent=0 // loop_footer
    %s16 = sadd.s32 1, %s12
  $region7: #{gen_block_forward.11} parent=0 // loop_footer_branch
    %11 = sbr.rel target = $region3
  $region8: #{gen_block_forward.11} parent=0 // loop_exit
    _

</llo_original>
